<compile_context>
chip_gen: v7x
topology: tpu7x:2x2x1
jax: 0.10.0
libtpu: 0.0.40
codegen_flags: <defaults>
</compile_context>

<pallas_src>
import jax
import jax.numpy as jnp
from jax import lax
from jax.experimental import pallas as pl
from jax.experimental.pallas import tpu as pltpu


def _round_up(n, m):
    return ((n + m - 1) // m) * m


def _cdiv(a, b):
    return (a + b - 1) // b


def _choose_tile(n, cap=256, min_steps=4):
    """Pick the batch tile (multiple of 8, <= cap).

    Cost model, in units of "rows of HBM writeback":
      padded rows actually written
      + ~24 rows/step pipeline overhead (~0.35 us/step vs ~16 ns/row @ ~1 TB/s)
      + one extra tile when the step count is odd (v7x dual-TC imbalance).
    Requires >= min_steps pipeline steps whenever the batch is large enough, so
    the BlockSpec software pipeline always has work to overlap.
    """
    n8 = _round_up(max(int(n), 1), 8)
    cap = max(8, min(int(cap), n8))
    want_steps = min(int(min_steps), _cdiv(n8, 8))
    best_tile, best_cost = 8, None
    for tile in range(8, cap + 1, 8):
        steps = _cdiv(n8, tile)
        if steps < want_steps:
            continue
        cost = steps * tile + 24 * steps + (tile if steps % 2 else 0)
        if best_cost is None or cost < best_cost:
            best_tile, best_cost = tile, cost
    return best_tile


def cnn_kernel(x_ref, w1_ref, b1_ref, w2p_ref, b2p_ref, wl128_ref, bl128_ref, o_ref):
    # x_ref:     (T, 9)
    # w1_ref:    (9, 16),  b1_ref: (1, 16)
    # w2p_ref:   (16, 64)  columns 0..31 = even conv2 output channels (i=0,2,..),
    #                      columns 32..63 = odd channels (i=1,3,..)
    # b2p_ref:   (1, 64)   same permutation
    # wl128_ref: (1, 128)  Linear(1,64).weight tiled twice -> wl128[c] = wl[c % 64]
    # bl128_ref: (1, 128)  Linear(1,64).bias  tiled twice
    # o_ref:     (T, 32, 128) packed: o_ref[n, r, c] = out[n, 2r + (c>=64), c % 64]
    x = x_ref[...]
    T = x.shape[0]

    # conv1 (kernel_size=1) == pointwise channel matmul, then ReLU
    h1 = jnp.dot(x, w1_ref[...], preferred_element_type=jnp.float32) + b1_ref[...]
    h1 = jnp.maximum(h1, 0.0)                                    # (T, 16)

    # conv2 (kernel_size=1) with even/odd-permuted columns, then ReLU.
    # max_pool1d(k=1) is the identity.
    h2p = jnp.dot(h1, w2p_ref[...], preferred_element_type=jnp.float32) + b2p_ref[...]
    h2p = jnp.maximum(h2p, 0.0)                                  # (T, 64) = [even | odd]

    h2e = h2p[:, :32]                                            # h2[:, 2r]
    h2o = h2p[:, 32:]                                            # h2[:, 2r+1]

    # Packed broadcast hpack[n, r, c] = h2[n, 2r + (c>=64)].
    # Small (1,1,128) lane mask; jnp.where broadcasts the (T,32,1) halves itself,
    # avoiding explicit full-size iota / pre-broadcast temporaries.
    lane = lax.broadcasted_iota(jnp.int32, (1, 1, 128), 2)
    hpack = jnp.where(lane < 64, h2e[:, :, None], h2o[:, :, None])   # (T, 32, 128)

    # layer1 = Linear(1, 64):  z[n, i, j] = relu(h2[n, i] * wl[j] + bl[j])
    z = hpack * wl128_ref[...][None, :, :] + bl128_ref[...][None, :, :]
    z = jnp.maximum(z, 0.0)                                      # (T, 32, 128)

    # log_softmax over i (the 64 conv2 channels).  In packed coords this is a
    # reduction over r (sublanes) followed by folding lane c with lane c^64.
    m_half = jnp.max(z, axis=1)                                  # (T, 128)
    m = jnp.maximum(m_half, pltpu.roll(m_half, shift=64, axis=1))
    zm = z - m[:, None, :]                                       # reused below
    e = jnp.exp(zm)
    s_half = jnp.sum(e, axis=1)                                  # (T, 128)
    s = s_half + pltpu.roll(s_half, shift=64, axis=1)
    o_ref[...] = (zm - jnp.log(s)[:, None, :]).astype(o_ref.dtype)


def init_params(key):
    """Deterministic init mirroring the layer shapes used in forward()."""
    k1, k2, k3, k4, k5, k6 = jax.random.split(key, 6)

    def u(k, shape, fan_in):
        bound = 1.0 / jnp.sqrt(fan_in)
        return jax.random.uniform(k, shape, jnp.float32, -bound, bound)

    return {
        "conv1_w": u(k1, (16, 9, 1), 9.0),    # Conv1d(9, 16, 1).weight
        "conv1_b": u(k2, (16,), 9.0),
        "conv2_w": u(k3, (64, 16, 1), 16.0),  # Conv1d(16, 64, 1).weight
        "conv2_b": u(k4, (64,), 16.0),
        "lin1_w":  u(k5, (64, 1), 1.0),       # Linear(1, 64).weight
        "lin1_b":  u(k6, (64,), 1.0),
        # layer2/layer3/layer4/dropout1/dropout2 are defined in __init__ but
        # never used in forward(), so they are intentionally omitted.
    }


def cnn_forward(x, params, *, tile_n=None, out_dtype=jnp.float32):
    # x: (N, 9, 1) float32, NCL like PyTorch Conv1d input.
    # out_dtype=jnp.bfloat16 halves the dominant HBM writeback if downstream tolerates it.
    N = x.shape[0]
    x2d = x[:, :, 0].astype(jnp.float32)                    # (N, 9)

    w1 = params["conv1_w"][:, :, 0].T                       # (9, 16)
    b1 = params["conv1_b"][None, :]                         # (1, 16)
    w2 = params["conv2_w"][:, :, 0].T                       # (16, 64)
    b2 = params["conv2_b"][None, :]                         # (1, 64)
    # Even/odd channel split so the kernel's packed layout is a plain reshape
    # of the PyTorch output (columns 0..31 = channels 0,2,..; 32..63 = 1,3,..).
    w2p = jnp.concatenate([w2[:, 0::2], w2[:, 1::2]], axis=1)   # (16, 64)
    b2p = jnp.concatenate([b2[:, 0::2], b2[:, 1::2]], axis=1)   # (1, 64)
    wl = params["lin1_w"][:, 0][None, :]                    # (1, 64)
    bl = params["lin1_b"][None, :]                          # (1, 64)
    wl128 = jnp.tile(wl, (1, 2))                            # (1, 128)
    bl128 = jnp.tile(bl, (1, 2))                            # (1, 128)

    # Batch tile: multiple of 8, capped at 256 rows, chosen so the grid has >= 4
    # (preferably an even number of) pipelined "parallel" steps with minimal padding.
    n8 = _round_up(max(N, 1), 8)
    if tile_n is None:
        tile_n = _choose_tile(N, cap=256, min_steps=4)
    else:
        tile_n = _round_up(max(8, min(int(tile_n), n8)), 8)
    steps = _cdiv(n8, tile_n)
    n_pad = steps * tile_n
    if n_pad != N:
        x2d = jnp.pad(x2d, ((0, n_pad - N), (0, 0)))
    grid = (steps,)

    out_bytes = jnp.dtype(out_dtype).itemsize
    cost = pl.CostEstimate(
        flops=int(n_pad) * (2 * 9 * 16 + 2 * 16 * 64 + 8 * 64 * 64),
        transcendentals=int(n_pad) * (64 * 64 + 128),
        bytes_accessed=int(n_pad) * (32 * 128 * out_bytes + 9 * 4)
        + 4 * (9 * 16 + 16 + 16 * 64 + 64 + 2 * 128),
    )

    out_packed = pl.pallas_call(
        cnn_kernel,
        out_shape=jax.ShapeDtypeStruct((n_pad, 32, 128), out_dtype),
        grid=grid,
        in_specs=[
            pl.BlockSpec((tile_n, 9), lambda i: (i, 0)),     # x tile
            pl.BlockSpec((9, 16), lambda i: (0, 0)),         # w1
            pl.BlockSpec((1, 16), lambda i: (0, 0)),         # b1
            pl.BlockSpec((16, 64), lambda i: (0, 0)),        # w2 (even|odd)
            pl.BlockSpec((1, 64), lambda i: (0, 0)),         # b2 (even|odd)
            pl.BlockSpec((1, 128), lambda i: (0, 0)),        # wl tiled x2
            pl.BlockSpec((1, 128), lambda i: (0, 0)),        # bl tiled x2
        ],
        out_specs=pl.BlockSpec((tile_n, 32, 128), lambda i: (i, 0, 0)),
        compiler_params=pltpu.CompilerParams(
            dimension_semantics=("parallel",),
            vmem_limit_bytes=40 * 1024 * 1024,
        ),
        cost_estimate=cost,
    )(x2d, w1, b1, w2p, b2p, wl128, bl128)

    # Packed (n, r, c) maps to out[n, 2r + (c>=64), c % 64]; the flat index is
    # identical (128*r + c == 64*i + j), so this reshape is free/contiguous.
    out = out_packed.reshape(n_pad, 64, 64)
    return out[:N]


def cnn_reference(x, params):
    """Pure-JAX reference of the same forward pass (for a sanity check)."""
    x2d = x[:, :, 0]
    h1 = jnp.maximum(x2d @ params["conv1_w"][:, :, 0].T + params["conv1_b"], 0.0)
    h2 = jnp.maximum(h1 @ params["conv2_w"][:, :, 0].T + params["conv2_b"], 0.0)
    z = jnp.maximum(h2[:, :, None] * params["lin1_w"][:, 0][None, None, :]
                    + params["lin1_b"][None, None, :], 0.0)
    return jax.nn.log_softmax(z, axis=1)


if __name__ == "__main__":
    key = jax.random.PRNGKey(0)
    pkey, xkey = jax.random.split(key)
    params = init_params(pkey)

    N = 200
    x = jax.random.normal(xkey, (N, 9, 1), dtype=jnp.float32)   # PyTorch NCL input
    ref = cnn_reference(x, params)

    # Default auto-tiled path: N=200 -> tile 56, 4 "parallel" pipeline steps.
    out = jax.block_until_ready(cnn_forward(x, params))
    assert out.shape == (N, 64, 64)
    assert jnp.allclose(out, ref, rtol=1e-4, atol=1e-4)

    # Explicit tile that exactly divides the batch (tile 40 -> 5 steps, zero padding).
    out2 = jax.block_until_ready(cnn_forward(x, params, tile_n=40))
    assert out2.shape == (N, 64, 64)
    assert jnp.allclose(out2, ref, rtol=1e-4, atol=1e-4)

    # bf16-output path (halves HBM writeback); compare with loosened tolerance.
    out_bf16 = jax.block_until_ready(cnn_forward(x, params, out_dtype=jnp.bfloat16))
    assert out_bf16.shape == (N, 64, 64) and out_bf16.dtype == jnp.bfloat16
    assert jnp.allclose(out_bf16.astype(jnp.float32), ref, rtol=3e-2, atol=3e-2)

    # Tiny-batch edge case (pads 12 -> 16, tile 8, 2 steps).
    x_small = jax.random.normal(jax.random.PRNGKey(1), (12, 9, 1), dtype=jnp.float32)
    out3 = jax.block_until_ready(cnn_forward(x_small, params))
    assert out3.shape == (12, 64, 64)
    assert jnp.allclose(out3, cnn_reference(x_small, params), rtol=1e-4, atol=1e-4)

    print("KERNEL_OK")
</pallas_src>

<mosaic_0001>
module attributes {stable_mosaic.version = 11 : i64} {
  func.func @cnn_kernel(%arg0: i32, %arg1: memref<56x9xf32, #tpu.memory_space<vmem>>, %arg2: memref<9x16xf32, #tpu.memory_space<vmem>>, %arg3: memref<1x16xf32, #tpu.memory_space<vmem>>, %arg4: memref<16x64xf32, #tpu.memory_space<vmem>>, %arg5: memref<1x64xf32, #tpu.memory_space<vmem>>, %arg6: memref<1x128xf32, #tpu.memory_space<vmem>>, %arg7: memref<1x128xf32, #tpu.memory_space<vmem>>, %arg8: memref<56x32x128xf32, #tpu.memory_space<vmem>>) attributes {dimension_semantics = [#tpu.dimension_semantics<parallel>], iteration_bounds = array<i64: 4>, scalar_prefetch = 0 : i64, scratch_operands = 0 : i64, tpu.core_type = #tpu.core_type<tc>, window_params = [{transform_indices = @transform_0, window_bounds = array<i64: 56, 9>}, {pipeline_mode = #tpu.pipeline_mode<synchronous>, transform_indices = @transform_1, window_bounds = array<i64: 9, 16>}, {pipeline_mode = #tpu.pipeline_mode<synchronous>, transform_indices = @transform_2, window_bounds = array<i64: 1, 16>}, {pipeline_mode = #tpu.pipeline_mode<synchronous>, transform_indices = @transform_3, window_bounds = array<i64: 16, 64>}, {pipeline_mode = #tpu.pipeline_mode<synchronous>, transform_indices = @transform_4, window_bounds = array<i64: 1, 64>}, {pipeline_mode = #tpu.pipeline_mode<synchronous>, transform_indices = @transform_5, window_bounds = array<i64: 1, 128>}, {pipeline_mode = #tpu.pipeline_mode<synchronous>, transform_indices = @transform_6, window_bounds = array<i64: 1, 128>}, {transform_indices = @transform_7, window_bounds = array<i64: 56, 32, 128>}]} {
    %c0 = arith.constant 0 : index
    %c0_0 = arith.constant 0 : index
    %0 = vector.load %arg1[%c0, %c0_0] : memref<56x9xf32, #tpu.memory_space<vmem>>, vector<56x9xf32>
    %c0_1 = arith.constant 0 : index
    %c0_2 = arith.constant 0 : index
    %1 = vector.load %arg2[%c0_1, %c0_2] : memref<9x16xf32, #tpu.memory_space<vmem>>, vector<9x16xf32>
    %cst = arith.constant dense<0.000000e+00> : vector<56x16xf32>
    %2 = tpu.matmul %0, %1, %cst {dimension_numbers = #tpu.dot_dimension_numbers<[1], [0], [0], [1], [0, 0, 1, 1], [], []>} : vector<56x9xf32>, vector<9x16xf32>, vector<56x16xf32> -> vector<56x16xf32>
    %c0_3 = arith.constant 0 : index
    %c0_4 = arith.constant 0 : index
    %3 = vector.load %arg3[%c0_3, %c0_4] : memref<1x16xf32, #tpu.memory_space<vmem>>, vector<1x16xf32>
    %4 = vector.broadcast %3 : vector<1x16xf32> to vector<56x16xf32>
    %5 = arith.addf %2, %4 : vector<56x16xf32>
    %cst_5 = arith.constant 0.000000e+00 : f32
    %6 = vector.broadcast %cst_5 : f32 to vector<56x16xf32>
    %7 = arith.maximumf %5, %6 : vector<56x16xf32>
    %c0_6 = arith.constant 0 : index
    %c0_7 = arith.constant 0 : index
    %8 = vector.load %arg4[%c0_6, %c0_7] : memref<16x64xf32, #tpu.memory_space<vmem>>, vector<16x64xf32>
    %cst_8 = arith.constant dense<0.000000e+00> : vector<56x64xf32>
    %9 = tpu.matmul %7, %8, %cst_8 {dimension_numbers = #tpu.dot_dimension_numbers<[1], [0], [0], [1], [0, 0, 1, 1], [], []>} : vector<56x16xf32>, vector<16x64xf32>, vector<56x64xf32> -> vector<56x64xf32>
    %c0_9 = arith.constant 0 : index
    %c0_10 = arith.constant 0 : index
    %10 = vector.load %arg5[%c0_9, %c0_10] : memref<1x64xf32, #tpu.memory_space<vmem>>, vector<1x64xf32>
    %11 = vector.broadcast %10 : vector<1x64xf32> to vector<56x64xf32>
    %12 = arith.addf %9, %11 : vector<56x64xf32>
    %cst_11 = arith.constant 0.000000e+00 : f32
    %13 = vector.broadcast %cst_11 : f32 to vector<56x64xf32>
    %14 = arith.maximumf %12, %13 : vector<56x64xf32>
    %15 = vector.extract_strided_slice %14 {offsets = [0, 0], sizes = [56, 32], strides = [1, 1]} : vector<56x64xf32> to vector<56x32xf32>
    %16 = vector.extract_strided_slice %14 {offsets = [0, 32], sizes = [56, 32], strides = [1, 1]} : vector<56x64xf32> to vector<56x32xf32>
    %17 = tpu.iota {dimensions = array<i32: 2>} : vector<1x1x128xi32>
    %c64_i32 = arith.constant 64 : i32
    %18 = vector.broadcast %c64_i32 : i32 to vector<1x1x128xi32>
    %19 = arith.cmpi slt, %17, %18 : vector<1x1x128xi32>
    %20 = vector.shape_cast %15 : vector<56x32xf32> to vector<56x32x1xf32>
    %21 = vector.shape_cast %16 : vector<56x32xf32> to vector<56x32x1xf32>
    %22 = vector.shape_cast %19 : vector<1x1x128xi1> to vector<1x1x128xi1>
    %23 = vector.broadcast %22 : vector<1x1x128xi1> to vector<56x32x128xi1>
    %24 = vector.shape_cast %20 : vector<56x32x1xf32> to vector<56x32x1xf32>
    %25 = vector.broadcast %24 : vector<56x32x1xf32> to vector<56x32x128xf32>
    %26 = vector.shape_cast %21 : vector<56x32x1xf32> to vector<56x32x1xf32>
    %27 = vector.broadcast %26 : vector<56x32x1xf32> to vector<56x32x128xf32>
    %28 = arith.select %23, %25, %27 : vector<56x32x128xi1>, vector<56x32x128xf32>
    %c0_12 = arith.constant 0 : index
    %c0_13 = arith.constant 0 : index
    %29 = vector.load %arg6[%c0_12, %c0_13] : memref<1x128xf32, #tpu.memory_space<vmem>>, vector<1x128xf32>
    %30 = vector.shape_cast %29 : vector<1x128xf32> to vector<1x1x128xf32>
    %31 = vector.broadcast %30 : vector<1x1x128xf32> to vector<56x32x128xf32>
    %32 = arith.mulf %28, %31 : vector<56x32x128xf32>
    %c0_14 = arith.constant 0 : index
    %c0_15 = arith.constant 0 : index
    %33 = vector.load %arg7[%c0_14, %c0_15] : memref<1x128xf32, #tpu.memory_space<vmem>>, vector<1x128xf32>
    %34 = vector.shape_cast %33 : vector<1x128xf32> to vector<1x1x128xf32>
    %35 = vector.broadcast %34 : vector<1x1x128xf32> to vector<56x32x128xf32>
    %36 = arith.addf %32, %35 : vector<56x32x128xf32>
    %cst_16 = arith.constant 0.000000e+00 : f32
    %37 = vector.broadcast %cst_16 : f32 to vector<56x32x128xf32>
    %38 = arith.maximumf %36, %37 : vector<56x32x128xf32>
    %cst_17 = arith.constant dense<0xFF800000> : vector<56x128xf32>
    %39 = vector.multi_reduction <maximumf>, %38, %cst_17 [1] : vector<56x32x128xf32> to vector<56x128xf32>
    %c64_i32_18 = arith.constant 64 : i32
    %40 = tpu.dynamic_rotate %39 by %c64_i32_18 dim 1 : vector<56x128xf32>, i32 -> vector<56x128xf32>
    %41 = arith.maximumf %39, %40 : vector<56x128xf32>
    %42 = vector.shape_cast %41 : vector<56x128xf32> to vector<56x1x128xf32>
    %43 = vector.broadcast %42 : vector<56x1x128xf32> to vector<56x32x128xf32>
    %44 = arith.subf %38, %43 : vector<56x32x128xf32>
    %45 = math.exp %44 : vector<56x32x128xf32>
    %cst_19 = arith.constant dense<0.000000e+00> : vector<56x128xf32>
    %46 = vector.multi_reduction <add>, %45, %cst_19 [1] : vector<56x32x128xf32> to vector<56x128xf32>
    %c64_i32_20 = arith.constant 64 : i32
    %47 = tpu.dynamic_rotate %46 by %c64_i32_20 dim 1 : vector<56x128xf32>, i32 -> vector<56x128xf32>
    %48 = arith.addf %46, %47 : vector<56x128xf32>
    %49 = math.log %48 : vector<56x128xf32>
    %50 = vector.shape_cast %49 : vector<56x128xf32> to vector<56x1x128xf32>
    %51 = vector.broadcast %50 : vector<56x1x128xf32> to vector<56x32x128xf32>
    %52 = arith.subf %44, %51 : vector<56x32x128xf32>
    %c0_21 = arith.constant 0 : index
    %c0_22 = arith.constant 0 : index
    %c0_23 = arith.constant 0 : index
    %53 = vector.load %arg8[%c0_21, %c0_22, %c0_23] : memref<56x32x128xf32, #tpu.memory_space<vmem>>, vector<56x32x128xf32>
    tpu.vector_store %arg8[%c0_21, %c0_22, %c0_23], %52 {strides = array<i32>} : memref<56x32x128xf32, #tpu.memory_space<vmem>>, vector<56x32x128xf32>,
    return
  }
  func.func @transform_0(%arg0: i32) -> (i32, i32) {
    %c0_i32 = arith.constant 0 : i32
    %c0_i32_0 = arith.constant 0 : i32
    return %arg0, %c0_i32 : i32, i32
  }
  func.func @transform_1(%arg0: i32) -> (i32, i32) {
    %c0_i32 = arith.constant 0 : i32
    %c0_i32_0 = arith.constant 0 : i32
    %c0_i32_1 = arith.constant 0 : i32
    return %c0_i32, %c0_i32_0 : i32, i32
  }
  func.func @transform_2(%arg0: i32) -> (i32, i32) {
    %c0_i32 = arith.constant 0 : i32
    %c0_i32_0 = arith.constant 0 : i32
    %c0_i32_1 = arith.constant 0 : i32
    return %c0_i32, %c0_i32_0 : i32, i32
  }
  func.func @transform_3(%arg0: i32) -> (i32, i32) {
    %c0_i32 = arith.constant 0 : i32
    %c0_i32_0 = arith.constant 0 : i32
    %c0_i32_1 = arith.constant 0 : i32
    return %c0_i32, %c0_i32_0 : i32, i32
  }
  func.func @transform_4(%arg0: i32) -> (i32, i32) {
    %c0_i32 = arith.constant 0 : i32
    %c0_i32_0 = arith.constant 0 : i32
    %c0_i32_1 = arith.constant 0 : i32
    return %c0_i32, %c0_i32_0 : i32, i32
  }
  func.func @transform_5(%arg0: i32) -> (i32, i32) {
    %c0_i32 = arith.constant 0 : i32
    %c0_i32_0 = arith.constant 0 : i32
    %c0_i32_1 = arith.constant 0 : i32
    return %c0_i32, %c0_i32_0 : i32, i32
  }
  func.func @transform_6(%arg0: i32) -> (i32, i32) {
    %c0_i32 = arith.constant 0 : i32
    %c0_i32_0 = arith.constant 0 : i32
    %c0_i32_1 = arith.constant 0 : i32
    return %c0_i32, %c0_i32_0 : i32, i32
  }
  func.func @transform_7(%arg0: i32) -> (i32, i32, i32) {
    %c0_i32 = arith.constant 0 : i32
    %c0_i32_0 = arith.constant 0 : i32
    %c0_i32_1 = arith.constant 0 : i32
    return %arg0, %c0_i32, %c0_i32_0 : i32, i32, i32
  }
}

</mosaic_0001>

<llo_original>
// kernel: tpu_custom_call.1
$region0: #{tpu_custom_call.1}
  #allocation0 [shape = 'u32[]', space=smem, size = 0x4, offset = 0x4, fixed_abs, tag = 'smem constant byte address 0x4 - core index']
  #allocation1 [shape = 'u32[144,128]{1,0:T(1,128)}', space=vmem, size = 0x12000, scoped, tag = 'internal scratch']
  %s0 = inlined_call_operand.vmem [shape: f32[224,9], index: 0, kind: input, shape index: {}]
  %s1 = inlined_call_operand.hbm [shape: f32[9,16], index: 1, kind: input, shape index: {}]
  %s2 = inlined_call_operand.hbm [shape: f32[1,16], index: 2, kind: input, shape index: {}]
  %s3 = inlined_call_operand.hbm [shape: f32[16,64], index: 3, kind: input, shape index: {}]
  %s4 = inlined_call_operand.hbm [shape: f32[1,64], index: 4, kind: input, shape index: {}]
  %s5 = inlined_call_operand.hbm [shape: f32[1,128], index: 5, kind: input, shape index: {}]
  %s6 = inlined_call_operand.hbm [shape: f32[1,128], index: 6, kind: input, shape index: {}]
  %s7 = inlined_call_operand.hbm [shape: f32[224,32,128], index: 7, kind: output, shape index: {}]
  %s8 = sld [smem:[#allocation0]]
  $region85: #{tpu_custom_call.1} parent=0
    _
  %s10 = ssub.s32 1, %s8
  %s11 = scalar_select 0, %s10, %s8
  $region1: #{tpu_custom_call.1} parent=0
    #allocation2 [shape = 'u8[8192]{0}', space=vmem, size = 0x2000, scoped, tag = 'input window, operand 1, single buffered']
    #allocation3 [shape = 's32[2]{0}', space=sflag, size = 0x8, scoped, tag = 'scoped memory for tpu_custom_call.1']
    #allocation4 [shape = 's32[2]{0}', space=sflag, size = 0x8, scoped, tag = 'scoped memory for tpu_custom_call.1']
    #allocation5 [shape = 'u8[512]{0}', space=vmem, size = 0x400, scoped, tag = 'input window, operand 2, single buffered']
    #allocation6 [shape = 's32[1]{0}', space=sflag, size = 0x4, scoped, tag = 'scoped memory for tpu_custom_call.1']
    #allocation7 [shape = 'u8[8192]{0}', space=vmem, size = 0x2000, scoped, tag = 'input window, operand 3, single buffered']
    #allocation8 [shape = 'u8[512]{0}', space=vmem, size = 0x400, scoped, tag = 'input window, operand 4, single buffered']
    #allocation9 [shape = 's32[1]{0}', space=sflag, size = 0x4, scoped, tag = 'scoped memory for tpu_custom_call.1']
    #allocation10 [shape = 'u8[512]{0}', space=vmem, size = 0x400, scoped, tag = 'input window, operand 5, single buffered']
    #allocation11 [shape = 'u8[512]{0}', space=vmem, size = 0x400, scoped, tag = 'input window, operand 6, single buffered']
    #allocation12 [shape = 's32[1]{0}', space=sflag, size = 0x4, scoped, tag = 'scoped memory for tpu_custom_call.1']
    #allocation13 [shape = 'u8[1835008]{0}', space=vmem, size = 0x1c0000, scoped, tag = 'output window, operand 0']
    %12 = vsyncpa [#allocation3], 0
    %13 = vsyncpa [#allocation6], 0
    %14 = vsyncpa [#allocation9], 0
    %15 = vsyncpa [#allocation12], 0
    %16 = vsyncpa [#allocation4], 0
    %s17 = scalar_lea.sflag [#allocation4], 1
    %18 = vsyncpa %s17, 0
    loop: start=0, step=1, limit=6
    $region2: #{tpu_custom_call.1} parent=1 // loop_pre_header
      _
    $region3: #{tpu_custom_call.1} parent=1 // loop_header
      %s20 = sphi 0, %s24
      %p21 = scmp.ge.s32.totalorder %s20, 6
      %s30 = sphi 0, %s32
      %s33 = sphi 0, %s30
      %s34 = sphi 0, %s33
      %s50 = sphi 0, %s34
      %s54 = sphi 0, %s54
      %s56 = sphi 0, %s54
      %s57 = sphi 0, %s56
      %s71 = sphi 0, %s57
      %s75 = sphi 0, %s75
      %s77 = sphi 0, %s75
      %s78 = sphi 0, %s77
      %s92 = sphi 0, %s78
      %s96 = sphi 0, %s96
      %s98 = sphi 0, %s96
      %s99 = sphi 0, %s98
      %s113 = sphi 0, %s99
      %s117 = sphi 0, %s117
      %s119 = sphi 0, %s117
      %s120 = sphi 0, %s119
      %s134 = sphi 0, %s120
      %s138 = sphi 0, %s138
      %s140 = sphi 0, %s138
      %s141 = sphi 0, %s140
      %s155 = sphi 0, %s141
      %s159 = sphi 0, %s159
      %s161 = sphi 0, %s159
      %s162 = sphi 0, %s161
      %s176 = sphi 0, %s162
      %s182 = sphi 0, %s184
      %s185 = sphi 0, %s182
      %s186 = sphi 0, %s185
      %s202 = sphi 0, %s186
    $region4: #{tpu_custom_call.1} parent=1 // loop_header_branch
      %23 = sbr.rel (%p21) target = $region8
    $region5: #{tpu_custom_call.1} parent=1 // loop_body
      %s25 = ssub.s32 %s20, 1
      %s26 = ssub.s32 %s20, 2
      %s27 = sadd.s32 %s20, 1
      %s28 = ssub.s32 %s20, %s27
      %p29 = scmp.eq.s32.totalorder %s28, 0
      %s31 = sadd.s32 %s30, 1
      %s32 = scalar_select %p29, %s30, %s31
      %p35 = pneg %p29
      %p36 = scmp.eq.s32.totalorder %s20, 3
      %p37 = por %p35, %p36
      %p38 = scmp.ne.s32.totalorder %s30, %s33
      %p39 = scmp.eq.s32.totalorder %s20, 0
      %p40 = por %p38, %p39
      %p41 = scmp.ne.s32.totalorder %s30, %s33
      %p42 = scmp.eq.s32.totalorder %s25, 3
      %p43 = por %p41, %p42
      %p44 = scmp.ne.s32.totalorder %s33, %s34
      %p45 = scmp.eq.s32.totalorder %s25, 0
      %p46 = por %p44, %p45
      %p47 = scmp.ne.s32.totalorder %s33, %s34
      %p48 = scmp.eq.s32.totalorder %s26, 3
      %p49 = por %p47, %p48
      %p51 = scmp.ne.s32.totalorder %s34, %s50
      %p52 = scmp.eq.s32.totalorder %s26, 0
      %p53 = por %p51, %p52
      %s55 = sadd.s32 %s54, 1
      %p58 = scmp.eq.s32.totalorder %s20, 3
      %p59 = scmp.ne.s32.totalorder %s54, %s56
      %p60 = scmp.eq.s32.totalorder %s20, 0
      %p61 = por %p59, %p60
      %p62 = scmp.ne.s32.totalorder %s54, %s56
      %p63 = scmp.eq.s32.totalorder %s25, 3
      %p64 = por %p62, %p63
      %p65 = scmp.ne.s32.totalorder %s56, %s57
      %p66 = scmp.eq.s32.totalorder %s25, 0
      %p67 = por %p65, %p66
      %p68 = scmp.ne.s32.totalorder %s56, %s57
      %p69 = scmp.eq.s32.totalorder %s26, 3
      %p70 = por %p68, %p69
      %p72 = scmp.ne.s32.totalorder %s57, %s71
      %p73 = scmp.eq.s32.totalorder %s26, 0
      %p74 = por %p72, %p73
      %s76 = sadd.s32 %s75, 1
      %p79 = scmp.eq.s32.totalorder %s20, 3
      %p80 = scmp.ne.s32.totalorder %s75, %s77
      %p81 = scmp.eq.s32.totalorder %s20, 0
      %p82 = por %p80, %p81
      %p83 = scmp.ne.s32.totalorder %s75, %s77
      %p84 = scmp.eq.s32.totalorder %s25, 3
      %p85 = por %p83, %p84
      %p86 = scmp.ne.s32.totalorder %s77, %s78
      %p87 = scmp.eq.s32.totalorder %s25, 0
      %p88 = por %p86, %p87
      %p89 = scmp.ne.s32.totalorder %s77, %s78
      %p90 = scmp.eq.s32.totalorder %s26, 3
      %p91 = por %p89, %p90
      %p93 = scmp.ne.s32.totalorder %s78, %s92
      %p94 = scmp.eq.s32.totalorder %s26, 0
      %p95 = por %p93, %p94
      %s97 = sadd.s32 %s96, 1
      %p100 = scmp.eq.s32.totalorder %s20, 3
      %p101 = scmp.ne.s32.totalorder %s96, %s98
      %p102 = scmp.eq.s32.totalorder %s20, 0
      %p103 = por %p101, %p102
      %p104 = scmp.ne.s32.totalorder %s96, %s98
      %p105 = scmp.eq.s32.totalorder %s25, 3
      %p106 = por %p104, %p105
      %p107 = scmp.ne.s32.totalorder %s98, %s99
      %p108 = scmp.eq.s32.totalorder %s25, 0
      %p109 = por %p107, %p108
      %p110 = scmp.ne.s32.totalorder %s98, %s99
      %p111 = scmp.eq.s32.totalorder %s26, 3
      %p112 = por %p110, %p111
      %p114 = scmp.ne.s32.totalorder %s99, %s113
      %p115 = scmp.eq.s32.totalorder %s26, 0
      %p116 = por %p114, %p115
      %s118 = sadd.s32 %s117, 1
      %p121 = scmp.eq.s32.totalorder %s20, 3
      %p122 = scmp.ne.s32.totalorder %s117, %s119
      %p123 = scmp.eq.s32.totalorder %s20, 0
      %p124 = por %p122, %p123
      %p125 = scmp.ne.s32.totalorder %s117, %s119
      %p126 = scmp.eq.s32.totalorder %s25, 3
      %p127 = por %p125, %p126
      %p128 = scmp.ne.s32.totalorder %s119, %s120
      %p129 = scmp.eq.s32.totalorder %s25, 0
      %p130 = por %p128, %p129
      %p131 = scmp.ne.s32.totalorder %s119, %s120
      %p132 = scmp.eq.s32.totalorder %s26, 3
      %p133 = por %p131, %p132
      %p135 = scmp.ne.s32.totalorder %s120, %s134
      %p136 = scmp.eq.s32.totalorder %s26, 0
      %p137 = por %p135, %p136
      %s139 = sadd.s32 %s138, 1
      %p142 = scmp.eq.s32.totalorder %s20, 3
      %p143 = scmp.ne.s32.totalorder %s138, %s140
      %p144 = scmp.eq.s32.totalorder %s20, 0
      %p145 = por %p143, %p144
      %p146 = scmp.ne.s32.totalorder %s138, %s140
      %p147 = scmp.eq.s32.totalorder %s25, 3
      %p148 = por %p146, %p147
      %p149 = scmp.ne.s32.totalorder %s140, %s141
      %p150 = scmp.eq.s32.totalorder %s25, 0
      %p151 = por %p149, %p150
      %p152 = scmp.ne.s32.totalorder %s140, %s141
      %p153 = scmp.eq.s32.totalorder %s26, 3
      %p154 = por %p152, %p153
      %p156 = scmp.ne.s32.totalorder %s141, %s155
      %p157 = scmp.eq.s32.totalorder %s26, 0
      %p158 = por %p156, %p157
      %s160 = sadd.s32 %s159, 1
      %p163 = scmp.eq.s32.totalorder %s20, 3
      %p164 = scmp.ne.s32.totalorder %s159, %s161
      %p165 = scmp.eq.s32.totalorder %s20, 0
      %p166 = por %p164, %p165
      %p167 = scmp.ne.s32.totalorder %s159, %s161
      %p168 = scmp.eq.s32.totalorder %s25, 3
      %p169 = por %p167, %p168
      %p170 = scmp.ne.s32.totalorder %s161, %s162
      %p171 = scmp.eq.s32.totalorder %s25, 0
      %p172 = por %p170, %p171
      %p173 = scmp.ne.s32.totalorder %s161, %s162
      %p174 = scmp.eq.s32.totalorder %s26, 3
      %p175 = por %p173, %p174
      %p177 = scmp.ne.s32.totalorder %s162, %s176
      %p178 = scmp.eq.s32.totalorder %s26, 0
      %p179 = por %p177, %p178
      %s180 = ssub.s32 %s20, %s27
      %p181 = scmp.eq.s32.totalorder %s180, 0
      %s183 = sadd.s32 %s182, 1
      %s184 = scalar_select %p181, %s182, %s183
      %p187 = pneg %p181
      %p188 = scmp.eq.s32.totalorder %s20, 3
      %p189 = por %p187, %p188
      %p190 = scmp.ne.s32.totalorder %s182, %s185
      %p191 = scmp.eq.s32.totalorder %s20, 0
      %p192 = por %p190, %p191
      %p193 = scmp.ne.s32.totalorder %s182, %s185
      %p194 = scmp.eq.s32.totalorder %s25, 3
      %p195 = por %p193, %p194
      %p196 = scmp.ne.s32.totalorder %s185, %s186
      %p197 = scmp.eq.s32.totalorder %s25, 0
      %p198 = por %p196, %p197
      %p199 = scmp.ne.s32.totalorder %s185, %s186
      %p200 = scmp.eq.s32.totalorder %s26, 3
      %p201 = por %p199, %p200
      %p203 = scmp.ne.s32.totalorder %s186, %s202
      %p204 = scmp.eq.s32.totalorder %s26, 0
      %p205 = por %p203, %p204
      %p206 = scmp.le.s32.totalorder 1, %s20
      %p207 = scmp.lt.s32.totalorder %s20, 5
      %p208 = pnand %p206, %p207
      %p209 = pneg %p208
      // Predicated region
      $region9: #{tpu_custom_call.1} parent=5 // pred_check
        _
      $region10: #{tpu_custom_call.1} parent=5 // pred_check_branch
        %211 = sbr.rel (%p208) target = $region12
      $region11: #{tpu_custom_call.1} parent=5 // pred_region
        %s212 = ssub.s32 %s20, 1
        // Predicated region
        $region13: #{tpu_custom_call.1} parent=11 // pred_check
          %p213 = pneg %p67
        $region14: #{tpu_custom_call.1} parent=11 // pred_check_branch
          %215 = sbr.rel (%p213) target = $region16
        $region15: #{tpu_custom_call.1} parent=11 // pred_region
          %s217 = ssub.s32 256, 256
          %218 = vsyncadd [#allocation3], %s217
          %s219 = sshll.u32 [#allocation2], 4
          %s220 = int_to_ptr.vmem [resolvable:$true] %s219
          %225 = dma.hbm_to_vmem [thread:$0]  %s1, 256, %s220, [#allocation3], 128, 128, 8
        $region16: #{tpu_custom_call.1} parent=11 // pred_fallthru
          _
        // Predicated region
        $region17: #{tpu_custom_call.1} parent=11 // pred_check
          %p226 = pneg %p88
        $region18: #{tpu_custom_call.1} parent=11 // pred_check_branch
          %228 = sbr.rel (%p226) target = $region20
        $region19: #{tpu_custom_call.1} parent=11 // pred_region
          %s230 = ssub.s32 16, 16
          %231 = vsyncadd [#allocation6], %s230
          %s233 = sshll.u32 [#allocation5], 4
          %s234 = int_to_ptr.vmem [resolvable:$true] %s233
          %236 = dma.hbm_to_vmem [thread:$0]  %s2, 16, %s234, [#allocation6]
        $region20: #{tpu_custom_call.1} parent=11 // pred_fallthru
          _
        // Predicated region
        $region21: #{tpu_custom_call.1} parent=11 // pred_check
          %p237 = pneg %p109
        $region22: #{tpu_custom_call.1} parent=11 // pred_check_branch
          %239 = sbr.rel (%p237) target = $region24
        $region23: #{tpu_custom_call.1} parent=11 // pred_region
          %s241 = ssub.s32 256, 256
          %242 = vsyncadd [#allocation6], %s241
          %s243 = sshll.u32 [#allocation7], 4
          %s244 = int_to_ptr.vmem [resolvable:$true] %s243
          %249 = dma.hbm_to_vmem [thread:$0]  %s3, 256, %s244, [#allocation6], 128, 128, 8
        $region24: #{tpu_custom_call.1} parent=11 // pred_fallthru
          _
        // Predicated region
        $region25: #{tpu_custom_call.1} parent=11 // pred_check
          %p250 = pneg %p130
        $region26: #{tpu_custom_call.1} parent=11 // pred_check_branch
          %252 = sbr.rel (%p250) target = $region28
        $region27: #{tpu_custom_call.1} parent=11 // pred_region
          %s254 = ssub.s32 16, 16
          %255 = vsyncadd [#allocation9], %s254
          %s257 = sshll.u32 [#allocation8], 4
          %s258 = int_to_ptr.vmem [resolvable:$true] %s257
          %260 = dma.hbm_to_vmem [thread:$0]  %s4, 16, %s258, [#allocation9]
        $region28: #{tpu_custom_call.1} parent=11 // pred_fallthru
          _
        // Predicated region
        $region29: #{tpu_custom_call.1} parent=11 // pred_check
          %p261 = pneg %p151
        $region30: #{tpu_custom_call.1} parent=11 // pred_check_branch
          %263 = sbr.rel (%p261) target = $region32
        $region31: #{tpu_custom_call.1} parent=11 // pred_region
          %s265 = ssub.s32 16, 16
          %266 = vsyncadd [#allocation9], %s265
          %s268 = sshll.u32 [#allocation10], 4
          %s269 = int_to_ptr.vmem [resolvable:$true] %s268
          %271 = dma.hbm_to_vmem [thread:$0]  %s5, 16, %s269, [#allocation9]
        $region32: #{tpu_custom_call.1} parent=11 // pred_fallthru
          _
        // Predicated region
        $region33: #{tpu_custom_call.1} parent=11 // pred_check
          %p272 = pneg %p172
        $region34: #{tpu_custom_call.1} parent=11 // pred_check_branch
          %274 = sbr.rel (%p272) target = $region36
        $region35: #{tpu_custom_call.1} parent=11 // pred_region
          %s276 = ssub.s32 16, 16
          %277 = vsyncadd [#allocation12], %s276
          %s279 = sshll.u32 [#allocation11], 4
          %s280 = int_to_ptr.vmem [resolvable:$true] %s279
          %282 = dma.hbm_to_vmem [thread:$0]  %s6, 16, %s280, [#allocation12]
        $region36: #{tpu_custom_call.1} parent=11 // pred_fallthru
          _
      $region12: #{tpu_custom_call.1} parent=5 // pred_fallthru
        _
      %p283 = scmp.lt.s32.totalorder %s20, 4
      // Predicated region
      $region37: #{tpu_custom_call.1} parent=5 // pred_check
        %p284 = pneg %p283
      $region38: #{tpu_custom_call.1} parent=5 // pred_check_branch
        %286 = sbr.rel (%p284) target = $region40
      $region39: #{tpu_custom_call.1} parent=5 // pred_region
        // Predicated region
        $region41: #{tpu_custom_call.1} parent=39 // pred_check
          %p287 = pneg %p40
        $region42: #{tpu_custom_call.1} parent=39 // pred_check_branch
          %289 = sbr.rel (%p287) target = $region44
        $region43: #{tpu_custom_call.1} parent=39 // pred_region
          %s290 = smul.u32 7, %s20
          %p291 = scmp.lt.s32.totalorder %s290, 27
          %s292 = scalar_select %p291, %s290, 27
          %s293 = smul.addr %s292, 8
          %s294 = scalar_lea.vmem %s0, %s293
          %s295 = smul.u32 7, %s20
        $region44: #{tpu_custom_call.1} parent=39 // pred_fallthru
          _
      $region40: #{tpu_custom_call.1} parent=5 // pred_fallthru
        _
      %p296 = scmp.le.s32.totalorder 1, %s20
      %p297 = scmp.lt.s32.totalorder %s20, 5
      %p298 = pnand %p296, %p297
      %p299 = pneg %p298
      // Predicated region
      $region45: #{tpu_custom_call.1} parent=5 // pred_check
        _
      $region46: #{tpu_custom_call.1} parent=5 // pred_check_branch
        %301 = sbr.rel (%p298) target = $region48
      $region47: #{tpu_custom_call.1} parent=5 // pred_region
        %s302 = ssub.s32 %s20, 1
        // Predicated region
        $region49: #{tpu_custom_call.1} parent=47 // pred_check
          %p303 = pneg %p67
        $region50: #{tpu_custom_call.1} parent=47 // pred_check_branch
          %305 = sbr.rel (%p303) target = $region52
        $region51: #{tpu_custom_call.1} parent=47 // pred_region
          %306 = dma.done [#allocation3], 256
        $region52: #{tpu_custom_call.1} parent=47 // pred_fallthru
          _
        // Predicated region
        $region53: #{tpu_custom_call.1} parent=47 // pred_check
          %p307 = pneg %p88
        $region54: #{tpu_custom_call.1} parent=47 // pred_check_branch
          %309 = sbr.rel (%p307) target = $region56
        $region55: #{tpu_custom_call.1} parent=47 // pred_region
          %310 = dma.done [#allocation6], 16
        $region56: #{tpu_custom_call.1} parent=47 // pred_fallthru
          _
        // Predicated region
        $region57: #{tpu_custom_call.1} parent=47 // pred_check
          %p311 = pneg %p109
        $region58: #{tpu_custom_call.1} parent=47 // pred_check_branch
          %313 = sbr.rel (%p311) target = $region60
        $region59: #{tpu_custom_call.1} parent=47 // pred_region
          %314 = dma.done [#allocation6], 256
        $region60: #{tpu_custom_call.1} parent=47 // pred_fallthru
          _
        // Predicated region
        $region61: #{tpu_custom_call.1} parent=47 // pred_check
          %p315 = pneg %p130
        $region62: #{tpu_custom_call.1} parent=47 // pred_check_branch
          %317 = sbr.rel (%p315) target = $region64
        $region63: #{tpu_custom_call.1} parent=47 // pred_region
          %318 = dma.done [#allocation9], 16
        $region64: #{tpu_custom_call.1} parent=47 // pred_fallthru
          _
        // Predicated region
        $region65: #{tpu_custom_call.1} parent=47 // pred_check
          %p319 = pneg %p151
        $region66: #{tpu_custom_call.1} parent=47 // pred_check_branch
          %321 = sbr.rel (%p319) target = $region68
        $region67: #{tpu_custom_call.1} parent=47 // pred_region
          %322 = dma.done [#allocation9], 16
        $region68: #{tpu_custom_call.1} parent=47 // pred_fallthru
          _
        // Predicated region
        $region69: #{tpu_custom_call.1} parent=47 // pred_check
          %p323 = pneg %p172
        $region70: #{tpu_custom_call.1} parent=47 // pred_check_branch
          %325 = sbr.rel (%p323) target = $region72
        $region71: #{tpu_custom_call.1} parent=47 // pred_region
          %326 = dma.done [#allocation12], 16
        $region72: #{tpu_custom_call.1} parent=47 // pred_fallthru
          _
        %s327 = smul.u32 7, %s25
        %p328 = scmp.lt.s32.totalorder %s327, 27
        %s329 = scalar_select %p328, %s327, 27
        %s330 = smul.addr %s329, 8
        %s331 = scalar_lea.vmem %s0, %s330
        %p332 = pneg %p46
        %p333 = pneg %p43
        %p334 = pneg %p67
        %p335 = pneg %p64
        %p336 = pneg %p88
        %p337 = pneg %p85
        %p338 = pneg %p109
        %p339 = pneg %p106
        %p340 = pneg %p130
        %p341 = pneg %p127
        %p342 = pneg %p151
        %p343 = pneg %p148
        %p344 = pneg %p172
        %p345 = pneg %p169
        %p346 = pneg %p198
        %p347 = pneg %p195
        %s348 = sand.u32 %s185, 1
        %s349 = scalar_lea.sflag [#allocation4], %s348
        %s350 = sand.u32 %s185, 1
        %s351 = smul.addr %s350, 1792
        %s352 = scalar_lea.vmem [#allocation13], %s351
        %s353 = smul.u32 7, %s25
        %p354 = scmp.lt.s32.totalorder %s353, 27
        %s355 = scalar_select %p354, %s353, 27
        %s356 = smul.addr %s355, 8
        %s357 = scalar_lea.vmem %s0, %s356
        %s358 = smul.u32 7, %s25
        %s359 = smul.u32 56, %s25
        %v360 = vld [vmem:[%s357] sm:$0xff]
        %v361 = vld [vmem:[%s357 + $0x8] sm:$0xff]
        %v362 = vld [vmem:[%s357 + $0x10] sm:$0xff]
        %v363 = vld [vmem:[%s357 + $0x18] sm:$0xff]
        %v364 = vld [vmem:[%s357 + $0x20] sm:$0xff]
        %v365 = vld [vmem:[%s357 + $0x28] sm:$0xff]
        %v366 = vld [vmem:[%s357 + $0x30] sm:$0xff]
        %v367 = vld [vmem:[#allocation2] sm:$0xff]
        %v368 = vld [vmem:[#allocation2 + $0x8] sm:$0x1]
        %v369 = vld [vmem:[#allocation5] sm:$0x1]
        %v371 = vlaneseq
        %v372 = vshrl.u32 %v371, 7
        %v373 = vsub.s32 0, %v372
        %v374 = vrot.slane %v369, %v373
        %vm376 = vcmask 72704
        %v378 = vsel %vm376, %v360, 0
        %v381 = vsel %vm376, %v361, 0
        %v384 = vsel %vm376, %v362, 0
        %v387 = vsel %vm376, %v363, 0
        %v390 = vsel %vm376, %v364, 0
        %v393 = vsel %vm376, %v365, 0
        %v396 = vsel %vm376, %v366, 0
        %vm398 = vcmask 1040384
        %v400 = vsel %vm398, %v368, 0
        %402 = vmatprep.subr.mxu0 0.0
        %403 = vmatpush1.msra.mxu0 %v367
        %404 = vmatprep.subr.mxu0 0.0
        %405 = vmatpush1.msra.mxu0 %v400
        %406 = vmatprep.subr.mxu0 0.0
        %407 = vmatpush1.msra.mxu0 0.0
        %408 = vmatprep.subr.mxu0 0.0
        %409 = vmatpush1.msra.mxu0 0.0
        %410 = vmatprep.subr.mxu0 0.0
        %411 = vmatpush1.msra.mxu0 0.0
        %412 = vmatprep.subr.mxu0 0.0
        %413 = vmatpush1.msra.mxu0 0.0
        %414 = vmatprep.subr.mxu0 0.0
        %415 = vmatpush1.msra.mxu0 0.0
        %416 = vmatprep.subr.mxu0 0.0
        %417 = vmatpush1.msra.mxu0 0.0
        %418 = vmatprep.subr.mxu0 0.0
        %419 = vmatpush1.msra.mxu0 0.0
        %420 = vmatprep.subr.mxu0 0.0
        %421 = vmatpush1.msra.mxu0 0.0
        %422 = vmatprep.subr.mxu0 0.0
        %423 = vmatpush1.msra.mxu0 0.0
        %424 = vmatprep.subr.mxu0 0.0
        %425 = vmatpush1.msra.mxu0 0.0
        %426 = vmatprep.subr.mxu0 0.0
        %427 = vmatpush1.msra.mxu0 0.0
        %428 = vmatprep.subr.mxu0 0.0
        %429 = vmatpush1.msra.mxu0 0.0
        %430 = vmatprep.subr.mxu0 0.0
        %431 = vmatpush1.msra.mxu0 0.0
        %432 = vmatprep.subr.mxu0 0.0
        %433 = vmatpush1.msra.mxu0 0.0
        %434 = vmatprep.subr.mxu0 0.0
        %435 = vmatpush1.msra.mxu0 0.0
        %436 = vmatprep.subr.mxu0 0.0
        %437 = vmatpush1.msra.mxu0 0.0
        %438 = vmatprep.subr.mxu0 0.0
        %439 = vmatpush1.msra.mxu0 0.0
        %440 = vmatprep.subr.mxu0 0.0
        %441 = vmatpush1.msra.mxu0 0.0
        %442 = vmatprep.subr.mxu0 0.0
        %443 = vmatpush1.msra.mxu0 0.0
        %444 = vmatprep.subr.mxu0 0.0
        %445 = vmatpush1.msra.mxu0 0.0
        %446 = vmatprep.subr.mxu0 0.0
        %447 = vmatpush1.msra.mxu0 0.0
        %448 = vmatprep.subr.mxu0 0.0
        %449 = vmatpush1.msra.mxu0 0.0
        %450 = vmatprep.subr.mxu0 0.0
        %451 = vmatpush1.msra.mxu0 0.0
        %452 = vmatprep.subr.mxu0 0.0
        %453 = vmatpush1.msra.mxu0 0.0
        %454 = vmatprep.subr.mxu0 0.0
        %455 = vmatpush1.msra.mxu0 0.0
        %456 = vmatprep.subr.mxu0 0.0
        %457 = vmatpush1.msra.mxu0 0.0
        %458 = vmatprep.subr.mxu0 0.0
        %459 = vmatpush1.msra.mxu0 0.0
        %460 = vmatprep.subr.mxu0 0.0
        %461 = vmatpush1.msra.mxu0 0.0
        %462 = vmatprep.subr.mxu0 0.0
        %463 = vmatpush1.msra.mxu0 0.0
        %464 = vmatprep.subr.mxu0 0.0
        %465 = vmatpush1.msra.mxu0 0.0
        %466 = vmatprep.mubr.f32.mxu0 0.0
        %467 = vmatmul.mubr.f32.gmra.mrb[0].mxu0 %v378
        %v468 = vpop.f32.mrb[0].mxu0
        %v469 = vadd.f32 %v374, %v468
        %v470 = vpop.f32.mrb[0].mxu0
        %471 = vmatprep.mubr.f32.mxu0 0.0
        %472 = vmatmul.mubr.f32.gmra.mrb[0].mxu0 %v381
        %v473 = vpop.f32.mrb[0].mxu0
        %v474 = vadd.f32 %v374, %v473
        %v475 = vpop.f32.mrb[0].mxu0
        %476 = vmatprep.mubr.f32.mxu0 0.0
        %477 = vmatmul.mubr.f32.gmra.mrb[0].mxu0 %v384
        %v478 = vpop.f32.mrb[0].mxu0
        %v479 = vadd.f32 %v374, %v478
        %v480 = vpop.f32.mrb[0].mxu0
        %481 = vmatprep.mubr.f32.mxu0 0.0
        %482 = vmatmul.mubr.f32.gmra.mrb[0].mxu0 %v387
        %v483 = vpop.f32.mrb[0].mxu0
        %v484 = vadd.f32 %v374, %v483
        %v485 = vpop.f32.mrb[0].mxu0
        %486 = vmatprep.mubr.f32.mxu0 0.0
        %487 = vmatmul.mubr.f32.gmra.mrb[0].mxu0 %v390
        %v488 = vpop.f32.mrb[0].mxu0
        %v489 = vadd.f32 %v374, %v488
        %v490 = vpop.f32.mrb[0].mxu0
        %491 = vmatprep.mubr.f32.mxu0 0.0
        %492 = vmatmul.mubr.f32.gmra.mrb[0].mxu0 %v393
        %v493 = vpop.f32.mrb[0].mxu0
        %v494 = vadd.f32 %v374, %v493
        %v495 = vpop.f32.mrb[0].mxu0
        %496 = vmatprep.mubr.f32.mxu0 0.0
        %497 = vmatmul.mubr.f32.gmra.mrb[0].mxu0 %v396
        %v498 = vpop.f32.mrb[0].mxu0
        %v499 = vadd.f32 %v374, %v498
        %v500 = vpop.f32.mrb[0].mxu0
        %501 = vdwg.mxu0
        %v502 = vmax.f32 %v469, 0.0
        %v503 = vmax.f32 %v474, 0.0
        %v504 = vmax.f32 %v479, 0.0
        %v505 = vmax.f32 %v484, 0.0
        %v506 = vmax.f32 %v489, 0.0
        %v507 = vmax.f32 %v494, 0.0
        %v508 = vmax.f32 %v499, 0.0
        %v509 = vld [vmem:[#allocation7] sm:$0xff]
        %v510 = vld [vmem:[#allocation7 + $0x8] sm:$0xff]
        %v511 = vld [vmem:[#allocation8] sm:$0x1]
        %v513 = vlaneseq
        %v514 = vshrl.u32 %v513, 7
        %v515 = vsub.s32 0, %v514
        %v516 = vrot.slane %v511, %v515
        %vm518 = vcmask 130048
        %v520 = vsel %vm518, %v502, 0
        %v523 = vsel %vm518, %v503, 0
        %v526 = vsel %vm518, %v504, 0
        %v529 = vsel %vm518, %v505, 0
        %v532 = vsel %vm518, %v506, 0
        %v535 = vsel %vm518, %v507, 0
        %v538 = vsel %vm518, %v508, 0
        %540 = vmatprep.subr.mxu0 0.0
        %541 = vmatpush1.msra.mxu0 %v509
        %542 = vmatprep.subr.mxu0 0.0
        %543 = vmatpush1.msra.mxu0 %v510
        %544 = vmatprep.subr.mxu0 0.0
        %545 = vmatpush1.msra.mxu0 0.0
        %546 = vmatprep.subr.mxu0 0.0
        %547 = vmatpush1.msra.mxu0 0.0
        %548 = vmatprep.subr.mxu0 0.0
        %549 = vmatpush1.msra.mxu0 0.0
        %550 = vmatprep.subr.mxu0 0.0
        %551 = vmatpush1.msra.mxu0 0.0
        %552 = vmatprep.subr.mxu0 0.0
        %553 = vmatpush1.msra.mxu0 0.0
        %554 = vmatprep.subr.mxu0 0.0
        %555 = vmatpush1.msra.mxu0 0.0
        %556 = vmatprep.subr.mxu0 0.0
        %557 = vmatpush1.msra.mxu0 0.0
        %558 = vmatprep.subr.mxu0 0.0
        %559 = vmatpush1.msra.mxu0 0.0
        %560 = vmatprep.subr.mxu0 0.0
        %561 = vmatpush1.msra.mxu0 0.0
        %562 = vmatprep.subr.mxu0 0.0
        %563 = vmatpush1.msra.mxu0 0.0
        %564 = vmatprep.subr.mxu0 0.0
        %565 = vmatpush1.msra.mxu0 0.0
        %566 = vmatprep.subr.mxu0 0.0
        %567 = vmatpush1.msra.mxu0 0.0
        %568 = vmatprep.subr.mxu0 0.0
        %569 = vmatpush1.msra.mxu0 0.0
        %570 = vmatprep.subr.mxu0 0.0
        %571 = vmatpush1.msra.mxu0 0.0
        %572 = vmatprep.subr.mxu0 0.0
        %573 = vmatpush1.msra.mxu0 0.0
        %574 = vmatprep.subr.mxu0 0.0
        %575 = vmatpush1.msra.mxu0 0.0
        %576 = vmatprep.subr.mxu0 0.0
        %577 = vmatpush1.msra.mxu0 0.0
        %578 = vmatprep.subr.mxu0 0.0
        %579 = vmatpush1.msra.mxu0 0.0
        %580 = vmatprep.subr.mxu0 0.0
        %581 = vmatpush1.msra.mxu0 0.0
        %582 = vmatprep.subr.mxu0 0.0
        %583 = vmatpush1.msra.mxu0 0.0
        %584 = vmatprep.subr.mxu0 0.0
        %585 = vmatpush1.msra.mxu0 0.0
        %586 = vmatprep.subr.mxu0 0.0
        %587 = vmatpush1.msra.mxu0 0.0
        %588 = vmatprep.subr.mxu0 0.0
        %589 = vmatpush1.msra.mxu0 0.0
        %590 = vmatprep.subr.mxu0 0.0
        %591 = vmatpush1.msra.mxu0 0.0
        %592 = vmatprep.subr.mxu0 0.0
        %593 = vmatpush1.msra.mxu0 0.0
        %594 = vmatprep.subr.mxu0 0.0
        %595 = vmatpush1.msra.mxu0 0.0
        %596 = vmatprep.subr.mxu0 0.0
        %597 = vmatpush1.msra.mxu0 0.0
        %598 = vmatprep.subr.mxu0 0.0
        %599 = vmatpush1.msra.mxu0 0.0
        %600 = vmatprep.subr.mxu0 0.0
        %601 = vmatpush1.msra.mxu0 0.0
        %602 = vmatprep.subr.mxu0 0.0
        %603 = vmatpush1.msra.mxu0 0.0
        %604 = vmatprep.mubr.f32.mxu0 0.0
        %605 = vmatmul.mubr.f32.gmra.mrb[0].mxu0 %v520
        %v606 = vpop.f32.mrb[0].mxu0
        %v607 = vadd.f32 %v516, %v606
        %v608 = vpop.f32.mrb[0].mxu0
        %609 = vmatprep.mubr.f32.mxu0 0.0
        %610 = vmatmul.mubr.f32.gmra.mrb[0].mxu0 %v523
        %v611 = vpop.f32.mrb[0].mxu0
        %v612 = vadd.f32 %v516, %v611
        %v613 = vpop.f32.mrb[0].mxu0
        %614 = vmatprep.mubr.f32.mxu0 0.0
        %615 = vmatmul.mubr.f32.gmra.mrb[0].mxu0 %v526
        %v616 = vpop.f32.mrb[0].mxu0
        %v617 = vadd.f32 %v516, %v616
        %v618 = vpop.f32.mrb[0].mxu0
        %619 = vmatprep.mubr.f32.mxu0 0.0
        %620 = vmatmul.mubr.f32.gmra.mrb[0].mxu0 %v529
        %v621 = vpop.f32.mrb[0].mxu0
        %v622 = vadd.f32 %v516, %v621
        %v623 = vpop.f32.mrb[0].mxu0
        %624 = vmatprep.mubr.f32.mxu0 0.0
        %625 = vmatmul.mubr.f32.gmra.mrb[0].mxu0 %v532
        %v626 = vpop.f32.mrb[0].mxu0
        %v627 = vadd.f32 %v516, %v626
        %v628 = vpop.f32.mrb[0].mxu0
        %629 = vmatprep.mubr.f32.mxu0 0.0
        %630 = vmatmul.mubr.f32.gmra.mrb[0].mxu0 %v535
        %v631 = vpop.f32.mrb[0].mxu0
        %v632 = vadd.f32 %v516, %v631
        %v633 = vpop.f32.mrb[0].mxu0
        %634 = vmatprep.mubr.f32.mxu0 0.0
        %635 = vmatmul.mubr.f32.gmra.mrb[0].mxu0 %v538
        %v636 = vpop.f32.mrb[0].mxu0
        %v637 = vadd.f32 %v516, %v636
        %v638 = vpop.f32.mrb[0].mxu0
        %639 = vdwg.mxu0
        %v640 = vmax.f32 %v607, 0.0
        %v641 = vmax.f32 %v612, 0.0
        %v642 = vmax.f32 %v617, 0.0
        %v643 = vmax.f32 %v622, 0.0
        %v644 = vmax.f32 %v627, 0.0
        %v645 = vmax.f32 %v632, 0.0
        %v646 = vmax.f32 %v637, 0.0
        %v647 = vlaneseq
        %v648 = vand.u32 %v647, 127
        %vm649 = vcmp.lt.s32.totalorder %v648, 64
        %v650 = vlaneseq
        %v651 = vshrl.u32 %v650, 7
        %v652 = vsub.s32 0, %v651
        %v653 = vrot.slane %v640, %v652
        %655 = vbcast.lane.b32.xlu0 %v653, 256
        %v656 = vpop.permute.xlu0 %655
        %s658 = sor.u32 256, 8
        %659 = vbcast.lane.b32.xlu0 %v653, %s658
        %v660 = vpop.permute.xlu0 %659
        %s662 = sor.u32 256, 16
        %663 = vbcast.lane.b32.xlu0 %v653, %s662
        %v664 = vpop.permute.xlu0 %663
        %s666 = sor.u32 256, 24
        %667 = vbcast.lane.b32.xlu0 %v653, %s666
        %v668 = vpop.permute.xlu0 %667
        %v669 = vlaneseq
        %v670 = vshrl.u32 %v669, 7
        %v671 = vsub.s32 1, %v670
        %v672 = vrot.slane %v640, %v671
        %674 = vbcast.lane.b32.xlu0 %v672, 256
        %v675 = vpop.permute.xlu0 %674
        %s677 = sor.u32 256, 8
        %678 = vbcast.lane.b32.xlu0 %v672, %s677
        %v679 = vpop.permute.xlu0 %678
        %s681 = sor.u32 256, 16
        %682 = vbcast.lane.b32.xlu0 %v672, %s681
        %v683 = vpop.permute.xlu0 %682
        %s685 = sor.u32 256, 24
        %686 = vbcast.lane.b32.xlu0 %v672, %s685
        %v687 = vpop.permute.xlu0 %686
        %v688 = vlaneseq
        %v689 = vshrl.u32 %v688, 7
        %v690 = vsub.s32 2, %v689
        %v691 = vrot.slane %v640, %v690
        %693 = vbcast.lane.b32.xlu0 %v691, 256
        %v694 = vpop.permute.xlu0 %693
        %s696 = sor.u32 256, 8
        %697 = vbcast.lane.b32.xlu0 %v691, %s696
        %v698 = vpop.permute.xlu0 %697
        %s700 = sor.u32 256, 16
        %701 = vbcast.lane.b32.xlu0 %v691, %s700
        %v702 = vpop.permute.xlu0 %701
        %s704 = sor.u32 256, 24
        %705 = vbcast.lane.b32.xlu0 %v691, %s704
        %v706 = vpop.permute.xlu0 %705
        %v707 = vlaneseq
        %v708 = vshrl.u32 %v707, 7
        %v709 = vsub.s32 3, %v708
        %v710 = vrot.slane %v640, %v709
        %712 = vbcast.lane.b32.xlu0 %v710, 256
        %v713 = vpop.permute.xlu0 %712
        %s715 = sor.u32 256, 8
        %716 = vbcast.lane.b32.xlu0 %v710, %s715
        %v717 = vpop.permute.xlu0 %716
        %s719 = sor.u32 256, 16
        %720 = vbcast.lane.b32.xlu0 %v710, %s719
        %v721 = vpop.permute.xlu0 %720
        %s723 = sor.u32 256, 24
        %724 = vbcast.lane.b32.xlu0 %v710, %s723
        %v725 = vpop.permute.xlu0 %724
        %v726 = vlaneseq
        %v727 = vshrl.u32 %v726, 7
        %v728 = vsub.s32 4, %v727
        %v729 = vrot.slane %v640, %v728
        %731 = vbcast.lane.b32.xlu0 %v729, 256
        %v732 = vpop.permute.xlu0 %731
        %s734 = sor.u32 256, 8
        %735 = vbcast.lane.b32.xlu0 %v729, %s734
        %v736 = vpop.permute.xlu0 %735
        %s738 = sor.u32 256, 16
        %739 = vbcast.lane.b32.xlu0 %v729, %s738
        %v740 = vpop.permute.xlu0 %739
        %s742 = sor.u32 256, 24
        %743 = vbcast.lane.b32.xlu0 %v729, %s742
        %v744 = vpop.permute.xlu0 %743
        %v745 = vlaneseq
        %v746 = vshrl.u32 %v745, 7
        %v747 = vsub.s32 5, %v746
        %v748 = vrot.slane %v640, %v747
        %750 = vbcast.lane.b32.xlu0 %v748, 256
        %v751 = vpop.permute.xlu0 %750
        %s753 = sor.u32 256, 8
        %754 = vbcast.lane.b32.xlu0 %v748, %s753
        %v755 = vpop.permute.xlu0 %754
        %s757 = sor.u32 256, 16
        %758 = vbcast.lane.b32.xlu0 %v748, %s757
        %v759 = vpop.permute.xlu0 %758
        %s761 = sor.u32 256, 24
        %762 = vbcast.lane.b32.xlu0 %v748, %s761
        %v763 = vpop.permute.xlu0 %762
        %v764 = vlaneseq
        %v765 = vshrl.u32 %v764, 7
        %v766 = vsub.s32 6, %v765
        %v767 = vrot.slane %v640, %v766
        %769 = vbcast.lane.b32.xlu0 %v767, 256
        %v770 = vpop.permute.xlu0 %769
        %s772 = sor.u32 256, 8
        %773 = vbcast.lane.b32.xlu0 %v767, %s772
        %v774 = vpop.permute.xlu0 %773
        %s776 = sor.u32 256, 16
        %777 = vbcast.lane.b32.xlu0 %v767, %s776
        %v778 = vpop.permute.xlu0 %777
        %s780 = sor.u32 256, 24
        %781 = vbcast.lane.b32.xlu0 %v767, %s780
        %v782 = vpop.permute.xlu0 %781
        %v783 = vlaneseq
        %v784 = vshrl.u32 %v783, 7
        %v785 = vsub.s32 7, %v784
        %v786 = vrot.slane %v640, %v785
        %788 = vbcast.lane.b32.xlu0 %v786, 256
        %v789 = vpop.permute.xlu0 %788
        %s791 = sor.u32 256, 8
        %792 = vbcast.lane.b32.xlu0 %v786, %s791
        %v793 = vpop.permute.xlu0 %792
        %s795 = sor.u32 256, 16
        %796 = vbcast.lane.b32.xlu0 %v786, %s795
        %v797 = vpop.permute.xlu0 %796
        %s799 = sor.u32 256, 24
        %800 = vbcast.lane.b32.xlu0 %v786, %s799
        %v801 = vpop.permute.xlu0 %800
        %v802 = vlaneseq
        %v803 = vshrl.u32 %v802, 7
        %v804 = vsub.s32 0, %v803
        %v805 = vrot.slane %v641, %v804
        %807 = vbcast.lane.b32.xlu0 %v805, 256
        %v808 = vpop.permute.xlu0 %807
        %s810 = sor.u32 256, 8
        %811 = vbcast.lane.b32.xlu0 %v805, %s810
        %v812 = vpop.permute.xlu0 %811
        %s814 = sor.u32 256, 16
        %815 = vbcast.lane.b32.xlu0 %v805, %s814
        %v816 = vpop.permute.xlu0 %815
        %s818 = sor.u32 256, 24
        %819 = vbcast.lane.b32.xlu0 %v805, %s818
        %v820 = vpop.permute.xlu0 %819
        %v821 = vlaneseq
        %v822 = vshrl.u32 %v821, 7
        %v823 = vsub.s32 1, %v822
        %v824 = vrot.slane %v641, %v823
        %826 = vbcast.lane.b32.xlu0 %v824, 256
        %v827 = vpop.permute.xlu0 %826
        %s829 = sor.u32 256, 8
        %830 = vbcast.lane.b32.xlu0 %v824, %s829
        %v831 = vpop.permute.xlu0 %830
        %s833 = sor.u32 256, 16
        %834 = vbcast.lane.b32.xlu0 %v824, %s833
        %v835 = vpop.permute.xlu0 %834
        %s837 = sor.u32 256, 24
        %838 = vbcast.lane.b32.xlu0 %v824, %s837
        %v839 = vpop.permute.xlu0 %838
        %v840 = vlaneseq
        %v841 = vshrl.u32 %v840, 7
        %v842 = vsub.s32 2, %v841
        %v843 = vrot.slane %v641, %v842
        %845 = vbcast.lane.b32.xlu0 %v843, 256
        %v846 = vpop.permute.xlu0 %845
        %s848 = sor.u32 256, 8
        %849 = vbcast.lane.b32.xlu0 %v843, %s848
        %v850 = vpop.permute.xlu0 %849
        %s852 = sor.u32 256, 16
        %853 = vbcast.lane.b32.xlu0 %v843, %s852
        %v854 = vpop.permute.xlu0 %853
        %s856 = sor.u32 256, 24
        %857 = vbcast.lane.b32.xlu0 %v843, %s856
        %v858 = vpop.permute.xlu0 %857
        %v859 = vlaneseq
        %v860 = vshrl.u32 %v859, 7
        %v861 = vsub.s32 3, %v860
        %v862 = vrot.slane %v641, %v861
        %864 = vbcast.lane.b32.xlu0 %v862, 256
        %v865 = vpop.permute.xlu0 %864
        %s867 = sor.u32 256, 8
        %868 = vbcast.lane.b32.xlu0 %v862, %s867
        %v869 = vpop.permute.xlu0 %868
        %s871 = sor.u32 256, 16
        %872 = vbcast.lane.b32.xlu0 %v862, %s871
        %v873 = vpop.permute.xlu0 %872
        %s875 = sor.u32 256, 24
        %876 = vbcast.lane.b32.xlu0 %v862, %s875
        %v877 = vpop.permute.xlu0 %876
        %v878 = vlaneseq
        %v879 = vshrl.u32 %v878, 7
        %v880 = vsub.s32 4, %v879
        %v881 = vrot.slane %v641, %v880
        %883 = vbcast.lane.b32.xlu0 %v881, 256
        %v884 = vpop.permute.xlu0 %883
        %s886 = sor.u32 256, 8
        %887 = vbcast.lane.b32.xlu0 %v881, %s886
        %v888 = vpop.permute.xlu0 %887
        %s890 = sor.u32 256, 16
        %891 = vbcast.lane.b32.xlu0 %v881, %s890
        %v892 = vpop.permute.xlu0 %891
        %s894 = sor.u32 256, 24
        %895 = vbcast.lane.b32.xlu0 %v881, %s894
        %v896 = vpop.permute.xlu0 %895
        %v897 = vlaneseq
        %v898 = vshrl.u32 %v897, 7
        %v899 = vsub.s32 5, %v898
        %v900 = vrot.slane %v641, %v899
        %902 = vbcast.lane.b32.xlu0 %v900, 256
        %v903 = vpop.permute.xlu0 %902
        %s905 = sor.u32 256, 8
        %906 = vbcast.lane.b32.xlu0 %v900, %s905
        %v907 = vpop.permute.xlu0 %906
        %s909 = sor.u32 256, 16
        %910 = vbcast.lane.b32.xlu0 %v900, %s909
        %v911 = vpop.permute.xlu0 %910
        %s913 = sor.u32 256, 24
        %914 = vbcast.lane.b32.xlu0 %v900, %s913
        %v915 = vpop.permute.xlu0 %914
        %v916 = vlaneseq
        %v917 = vshrl.u32 %v916, 7
        %v918 = vsub.s32 6, %v917
        %v919 = vrot.slane %v641, %v918
        %921 = vbcast.lane.b32.xlu0 %v919, 256
        %v922 = vpop.permute.xlu0 %921
        %s924 = sor.u32 256, 8
        %925 = vbcast.lane.b32.xlu0 %v919, %s924
        %v926 = vpop.permute.xlu0 %925
        %s928 = sor.u32 256, 16
        %929 = vbcast.lane.b32.xlu0 %v919, %s928
        %v930 = vpop.permute.xlu0 %929
        %s932 = sor.u32 256, 24
        %933 = vbcast.lane.b32.xlu0 %v919, %s932
        %v934 = vpop.permute.xlu0 %933
        %v935 = vlaneseq
        %v936 = vshrl.u32 %v935, 7
        %v937 = vsub.s32 7, %v936
        %v938 = vrot.slane %v641, %v937
        %940 = vbcast.lane.b32.xlu0 %v938, 256
        %v941 = vpop.permute.xlu0 %940
        %s943 = sor.u32 256, 8
        %944 = vbcast.lane.b32.xlu0 %v938, %s943
        %v945 = vpop.permute.xlu0 %944
        %s947 = sor.u32 256, 16
        %948 = vbcast.lane.b32.xlu0 %v938, %s947
        %v949 = vpop.permute.xlu0 %948
        %s951 = sor.u32 256, 24
        %952 = vbcast.lane.b32.xlu0 %v938, %s951
        %v953 = vpop.permute.xlu0 %952
        %v954 = vlaneseq
        %v955 = vshrl.u32 %v954, 7
        %v956 = vsub.s32 0, %v955
        %v957 = vrot.slane %v642, %v956
        %959 = vbcast.lane.b32.xlu0 %v957, 256
        %v960 = vpop.permute.xlu0 %959
        %s962 = sor.u32 256, 8
        %963 = vbcast.lane.b32.xlu0 %v957, %s962
        %v964 = vpop.permute.xlu0 %963
        %s966 = sor.u32 256, 16
        %967 = vbcast.lane.b32.xlu0 %v957, %s966
        %v968 = vpop.permute.xlu0 %967
        %s970 = sor.u32 256, 24
        %971 = vbcast.lane.b32.xlu0 %v957, %s970
        %v972 = vpop.permute.xlu0 %971
        %v973 = vlaneseq
        %v974 = vshrl.u32 %v973, 7
        %v975 = vsub.s32 1, %v974
        %v976 = vrot.slane %v642, %v975
        %978 = vbcast.lane.b32.xlu0 %v976, 256
        %v979 = vpop.permute.xlu0 %978
        %s981 = sor.u32 256, 8
        %982 = vbcast.lane.b32.xlu0 %v976, %s981
        %v983 = vpop.permute.xlu0 %982
        %s985 = sor.u32 256, 16
        %986 = vbcast.lane.b32.xlu0 %v976, %s985
        %v987 = vpop.permute.xlu0 %986
        %s989 = sor.u32 256, 24
        %990 = vbcast.lane.b32.xlu0 %v976, %s989
        %v991 = vpop.permute.xlu0 %990
        %v992 = vlaneseq
        %v993 = vshrl.u32 %v992, 7
        %v994 = vsub.s32 2, %v993
        %v995 = vrot.slane %v642, %v994
        %997 = vbcast.lane.b32.xlu0 %v995, 256
        %v998 = vpop.permute.xlu0 %997
        %s1000 = sor.u32 256, 8
        %1001 = vbcast.lane.b32.xlu0 %v995, %s1000
        %v1002 = vpop.permute.xlu0 %1001
        %s1004 = sor.u32 256, 16
        %1005 = vbcast.lane.b32.xlu0 %v995, %s1004
        %v1006 = vpop.permute.xlu0 %1005
        %s1008 = sor.u32 256, 24
        %1009 = vbcast.lane.b32.xlu0 %v995, %s1008
        %v1010 = vpop.permute.xlu0 %1009
        %v1011 = vlaneseq
        %v1012 = vshrl.u32 %v1011, 7
        %v1013 = vsub.s32 3, %v1012
        %v1014 = vrot.slane %v642, %v1013
        %1016 = vbcast.lane.b32.xlu0 %v1014, 256
        %v1017 = vpop.permute.xlu0 %1016
        %s1019 = sor.u32 256, 8
        %1020 = vbcast.lane.b32.xlu0 %v1014, %s1019
        %v1021 = vpop.permute.xlu0 %1020
        %s1023 = sor.u32 256, 16
        %1024 = vbcast.lane.b32.xlu0 %v1014, %s1023
        %v1025 = vpop.permute.xlu0 %1024
        %s1027 = sor.u32 256, 24
        %1028 = vbcast.lane.b32.xlu0 %v1014, %s1027
        %v1029 = vpop.permute.xlu0 %1028
        %v1030 = vlaneseq
        %v1031 = vshrl.u32 %v1030, 7
        %v1032 = vsub.s32 4, %v1031
        %v1033 = vrot.slane %v642, %v1032
        %1035 = vbcast.lane.b32.xlu0 %v1033, 256
        %v1036 = vpop.permute.xlu0 %1035
        %s1038 = sor.u32 256, 8
        %1039 = vbcast.lane.b32.xlu0 %v1033, %s1038
        %v1040 = vpop.permute.xlu0 %1039
        %s1042 = sor.u32 256, 16
        %1043 = vbcast.lane.b32.xlu0 %v1033, %s1042
        %v1044 = vpop.permute.xlu0 %1043
        %s1046 = sor.u32 256, 24
        %1047 = vbcast.lane.b32.xlu0 %v1033, %s1046
        %v1048 = vpop.permute.xlu0 %1047
        %v1049 = vlaneseq
        %v1050 = vshrl.u32 %v1049, 7
        %v1051 = vsub.s32 5, %v1050
        %v1052 = vrot.slane %v642, %v1051
        %1054 = vbcast.lane.b32.xlu0 %v1052, 256
        %v1055 = vpop.permute.xlu0 %1054
        %s1057 = sor.u32 256, 8
        %1058 = vbcast.lane.b32.xlu0 %v1052, %s1057
        %v1059 = vpop.permute.xlu0 %1058
        %s1061 = sor.u32 256, 16
        %1062 = vbcast.lane.b32.xlu0 %v1052, %s1061
        %v1063 = vpop.permute.xlu0 %1062
        %s1065 = sor.u32 256, 24
        %1066 = vbcast.lane.b32.xlu0 %v1052, %s1065
        %v1067 = vpop.permute.xlu0 %1066
        %v1068 = vlaneseq
        %v1069 = vshrl.u32 %v1068, 7
        %v1070 = vsub.s32 6, %v1069
        %v1071 = vrot.slane %v642, %v1070
        %1073 = vbcast.lane.b32.xlu0 %v1071, 256
        %v1074 = vpop.permute.xlu0 %1073
        %s1076 = sor.u32 256, 8
        %1077 = vbcast.lane.b32.xlu0 %v1071, %s1076
        %v1078 = vpop.permute.xlu0 %1077
        %s1080 = sor.u32 256, 16
        %1081 = vbcast.lane.b32.xlu0 %v1071, %s1080
        %v1082 = vpop.permute.xlu0 %1081
        %s1084 = sor.u32 256, 24
        %1085 = vbcast.lane.b32.xlu0 %v1071, %s1084
        %v1086 = vpop.permute.xlu0 %1085
        %v1087 = vlaneseq
        %v1088 = vshrl.u32 %v1087, 7
        %v1089 = vsub.s32 7, %v1088
        %v1090 = vrot.slane %v642, %v1089
        %1092 = vbcast.lane.b32.xlu0 %v1090, 256
        %v1093 = vpop.permute.xlu0 %1092
        %s1095 = sor.u32 256, 8
        %1096 = vbcast.lane.b32.xlu0 %v1090, %s1095
        %v1097 = vpop.permute.xlu0 %1096
        %s1099 = sor.u32 256, 16
        %1100 = vbcast.lane.b32.xlu0 %v1090, %s1099
        %v1101 = vpop.permute.xlu0 %1100
        %s1103 = sor.u32 256, 24
        %1104 = vbcast.lane.b32.xlu0 %v1090, %s1103
        %v1105 = vpop.permute.xlu0 %1104
        %v1106 = vlaneseq
        %v1107 = vshrl.u32 %v1106, 7
        %v1108 = vsub.s32 0, %v1107
        %v1109 = vrot.slane %v643, %v1108
        %1111 = vbcast.lane.b32.xlu0 %v1109, 256
        %v1112 = vpop.permute.xlu0 %1111
        %s1114 = sor.u32 256, 8
        %1115 = vbcast.lane.b32.xlu0 %v1109, %s1114
        %v1116 = vpop.permute.xlu0 %1115
        %s1118 = sor.u32 256, 16
        %1119 = vbcast.lane.b32.xlu0 %v1109, %s1118
        %v1120 = vpop.permute.xlu0 %1119
        %s1122 = sor.u32 256, 24
        %1123 = vbcast.lane.b32.xlu0 %v1109, %s1122
        %v1124 = vpop.permute.xlu0 %1123
        %v1125 = vlaneseq
        %v1126 = vshrl.u32 %v1125, 7
        %v1127 = vsub.s32 1, %v1126
        %v1128 = vrot.slane %v643, %v1127
        %1130 = vbcast.lane.b32.xlu0 %v1128, 256
        %v1131 = vpop.permute.xlu0 %1130
        %s1133 = sor.u32 256, 8
        %1134 = vbcast.lane.b32.xlu0 %v1128, %s1133
        %v1135 = vpop.permute.xlu0 %1134
        %s1137 = sor.u32 256, 16
        %1138 = vbcast.lane.b32.xlu0 %v1128, %s1137
        %v1139 = vpop.permute.xlu0 %1138
        %s1141 = sor.u32 256, 24
        %1142 = vbcast.lane.b32.xlu0 %v1128, %s1141
        %v1143 = vpop.permute.xlu0 %1142
        %v1144 = vlaneseq
        %v1145 = vshrl.u32 %v1144, 7
        %v1146 = vsub.s32 2, %v1145
        %v1147 = vrot.slane %v643, %v1146
        %1149 = vbcast.lane.b32.xlu0 %v1147, 256
        %v1150 = vpop.permute.xlu0 %1149
        %s1152 = sor.u32 256, 8
        %1153 = vbcast.lane.b32.xlu0 %v1147, %s1152
        %v1154 = vpop.permute.xlu0 %1153
        %s1156 = sor.u32 256, 16
        %1157 = vbcast.lane.b32.xlu0 %v1147, %s1156
        %v1158 = vpop.permute.xlu0 %1157
        %s1160 = sor.u32 256, 24
        %1161 = vbcast.lane.b32.xlu0 %v1147, %s1160
        %v1162 = vpop.permute.xlu0 %1161
        %v1163 = vlaneseq
        %v1164 = vshrl.u32 %v1163, 7
        %v1165 = vsub.s32 3, %v1164
        %v1166 = vrot.slane %v643, %v1165
        %1168 = vbcast.lane.b32.xlu0 %v1166, 256
        %v1169 = vpop.permute.xlu0 %1168
        %s1171 = sor.u32 256, 8
        %1172 = vbcast.lane.b32.xlu0 %v1166, %s1171
        %v1173 = vpop.permute.xlu0 %1172
        %s1175 = sor.u32 256, 16
        %1176 = vbcast.lane.b32.xlu0 %v1166, %s1175
        %v1177 = vpop.permute.xlu0 %1176
        %s1179 = sor.u32 256, 24
        %1180 = vbcast.lane.b32.xlu0 %v1166, %s1179
        %v1181 = vpop.permute.xlu0 %1180
        %v1182 = vlaneseq
        %v1183 = vshrl.u32 %v1182, 7
        %v1184 = vsub.s32 4, %v1183
        %v1185 = vrot.slane %v643, %v1184
        %1187 = vbcast.lane.b32.xlu0 %v1185, 256
        %v1188 = vpop.permute.xlu0 %1187
        %s1190 = sor.u32 256, 8
        %1191 = vbcast.lane.b32.xlu0 %v1185, %s1190
        %v1192 = vpop.permute.xlu0 %1191
        %s1194 = sor.u32 256, 16
        %1195 = vbcast.lane.b32.xlu0 %v1185, %s1194
        %v1196 = vpop.permute.xlu0 %1195
        %s1198 = sor.u32 256, 24
        %1199 = vbcast.lane.b32.xlu0 %v1185, %s1198
        %v1200 = vpop.permute.xlu0 %1199
        %v1201 = vlaneseq
        %v1202 = vshrl.u32 %v1201, 7
        %v1203 = vsub.s32 5, %v1202
        %v1204 = vrot.slane %v643, %v1203
        %1206 = vbcast.lane.b32.xlu0 %v1204, 256
        %v1207 = vpop.permute.xlu0 %1206
        %s1209 = sor.u32 256, 8
        %1210 = vbcast.lane.b32.xlu0 %v1204, %s1209
        %v1211 = vpop.permute.xlu0 %1210
        %s1213 = sor.u32 256, 16
        %1214 = vbcast.lane.b32.xlu0 %v1204, %s1213
        %v1215 = vpop.permute.xlu0 %1214
        %s1217 = sor.u32 256, 24
        %1218 = vbcast.lane.b32.xlu0 %v1204, %s1217
        %v1219 = vpop.permute.xlu0 %1218
        %v1220 = vlaneseq
        %v1221 = vshrl.u32 %v1220, 7
        %v1222 = vsub.s32 6, %v1221
        %v1223 = vrot.slane %v643, %v1222
        %1225 = vbcast.lane.b32.xlu0 %v1223, 256
        %v1226 = vpop.permute.xlu0 %1225
        %s1228 = sor.u32 256, 8
        %1229 = vbcast.lane.b32.xlu0 %v1223, %s1228
        %v1230 = vpop.permute.xlu0 %1229
        %s1232 = sor.u32 256, 16
        %1233 = vbcast.lane.b32.xlu0 %v1223, %s1232
        %v1234 = vpop.permute.xlu0 %1233
        %s1236 = sor.u32 256, 24
        %1237 = vbcast.lane.b32.xlu0 %v1223, %s1236
        %v1238 = vpop.permute.xlu0 %1237
        %v1239 = vlaneseq
        %v1240 = vshrl.u32 %v1239, 7
        %v1241 = vsub.s32 7, %v1240
        %v1242 = vrot.slane %v643, %v1241
        %1244 = vbcast.lane.b32.xlu0 %v1242, 256
        %v1245 = vpop.permute.xlu0 %1244
        %s1247 = sor.u32 256, 8
        %1248 = vbcast.lane.b32.xlu0 %v1242, %s1247
        %v1249 = vpop.permute.xlu0 %1248
        %s1251 = sor.u32 256, 16
        %1252 = vbcast.lane.b32.xlu0 %v1242, %s1251
        %v1253 = vpop.permute.xlu0 %1252
        %s1255 = sor.u32 256, 24
        %1256 = vbcast.lane.b32.xlu0 %v1242, %s1255
        %v1257 = vpop.permute.xlu0 %1256
        %v1258 = vlaneseq
        %v1259 = vshrl.u32 %v1258, 7
        %v1260 = vsub.s32 0, %v1259
        %v1261 = vrot.slane %v644, %v1260
        %1263 = vbcast.lane.b32.xlu0 %v1261, 256
        %v1264 = vpop.permute.xlu0 %1263
        %s1266 = sor.u32 256, 8
        %1267 = vbcast.lane.b32.xlu0 %v1261, %s1266
        %v1268 = vpop.permute.xlu0 %1267
        %s1270 = sor.u32 256, 16
        %1271 = vbcast.lane.b32.xlu0 %v1261, %s1270
        %v1272 = vpop.permute.xlu0 %1271
        %s1274 = sor.u32 256, 24
        %1275 = vbcast.lane.b32.xlu0 %v1261, %s1274
        %v1276 = vpop.permute.xlu0 %1275
        %v1277 = vlaneseq
        %v1278 = vshrl.u32 %v1277, 7
        %v1279 = vsub.s32 1, %v1278
        %v1280 = vrot.slane %v644, %v1279
        %1282 = vbcast.lane.b32.xlu0 %v1280, 256
        %v1283 = vpop.permute.xlu0 %1282
        %s1285 = sor.u32 256, 8
        %1286 = vbcast.lane.b32.xlu0 %v1280, %s1285
        %v1287 = vpop.permute.xlu0 %1286
        %s1289 = sor.u32 256, 16
        %1290 = vbcast.lane.b32.xlu0 %v1280, %s1289
        %v1291 = vpop.permute.xlu0 %1290
        %s1293 = sor.u32 256, 24
        %1294 = vbcast.lane.b32.xlu0 %v1280, %s1293
        %v1295 = vpop.permute.xlu0 %1294
        %v1296 = vlaneseq
        %v1297 = vshrl.u32 %v1296, 7
        %v1298 = vsub.s32 2, %v1297
        %v1299 = vrot.slane %v644, %v1298
        %1301 = vbcast.lane.b32.xlu0 %v1299, 256
        %v1302 = vpop.permute.xlu0 %1301
        %s1304 = sor.u32 256, 8
        %1305 = vbcast.lane.b32.xlu0 %v1299, %s1304
        %v1306 = vpop.permute.xlu0 %1305
        %s1308 = sor.u32 256, 16
        %1309 = vbcast.lane.b32.xlu0 %v1299, %s1308
        %v1310 = vpop.permute.xlu0 %1309
        %s1312 = sor.u32 256, 24
        %1313 = vbcast.lane.b32.xlu0 %v1299, %s1312
        %v1314 = vpop.permute.xlu0 %1313
        %v1315 = vlaneseq
        %v1316 = vshrl.u32 %v1315, 7
        %v1317 = vsub.s32 3, %v1316
        %v1318 = vrot.slane %v644, %v1317
        %1320 = vbcast.lane.b32.xlu0 %v1318, 256
        %v1321 = vpop.permute.xlu0 %1320
        %s1323 = sor.u32 256, 8
        %1324 = vbcast.lane.b32.xlu0 %v1318, %s1323
        %v1325 = vpop.permute.xlu0 %1324
        %s1327 = sor.u32 256, 16
        %1328 = vbcast.lane.b32.xlu0 %v1318, %s1327
        %v1329 = vpop.permute.xlu0 %1328
        %s1331 = sor.u32 256, 24
        %1332 = vbcast.lane.b32.xlu0 %v1318, %s1331
        %v1333 = vpop.permute.xlu0 %1332
        %v1334 = vlaneseq
        %v1335 = vshrl.u32 %v1334, 7
        %v1336 = vsub.s32 4, %v1335
        %v1337 = vrot.slane %v644, %v1336
        %1339 = vbcast.lane.b32.xlu0 %v1337, 256
        %v1340 = vpop.permute.xlu0 %1339
        %s1342 = sor.u32 256, 8
        %1343 = vbcast.lane.b32.xlu0 %v1337, %s1342
        %v1344 = vpop.permute.xlu0 %1343
        %s1346 = sor.u32 256, 16
        %1347 = vbcast.lane.b32.xlu0 %v1337, %s1346
        %v1348 = vpop.permute.xlu0 %1347
        %s1350 = sor.u32 256, 24
        %1351 = vbcast.lane.b32.xlu0 %v1337, %s1350
        %v1352 = vpop.permute.xlu0 %1351
        %v1353 = vlaneseq
        %v1354 = vshrl.u32 %v1353, 7
        %v1355 = vsub.s32 5, %v1354
        %v1356 = vrot.slane %v644, %v1355
        %1358 = vbcast.lane.b32.xlu0 %v1356, 256
        %v1359 = vpop.permute.xlu0 %1358
        %s1361 = sor.u32 256, 8
        %1362 = vbcast.lane.b32.xlu0 %v1356, %s1361
        %v1363 = vpop.permute.xlu0 %1362
        %s1365 = sor.u32 256, 16
        %1366 = vbcast.lane.b32.xlu0 %v1356, %s1365
        %v1367 = vpop.permute.xlu0 %1366
        %s1369 = sor.u32 256, 24
        %1370 = vbcast.lane.b32.xlu0 %v1356, %s1369
        %v1371 = vpop.permute.xlu0 %1370
        %v1372 = vlaneseq
        %v1373 = vshrl.u32 %v1372, 7
        %v1374 = vsub.s32 6, %v1373
        %v1375 = vrot.slane %v644, %v1374
        %1377 = vbcast.lane.b32.xlu0 %v1375, 256
        %v1378 = vpop.permute.xlu0 %1377
        %s1380 = sor.u32 256, 8
        %1381 = vbcast.lane.b32.xlu0 %v1375, %s1380
        %v1382 = vpop.permute.xlu0 %1381
        %s1384 = sor.u32 256, 16
        %1385 = vbcast.lane.b32.xlu0 %v1375, %s1384
        %v1386 = vpop.permute.xlu0 %1385
        %s1388 = sor.u32 256, 24
        %1389 = vbcast.lane.b32.xlu0 %v1375, %s1388
        %v1390 = vpop.permute.xlu0 %1389
        %v1391 = vlaneseq
        %v1392 = vshrl.u32 %v1391, 7
        %v1393 = vsub.s32 7, %v1392
        %v1394 = vrot.slane %v644, %v1393
        %1396 = vbcast.lane.b32.xlu0 %v1394, 256
        %v1397 = vpop.permute.xlu0 %1396
        %s1399 = sor.u32 256, 8
        %1400 = vbcast.lane.b32.xlu0 %v1394, %s1399
        %v1401 = vpop.permute.xlu0 %1400
        %s1403 = sor.u32 256, 16
        %1404 = vbcast.lane.b32.xlu0 %v1394, %s1403
        %v1405 = vpop.permute.xlu0 %1404
        %s1407 = sor.u32 256, 24
        %1408 = vbcast.lane.b32.xlu0 %v1394, %s1407
        %v1409 = vpop.permute.xlu0 %1408
        %v1410 = vlaneseq
        %v1411 = vshrl.u32 %v1410, 7
        %v1412 = vsub.s32 0, %v1411
        %v1413 = vrot.slane %v645, %v1412
        %1415 = vbcast.lane.b32.xlu0 %v1413, 256
        %v1416 = vpop.permute.xlu0 %1415
        %s1418 = sor.u32 256, 8
        %1419 = vbcast.lane.b32.xlu0 %v1413, %s1418
        %v1420 = vpop.permute.xlu0 %1419
        %s1422 = sor.u32 256, 16
        %1423 = vbcast.lane.b32.xlu0 %v1413, %s1422
        %v1424 = vpop.permute.xlu0 %1423
        %s1426 = sor.u32 256, 24
        %1427 = vbcast.lane.b32.xlu0 %v1413, %s1426
        %v1428 = vpop.permute.xlu0 %1427
        %v1429 = vlaneseq
        %v1430 = vshrl.u32 %v1429, 7
        %v1431 = vsub.s32 1, %v1430
        %v1432 = vrot.slane %v645, %v1431
        %1434 = vbcast.lane.b32.xlu0 %v1432, 256
        %v1435 = vpop.permute.xlu0 %1434
        %s1437 = sor.u32 256, 8
        %1438 = vbcast.lane.b32.xlu0 %v1432, %s1437
        %v1439 = vpop.permute.xlu0 %1438
        %s1441 = sor.u32 256, 16
        %1442 = vbcast.lane.b32.xlu0 %v1432, %s1441
        %v1443 = vpop.permute.xlu0 %1442
        %s1445 = sor.u32 256, 24
        %1446 = vbcast.lane.b32.xlu0 %v1432, %s1445
        %v1447 = vpop.permute.xlu0 %1446
        %v1448 = vlaneseq
        %v1449 = vshrl.u32 %v1448, 7
        %v1450 = vsub.s32 2, %v1449
        %v1451 = vrot.slane %v645, %v1450
        %1453 = vbcast.lane.b32.xlu0 %v1451, 256
        %v1454 = vpop.permute.xlu0 %1453
        %s1456 = sor.u32 256, 8
        %1457 = vbcast.lane.b32.xlu0 %v1451, %s1456
        %v1458 = vpop.permute.xlu0 %1457
        %s1460 = sor.u32 256, 16
        %1461 = vbcast.lane.b32.xlu0 %v1451, %s1460
        %v1462 = vpop.permute.xlu0 %1461
        %s1464 = sor.u32 256, 24
        %1465 = vbcast.lane.b32.xlu0 %v1451, %s1464
        %v1466 = vpop.permute.xlu0 %1465
        %v1467 = vlaneseq
        %v1468 = vshrl.u32 %v1467, 7
        %v1469 = vsub.s32 3, %v1468
        %v1470 = vrot.slane %v645, %v1469
        %1472 = vbcast.lane.b32.xlu0 %v1470, 256
        %v1473 = vpop.permute.xlu0 %1472
        %s1475 = sor.u32 256, 8
        %1476 = vbcast.lane.b32.xlu0 %v1470, %s1475
        %v1477 = vpop.permute.xlu0 %1476
        %s1479 = sor.u32 256, 16
        %1480 = vbcast.lane.b32.xlu0 %v1470, %s1479
        %v1481 = vpop.permute.xlu0 %1480
        %s1483 = sor.u32 256, 24
        %1484 = vbcast.lane.b32.xlu0 %v1470, %s1483
        %v1485 = vpop.permute.xlu0 %1484
        %v1486 = vlaneseq
        %v1487 = vshrl.u32 %v1486, 7
        %v1488 = vsub.s32 4, %v1487
        %v1489 = vrot.slane %v645, %v1488
        %1491 = vbcast.lane.b32.xlu0 %v1489, 256
        %v1492 = vpop.permute.xlu0 %1491
        %s1494 = sor.u32 256, 8
        %1495 = vbcast.lane.b32.xlu0 %v1489, %s1494
        %v1496 = vpop.permute.xlu0 %1495
        %s1498 = sor.u32 256, 16
        %1499 = vbcast.lane.b32.xlu0 %v1489, %s1498
        %v1500 = vpop.permute.xlu0 %1499
        %s1502 = sor.u32 256, 24
        %1503 = vbcast.lane.b32.xlu0 %v1489, %s1502
        %v1504 = vpop.permute.xlu0 %1503
        %v1505 = vlaneseq
        %v1506 = vshrl.u32 %v1505, 7
        %v1507 = vsub.s32 5, %v1506
        %v1508 = vrot.slane %v645, %v1507
        %1510 = vbcast.lane.b32.xlu0 %v1508, 256
        %v1511 = vpop.permute.xlu0 %1510
        %s1513 = sor.u32 256, 8
        %1514 = vbcast.lane.b32.xlu0 %v1508, %s1513
        %v1515 = vpop.permute.xlu0 %1514
        %s1517 = sor.u32 256, 16
        %1518 = vbcast.lane.b32.xlu0 %v1508, %s1517
        %v1519 = vpop.permute.xlu0 %1518
        %s1521 = sor.u32 256, 24
        %1522 = vbcast.lane.b32.xlu0 %v1508, %s1521
        %v1523 = vpop.permute.xlu0 %1522
        %v1524 = vlaneseq
        %v1525 = vshrl.u32 %v1524, 7
        %v1526 = vsub.s32 6, %v1525
        %v1527 = vrot.slane %v645, %v1526
        %1529 = vbcast.lane.b32.xlu0 %v1527, 256
        %v1530 = vpop.permute.xlu0 %1529
        %s1532 = sor.u32 256, 8
        %1533 = vbcast.lane.b32.xlu0 %v1527, %s1532
        %v1534 = vpop.permute.xlu0 %1533
        %s1536 = sor.u32 256, 16
        %1537 = vbcast.lane.b32.xlu0 %v1527, %s1536
        %v1538 = vpop.permute.xlu0 %1537
        %s1540 = sor.u32 256, 24
        %1541 = vbcast.lane.b32.xlu0 %v1527, %s1540
        %v1542 = vpop.permute.xlu0 %1541
        %v1543 = vlaneseq
        %v1544 = vshrl.u32 %v1543, 7
        %v1545 = vsub.s32 7, %v1544
        %v1546 = vrot.slane %v645, %v1545
        %1548 = vbcast.lane.b32.xlu0 %v1546, 256
        %v1549 = vpop.permute.xlu0 %1548
        %s1551 = sor.u32 256, 8
        %1552 = vbcast.lane.b32.xlu0 %v1546, %s1551
        %v1553 = vpop.permute.xlu0 %1552
        %s1555 = sor.u32 256, 16
        %1556 = vbcast.lane.b32.xlu0 %v1546, %s1555
        %v1557 = vpop.permute.xlu0 %1556
        %s1559 = sor.u32 256, 24
        %1560 = vbcast.lane.b32.xlu0 %v1546, %s1559
        %v1561 = vpop.permute.xlu0 %1560
        %v1562 = vlaneseq
        %v1563 = vshrl.u32 %v1562, 7
        %v1564 = vsub.s32 0, %v1563
        %v1565 = vrot.slane %v646, %v1564
        %1567 = vbcast.lane.b32.xlu0 %v1565, 256
        %v1568 = vpop.permute.xlu0 %1567
        %s1570 = sor.u32 256, 8
        %1571 = vbcast.lane.b32.xlu0 %v1565, %s1570
        %v1572 = vpop.permute.xlu0 %1571
        %s1574 = sor.u32 256, 16
        %1575 = vbcast.lane.b32.xlu0 %v1565, %s1574
        %v1576 = vpop.permute.xlu0 %1575
        %s1578 = sor.u32 256, 24
        %1579 = vbcast.lane.b32.xlu0 %v1565, %s1578
        %v1580 = vpop.permute.xlu0 %1579
        %v1581 = vlaneseq
        %v1582 = vshrl.u32 %v1581, 7
        %v1583 = vsub.s32 1, %v1582
        %v1584 = vrot.slane %v646, %v1583
        %1586 = vbcast.lane.b32.xlu0 %v1584, 256
        %v1587 = vpop.permute.xlu0 %1586
        %s1589 = sor.u32 256, 8
        %1590 = vbcast.lane.b32.xlu0 %v1584, %s1589
        %v1591 = vpop.permute.xlu0 %1590
        %s1593 = sor.u32 256, 16
        %1594 = vbcast.lane.b32.xlu0 %v1584, %s1593
        %v1595 = vpop.permute.xlu0 %1594
        %s1597 = sor.u32 256, 24
        %1598 = vbcast.lane.b32.xlu0 %v1584, %s1597
        %v1599 = vpop.permute.xlu0 %1598
        %v1600 = vlaneseq
        %v1601 = vshrl.u32 %v1600, 7
        %v1602 = vsub.s32 2, %v1601
        %v1603 = vrot.slane %v646, %v1602
        %1605 = vbcast.lane.b32.xlu0 %v1603, 256
        %v1606 = vpop.permute.xlu0 %1605
        %s1608 = sor.u32 256, 8
        %1609 = vbcast.lane.b32.xlu0 %v1603, %s1608
        %v1610 = vpop.permute.xlu0 %1609
        %s1612 = sor.u32 256, 16
        %1613 = vbcast.lane.b32.xlu0 %v1603, %s1612
        %v1614 = vpop.permute.xlu0 %1613
        %s1616 = sor.u32 256, 24
        %1617 = vbcast.lane.b32.xlu0 %v1603, %s1616
        %v1618 = vpop.permute.xlu0 %1617
        %v1619 = vlaneseq
        %v1620 = vshrl.u32 %v1619, 7
        %v1621 = vsub.s32 3, %v1620
        %v1622 = vrot.slane %v646, %v1621
        %1624 = vbcast.lane.b32.xlu0 %v1622, 256
        %v1625 = vpop.permute.xlu0 %1624
        %s1627 = sor.u32 256, 8
        %1628 = vbcast.lane.b32.xlu0 %v1622, %s1627
        %v1629 = vpop.permute.xlu0 %1628
        %s1631 = sor.u32 256, 16
        %1632 = vbcast.lane.b32.xlu0 %v1622, %s1631
        %v1633 = vpop.permute.xlu0 %1632
        %s1635 = sor.u32 256, 24
        %1636 = vbcast.lane.b32.xlu0 %v1622, %s1635
        %v1637 = vpop.permute.xlu0 %1636
        %v1638 = vlaneseq
        %v1639 = vshrl.u32 %v1638, 7
        %v1640 = vsub.s32 4, %v1639
        %v1641 = vrot.slane %v646, %v1640
        %1643 = vbcast.lane.b32.xlu0 %v1641, 256
        %v1644 = vpop.permute.xlu0 %1643
        %s1646 = sor.u32 256, 8
        %1647 = vbcast.lane.b32.xlu0 %v1641, %s1646
        %v1648 = vpop.permute.xlu0 %1647
        %s1650 = sor.u32 256, 16
        %1651 = vbcast.lane.b32.xlu0 %v1641, %s1650
        %v1652 = vpop.permute.xlu0 %1651
        %s1654 = sor.u32 256, 24
        %1655 = vbcast.lane.b32.xlu0 %v1641, %s1654
        %v1656 = vpop.permute.xlu0 %1655
        %v1657 = vlaneseq
        %v1658 = vshrl.u32 %v1657, 7
        %v1659 = vsub.s32 5, %v1658
        %v1660 = vrot.slane %v646, %v1659
        %1662 = vbcast.lane.b32.xlu0 %v1660, 256
        %v1663 = vpop.permute.xlu0 %1662
        %s1665 = sor.u32 256, 8
        %1666 = vbcast.lane.b32.xlu0 %v1660, %s1665
        %v1667 = vpop.permute.xlu0 %1666
        %s1669 = sor.u32 256, 16
        %1670 = vbcast.lane.b32.xlu0 %v1660, %s1669
        %v1671 = vpop.permute.xlu0 %1670
        %s1673 = sor.u32 256, 24
        %1674 = vbcast.lane.b32.xlu0 %v1660, %s1673
        %v1675 = vpop.permute.xlu0 %1674
        %v1676 = vlaneseq
        %v1677 = vshrl.u32 %v1676, 7
        %v1678 = vsub.s32 6, %v1677
        %v1679 = vrot.slane %v646, %v1678
        %1681 = vbcast.lane.b32.xlu0 %v1679, 256
        %v1682 = vpop.permute.xlu0 %1681
        %s1684 = sor.u32 256, 8
        %1685 = vbcast.lane.b32.xlu0 %v1679, %s1684
        %v1686 = vpop.permute.xlu0 %1685
        %s1688 = sor.u32 256, 16
        %1689 = vbcast.lane.b32.xlu0 %v1679, %s1688
        %v1690 = vpop.permute.xlu0 %1689
        %s1692 = sor.u32 256, 24
        %1693 = vbcast.lane.b32.xlu0 %v1679, %s1692
        %v1694 = vpop.permute.xlu0 %1693
        %v1695 = vlaneseq
        %v1696 = vshrl.u32 %v1695, 7
        %v1697 = vsub.s32 7, %v1696
        %v1698 = vrot.slane %v646, %v1697
        %1700 = vbcast.lane.b32.xlu0 %v1698, 256
        %v1701 = vpop.permute.xlu0 %1700
        %s1703 = sor.u32 256, 8
        %1704 = vbcast.lane.b32.xlu0 %v1698, %s1703
        %v1705 = vpop.permute.xlu0 %1704
        %s1707 = sor.u32 256, 16
        %1708 = vbcast.lane.b32.xlu0 %v1698, %s1707
        %v1709 = vpop.permute.xlu0 %1708
        %s1711 = sor.u32 256, 24
        %1712 = vbcast.lane.b32.xlu0 %v1698, %s1711
        %v1713 = vpop.permute.xlu0 %1712
        %s1715 = sor.u32 256, 32
        %1716 = vbcast.lane.b32.xlu0 %v653, %s1715
        %v1717 = vpop.permute.xlu0 %1716
        %s1719 = sor.u32 256, 40
        %1720 = vbcast.lane.b32.xlu0 %v653, %s1719
        %v1721 = vpop.permute.xlu0 %1720
        %s1723 = sor.u32 256, 48
        %1724 = vbcast.lane.b32.xlu0 %v653, %s1723
        %v1725 = vpop.permute.xlu0 %1724
        %s1727 = sor.u32 256, 56
        %1728 = vbcast.lane.b32.xlu0 %v653, %s1727
        %v1729 = vpop.permute.xlu0 %1728
        %s1731 = sor.u32 256, 32
        %1732 = vbcast.lane.b32.xlu0 %v672, %s1731
        %v1733 = vpop.permute.xlu0 %1732
        %s1735 = sor.u32 256, 40
        %1736 = vbcast.lane.b32.xlu0 %v672, %s1735
        %v1737 = vpop.permute.xlu0 %1736
        %s1739 = sor.u32 256, 48
        %1740 = vbcast.lane.b32.xlu0 %v672, %s1739
        %v1741 = vpop.permute.xlu0 %1740
        %s1743 = sor.u32 256, 56
        %1744 = vbcast.lane.b32.xlu0 %v672, %s1743
        %v1745 = vpop.permute.xlu0 %1744
        %s1747 = sor.u32 256, 32
        %1748 = vbcast.lane.b32.xlu0 %v691, %s1747
        %v1749 = vpop.permute.xlu0 %1748
        %s1751 = sor.u32 256, 40
        %1752 = vbcast.lane.b32.xlu0 %v691, %s1751
        %v1753 = vpop.permute.xlu0 %1752
        %s1755 = sor.u32 256, 48
        %1756 = vbcast.lane.b32.xlu0 %v691, %s1755
        %v1757 = vpop.permute.xlu0 %1756
        %s1759 = sor.u32 256, 56
        %1760 = vbcast.lane.b32.xlu0 %v691, %s1759
        %v1761 = vpop.permute.xlu0 %1760
        %s1763 = sor.u32 256, 32
        %1764 = vbcast.lane.b32.xlu0 %v710, %s1763
        %v1765 = vpop.permute.xlu0 %1764
        %s1767 = sor.u32 256, 40
        %1768 = vbcast.lane.b32.xlu0 %v710, %s1767
        %v1769 = vpop.permute.xlu0 %1768
        %s1771 = sor.u32 256, 48
        %1772 = vbcast.lane.b32.xlu0 %v710, %s1771
        %v1773 = vpop.permute.xlu0 %1772
        %s1775 = sor.u32 256, 56
        %1776 = vbcast.lane.b32.xlu0 %v710, %s1775
        %v1777 = vpop.permute.xlu0 %1776
        %s1779 = sor.u32 256, 32
        %1780 = vbcast.lane.b32.xlu0 %v729, %s1779
        %v1781 = vpop.permute.xlu0 %1780
        %s1783 = sor.u32 256, 40
        %1784 = vbcast.lane.b32.xlu0 %v729, %s1783
        %v1785 = vpop.permute.xlu0 %1784
        %s1787 = sor.u32 256, 48
        %1788 = vbcast.lane.b32.xlu0 %v729, %s1787
        %v1789 = vpop.permute.xlu0 %1788
        %s1791 = sor.u32 256, 56
        %1792 = vbcast.lane.b32.xlu0 %v729, %s1791
        %v1793 = vpop.permute.xlu0 %1792
        %s1795 = sor.u32 256, 32
        %1796 = vbcast.lane.b32.xlu0 %v748, %s1795
        %v1797 = vpop.permute.xlu0 %1796
        %s1799 = sor.u32 256, 40
        %1800 = vbcast.lane.b32.xlu0 %v748, %s1799
        %v1801 = vpop.permute.xlu0 %1800
        %s1803 = sor.u32 256, 48
        %1804 = vbcast.lane.b32.xlu0 %v748, %s1803
        %v1805 = vpop.permute.xlu0 %1804
        %s1807 = sor.u32 256, 56
        %1808 = vbcast.lane.b32.xlu0 %v748, %s1807
        %v1809 = vpop.permute.xlu0 %1808
        %s1811 = sor.u32 256, 32
        %1812 = vbcast.lane.b32.xlu0 %v767, %s1811
        %v1813 = vpop.permute.xlu0 %1812
        %s1815 = sor.u32 256, 40
        %1816 = vbcast.lane.b32.xlu0 %v767, %s1815
        %v1817 = vpop.permute.xlu0 %1816
        %s1819 = sor.u32 256, 48
        %1820 = vbcast.lane.b32.xlu0 %v767, %s1819
        %v1821 = vpop.permute.xlu0 %1820
        %s1823 = sor.u32 256, 56
        %1824 = vbcast.lane.b32.xlu0 %v767, %s1823
        %v1825 = vpop.permute.xlu0 %1824
        %s1827 = sor.u32 256, 32
        %1828 = vbcast.lane.b32.xlu0 %v786, %s1827
        %v1829 = vpop.permute.xlu0 %1828
        %s1831 = sor.u32 256, 40
        %1832 = vbcast.lane.b32.xlu0 %v786, %s1831
        %v1833 = vpop.permute.xlu0 %1832
        %s1835 = sor.u32 256, 48
        %1836 = vbcast.lane.b32.xlu0 %v786, %s1835
        %v1837 = vpop.permute.xlu0 %1836
        %s1839 = sor.u32 256, 56
        %1840 = vbcast.lane.b32.xlu0 %v786, %s1839
        %v1841 = vpop.permute.xlu0 %1840
        %s1843 = sor.u32 256, 32
        %1844 = vbcast.lane.b32.xlu0 %v805, %s1843
        %v1845 = vpop.permute.xlu0 %1844
        %s1847 = sor.u32 256, 40
        %1848 = vbcast.lane.b32.xlu0 %v805, %s1847
        %v1849 = vpop.permute.xlu0 %1848
        %s1851 = sor.u32 256, 48
        %1852 = vbcast.lane.b32.xlu0 %v805, %s1851
        %v1853 = vpop.permute.xlu0 %1852
        %s1855 = sor.u32 256, 56
        %1856 = vbcast.lane.b32.xlu0 %v805, %s1855
        %v1857 = vpop.permute.xlu0 %1856
        %s1859 = sor.u32 256, 32
        %1860 = vbcast.lane.b32.xlu0 %v824, %s1859
        %v1861 = vpop.permute.xlu0 %1860
        %s1863 = sor.u32 256, 40
        %1864 = vbcast.lane.b32.xlu0 %v824, %s1863
        %v1865 = vpop.permute.xlu0 %1864
        %s1867 = sor.u32 256, 48
        %1868 = vbcast.lane.b32.xlu0 %v824, %s1867
        %v1869 = vpop.permute.xlu0 %1868
        %s1871 = sor.u32 256, 56
        %1872 = vbcast.lane.b32.xlu0 %v824, %s1871
        %v1873 = vpop.permute.xlu0 %1872
        %s1875 = sor.u32 256, 32
        %1876 = vbcast.lane.b32.xlu0 %v843, %s1875
        %v1877 = vpop.permute.xlu0 %1876
        %s1879 = sor.u32 256, 40
        %1880 = vbcast.lane.b32.xlu0 %v843, %s1879
        %v1881 = vpop.permute.xlu0 %1880
        %s1883 = sor.u32 256, 48
        %1884 = vbcast.lane.b32.xlu0 %v843, %s1883
        %v1885 = vpop.permute.xlu0 %1884
        %s1887 = sor.u32 256, 56
        %1888 = vbcast.lane.b32.xlu0 %v843, %s1887
        %v1889 = vpop.permute.xlu0 %1888
        %s1891 = sor.u32 256, 32
        %1892 = vbcast.lane.b32.xlu0 %v862, %s1891
        %v1893 = vpop.permute.xlu0 %1892
        %s1895 = sor.u32 256, 40
        %1896 = vbcast.lane.b32.xlu0 %v862, %s1895
        %v1897 = vpop.permute.xlu0 %1896
        %s1899 = sor.u32 256, 48
        %1900 = vbcast.lane.b32.xlu0 %v862, %s1899
        %v1901 = vpop.permute.xlu0 %1900
        %s1903 = sor.u32 256, 56
        %1904 = vbcast.lane.b32.xlu0 %v862, %s1903
        %v1905 = vpop.permute.xlu0 %1904
        %s1907 = sor.u32 256, 32
        %1908 = vbcast.lane.b32.xlu0 %v881, %s1907
        %v1909 = vpop.permute.xlu0 %1908
        %s1911 = sor.u32 256, 40
        %1912 = vbcast.lane.b32.xlu0 %v881, %s1911
        %v1913 = vpop.permute.xlu0 %1912
        %s1915 = sor.u32 256, 48
        %1916 = vbcast.lane.b32.xlu0 %v881, %s1915
        %v1917 = vpop.permute.xlu0 %1916
        %s1919 = sor.u32 256, 56
        %1920 = vbcast.lane.b32.xlu0 %v881, %s1919
        %v1921 = vpop.permute.xlu0 %1920
        %s1923 = sor.u32 256, 32
        %1924 = vbcast.lane.b32.xlu0 %v900, %s1923
        %v1925 = vpop.permute.xlu0 %1924
        %s1927 = sor.u32 256, 40
        %1928 = vbcast.lane.b32.xlu0 %v900, %s1927
        %v1929 = vpop.permute.xlu0 %1928
        %s1931 = sor.u32 256, 48
        %1932 = vbcast.lane.b32.xlu0 %v900, %s1931
        %v1933 = vpop.permute.xlu0 %1932
        %s1935 = sor.u32 256, 56
        %1936 = vbcast.lane.b32.xlu0 %v900, %s1935
        %v1937 = vpop.permute.xlu0 %1936
        %s1939 = sor.u32 256, 32
        %1940 = vbcast.lane.b32.xlu0 %v919, %s1939
        %v1941 = vpop.permute.xlu0 %1940
        %s1943 = sor.u32 256, 40
        %1944 = vbcast.lane.b32.xlu0 %v919, %s1943
        %v1945 = vpop.permute.xlu0 %1944
        %s1947 = sor.u32 256, 48
        %1948 = vbcast.lane.b32.xlu0 %v919, %s1947
        %v1949 = vpop.permute.xlu0 %1948
        %s1951 = sor.u32 256, 56
        %1952 = vbcast.lane.b32.xlu0 %v919, %s1951
        %v1953 = vpop.permute.xlu0 %1952
        %s1955 = sor.u32 256, 32
        %1956 = vbcast.lane.b32.xlu0 %v938, %s1955
        %v1957 = vpop.permute.xlu0 %1956
        %s1959 = sor.u32 256, 40
        %1960 = vbcast.lane.b32.xlu0 %v938, %s1959
        %v1961 = vpop.permute.xlu0 %1960
        %s1963 = sor.u32 256, 48
        %1964 = vbcast.lane.b32.xlu0 %v938, %s1963
        %v1965 = vpop.permute.xlu0 %1964
        %s1967 = sor.u32 256, 56
        %1968 = vbcast.lane.b32.xlu0 %v938, %s1967
        %v1969 = vpop.permute.xlu0 %1968
        %s1971 = sor.u32 256, 32
        %1972 = vbcast.lane.b32.xlu0 %v957, %s1971
        %v1973 = vpop.permute.xlu0 %1972
        %s1975 = sor.u32 256, 40
        %1976 = vbcast.lane.b32.xlu0 %v957, %s1975
        %v1977 = vpop.permute.xlu0 %1976
        %s1979 = sor.u32 256, 48
        %1980 = vbcast.lane.b32.xlu0 %v957, %s1979
        %v1981 = vpop.permute.xlu0 %1980
        %s1983 = sor.u32 256, 56
        %1984 = vbcast.lane.b32.xlu0 %v957, %s1983
        %v1985 = vpop.permute.xlu0 %1984
        %s1987 = sor.u32 256, 32
        %1988 = vbcast.lane.b32.xlu0 %v976, %s1987
        %v1989 = vpop.permute.xlu0 %1988
        %s1991 = sor.u32 256, 40
        %1992 = vbcast.lane.b32.xlu0 %v976, %s1991
        %v1993 = vpop.permute.xlu0 %1992
        %s1995 = sor.u32 256, 48
        %1996 = vbcast.lane.b32.xlu0 %v976, %s1995
        %v1997 = vpop.permute.xlu0 %1996
        %s1999 = sor.u32 256, 56
        %2000 = vbcast.lane.b32.xlu0 %v976, %s1999
        %v2001 = vpop.permute.xlu0 %2000
        %s2003 = sor.u32 256, 32
        %2004 = vbcast.lane.b32.xlu0 %v995, %s2003
        %v2005 = vpop.permute.xlu0 %2004
        %s2007 = sor.u32 256, 40
        %2008 = vbcast.lane.b32.xlu0 %v995, %s2007
        %v2009 = vpop.permute.xlu0 %2008
        %s2011 = sor.u32 256, 48
        %2012 = vbcast.lane.b32.xlu0 %v995, %s2011
        %v2013 = vpop.permute.xlu0 %2012
        %s2015 = sor.u32 256, 56
        %2016 = vbcast.lane.b32.xlu0 %v995, %s2015
        %v2017 = vpop.permute.xlu0 %2016
        %s2019 = sor.u32 256, 32
        %2020 = vbcast.lane.b32.xlu0 %v1014, %s2019
        %v2021 = vpop.permute.xlu0 %2020
        %s2023 = sor.u32 256, 40
        %2024 = vbcast.lane.b32.xlu0 %v1014, %s2023
        %v2025 = vpop.permute.xlu0 %2024
        %s2027 = sor.u32 256, 48
        %2028 = vbcast.lane.b32.xlu0 %v1014, %s2027
        %v2029 = vpop.permute.xlu0 %2028
        %s2031 = sor.u32 256, 56
        %2032 = vbcast.lane.b32.xlu0 %v1014, %s2031
        %v2033 = vpop.permute.xlu0 %2032
        %s2035 = sor.u32 256, 32
        %2036 = vbcast.lane.b32.xlu0 %v1033, %s2035
        %v2037 = vpop.permute.xlu0 %2036
        %s2039 = sor.u32 256, 40
        %2040 = vbcast.lane.b32.xlu0 %v1033, %s2039
        %v2041 = vpop.permute.xlu0 %2040
        %s2043 = sor.u32 256, 48
        %2044 = vbcast.lane.b32.xlu0 %v1033, %s2043
        %v2045 = vpop.permute.xlu0 %2044
        %s2047 = sor.u32 256, 56
        %2048 = vbcast.lane.b32.xlu0 %v1033, %s2047
        %v2049 = vpop.permute.xlu0 %2048
        %s2051 = sor.u32 256, 32
        %2052 = vbcast.lane.b32.xlu0 %v1052, %s2051
        %v2053 = vpop.permute.xlu0 %2052
        %s2055 = sor.u32 256, 40
        %2056 = vbcast.lane.b32.xlu0 %v1052, %s2055
        %v2057 = vpop.permute.xlu0 %2056
        %s2059 = sor.u32 256, 48
        %2060 = vbcast.lane.b32.xlu0 %v1052, %s2059
        %v2061 = vpop.permute.xlu0 %2060
        %s2063 = sor.u32 256, 56
        %2064 = vbcast.lane.b32.xlu0 %v1052, %s2063
        %v2065 = vpop.permute.xlu0 %2064
        %s2067 = sor.u32 256, 32
        %2068 = vbcast.lane.b32.xlu0 %v1071, %s2067
        %v2069 = vpop.permute.xlu0 %2068
        %s2071 = sor.u32 256, 40
        %2072 = vbcast.lane.b32.xlu0 %v1071, %s2071
        %v2073 = vpop.permute.xlu0 %2072
        %s2075 = sor.u32 256, 48
        %2076 = vbcast.lane.b32.xlu0 %v1071, %s2075
        %v2077 = vpop.permute.xlu0 %2076
        %s2079 = sor.u32 256, 56
        %2080 = vbcast.lane.b32.xlu0 %v1071, %s2079
        %v2081 = vpop.permute.xlu0 %2080
        %s2083 = sor.u32 256, 32
        %2084 = vbcast.lane.b32.xlu0 %v1090, %s2083
        %v2085 = vpop.permute.xlu0 %2084
        %s2087 = sor.u32 256, 40
        %2088 = vbcast.lane.b32.xlu0 %v1090, %s2087
        %v2089 = vpop.permute.xlu0 %2088
        %s2091 = sor.u32 256, 48
        %2092 = vbcast.lane.b32.xlu0 %v1090, %s2091
        %v2093 = vpop.permute.xlu0 %2092
        %s2095 = sor.u32 256, 56
        %2096 = vbcast.lane.b32.xlu0 %v1090, %s2095
        %v2097 = vpop.permute.xlu0 %2096
        %s2099 = sor.u32 256, 32
        %2100 = vbcast.lane.b32.xlu0 %v1109, %s2099
        %v2101 = vpop.permute.xlu0 %2100
        %s2103 = sor.u32 256, 40
        %2104 = vbcast.lane.b32.xlu0 %v1109, %s2103
        %v2105 = vpop.permute.xlu0 %2104
        %s2107 = sor.u32 256, 48
        %2108 = vbcast.lane.b32.xlu0 %v1109, %s2107
        %v2109 = vpop.permute.xlu0 %2108
        %s2111 = sor.u32 256, 56
        %2112 = vbcast.lane.b32.xlu0 %v1109, %s2111
        %v2113 = vpop.permute.xlu0 %2112
        %s2115 = sor.u32 256, 32
        %2116 = vbcast.lane.b32.xlu0 %v1128, %s2115
        %v2117 = vpop.permute.xlu0 %2116
        %s2119 = sor.u32 256, 40
        %2120 = vbcast.lane.b32.xlu0 %v1128, %s2119
        %v2121 = vpop.permute.xlu0 %2120
        %s2123 = sor.u32 256, 48
        %2124 = vbcast.lane.b32.xlu0 %v1128, %s2123
        %v2125 = vpop.permute.xlu0 %2124
        %s2127 = sor.u32 256, 56
        %2128 = vbcast.lane.b32.xlu0 %v1128, %s2127
        %v2129 = vpop.permute.xlu0 %2128
        %s2131 = sor.u32 256, 32
        %2132 = vbcast.lane.b32.xlu0 %v1147, %s2131
        %v2133 = vpop.permute.xlu0 %2132
        %s2135 = sor.u32 256, 40
        %2136 = vbcast.lane.b32.xlu0 %v1147, %s2135
        %v2137 = vpop.permute.xlu0 %2136
        %s2139 = sor.u32 256, 48
        %2140 = vbcast.lane.b32.xlu0 %v1147, %s2139
        %v2141 = vpop.permute.xlu0 %2140
        %s2143 = sor.u32 256, 56
        %2144 = vbcast.lane.b32.xlu0 %v1147, %s2143
        %v2145 = vpop.permute.xlu0 %2144
        %s2147 = sor.u32 256, 32
        %2148 = vbcast.lane.b32.xlu0 %v1166, %s2147
        %v2149 = vpop.permute.xlu0 %2148
        %s2151 = sor.u32 256, 40
        %2152 = vbcast.lane.b32.xlu0 %v1166, %s2151
        %v2153 = vpop.permute.xlu0 %2152
        %s2155 = sor.u32 256, 48
        %2156 = vbcast.lane.b32.xlu0 %v1166, %s2155
        %v2157 = vpop.permute.xlu0 %2156
        %s2159 = sor.u32 256, 56
        %2160 = vbcast.lane.b32.xlu0 %v1166, %s2159
        %v2161 = vpop.permute.xlu0 %2160
        %s2163 = sor.u32 256, 32
        %2164 = vbcast.lane.b32.xlu0 %v1185, %s2163
        %v2165 = vpop.permute.xlu0 %2164
        %s2167 = sor.u32 256, 40
        %2168 = vbcast.lane.b32.xlu0 %v1185, %s2167
        %v2169 = vpop.permute.xlu0 %2168
        %s2171 = sor.u32 256, 48
        %2172 = vbcast.lane.b32.xlu0 %v1185, %s2171
        %v2173 = vpop.permute.xlu0 %2172
        %s2175 = sor.u32 256, 56
        %2176 = vbcast.lane.b32.xlu0 %v1185, %s2175
        %v2177 = vpop.permute.xlu0 %2176
        %s2179 = sor.u32 256, 32
        %2180 = vbcast.lane.b32.xlu0 %v1204, %s2179
        %v2181 = vpop.permute.xlu0 %2180
        %s2183 = sor.u32 256, 40
        %2184 = vbcast.lane.b32.xlu0 %v1204, %s2183
        %v2185 = vpop.permute.xlu0 %2184
        %s2187 = sor.u32 256, 48
        %2188 = vbcast.lane.b32.xlu0 %v1204, %s2187
        %v2189 = vpop.permute.xlu0 %2188
        %s2191 = sor.u32 256, 56
        %2192 = vbcast.lane.b32.xlu0 %v1204, %s2191
        %v2193 = vpop.permute.xlu0 %2192
        %s2195 = sor.u32 256, 32
        %2196 = vbcast.lane.b32.xlu0 %v1223, %s2195
        %v2197 = vpop.permute.xlu0 %2196
        %s2199 = sor.u32 256, 40
        %2200 = vbcast.lane.b32.xlu0 %v1223, %s2199
        %v2201 = vpop.permute.xlu0 %2200
        %s2203 = sor.u32 256, 48
        %2204 = vbcast.lane.b32.xlu0 %v1223, %s2203
        %v2205 = vpop.permute.xlu0 %2204
        %s2207 = sor.u32 256, 56
        %2208 = vbcast.lane.b32.xlu0 %v1223, %s2207
        %v2209 = vpop.permute.xlu0 %2208
        %s2211 = sor.u32 256, 32
        %2212 = vbcast.lane.b32.xlu0 %v1242, %s2211
        %v2213 = vpop.permute.xlu0 %2212
        %s2215 = sor.u32 256, 40
        %2216 = vbcast.lane.b32.xlu0 %v1242, %s2215
        %v2217 = vpop.permute.xlu0 %2216
        %s2219 = sor.u32 256, 48
        %2220 = vbcast.lane.b32.xlu0 %v1242, %s2219
        %v2221 = vpop.permute.xlu0 %2220
        %s2223 = sor.u32 256, 56
        %2224 = vbcast.lane.b32.xlu0 %v1242, %s2223
        %v2225 = vpop.permute.xlu0 %2224
        %s2227 = sor.u32 256, 32
        %2228 = vbcast.lane.b32.xlu0 %v1261, %s2227
        %v2229 = vpop.permute.xlu0 %2228
        %s2231 = sor.u32 256, 40
        %2232 = vbcast.lane.b32.xlu0 %v1261, %s2231
        %v2233 = vpop.permute.xlu0 %2232
        %s2235 = sor.u32 256, 48
        %2236 = vbcast.lane.b32.xlu0 %v1261, %s2235
        %v2237 = vpop.permute.xlu0 %2236
        %s2239 = sor.u32 256, 56
        %2240 = vbcast.lane.b32.xlu0 %v1261, %s2239
        %v2241 = vpop.permute.xlu0 %2240
        %s2243 = sor.u32 256, 32
        %2244 = vbcast.lane.b32.xlu0 %v1280, %s2243
        %v2245 = vpop.permute.xlu0 %2244
        %s2247 = sor.u32 256, 40
        %2248 = vbcast.lane.b32.xlu0 %v1280, %s2247
        %v2249 = vpop.permute.xlu0 %2248
        %s2251 = sor.u32 256, 48
        %2252 = vbcast.lane.b32.xlu0 %v1280, %s2251
        %v2253 = vpop.permute.xlu0 %2252
        %s2255 = sor.u32 256, 56
        %2256 = vbcast.lane.b32.xlu0 %v1280, %s2255
        %v2257 = vpop.permute.xlu0 %2256
        %s2259 = sor.u32 256, 32
        %2260 = vbcast.lane.b32.xlu0 %v1299, %s2259
        %v2261 = vpop.permute.xlu0 %2260
        %s2263 = sor.u32 256, 40
        %2264 = vbcast.lane.b32.xlu0 %v1299, %s2263
        %v2265 = vpop.permute.xlu0 %2264
        %s2267 = sor.u32 256, 48
        %2268 = vbcast.lane.b32.xlu0 %v1299, %s2267
        %v2269 = vpop.permute.xlu0 %2268
        %s2271 = sor.u32 256, 56
        %2272 = vbcast.lane.b32.xlu0 %v1299, %s2271
        %v2273 = vpop.permute.xlu0 %2272
        %s2275 = sor.u32 256, 32
        %2276 = vbcast.lane.b32.xlu0 %v1318, %s2275
        %v2277 = vpop.permute.xlu0 %2276
        %s2279 = sor.u32 256, 40
        %2280 = vbcast.lane.b32.xlu0 %v1318, %s2279
        %v2281 = vpop.permute.xlu0 %2280
        %s2283 = sor.u32 256, 48
        %2284 = vbcast.lane.b32.xlu0 %v1318, %s2283
        %v2285 = vpop.permute.xlu0 %2284
        %s2287 = sor.u32 256, 56
        %2288 = vbcast.lane.b32.xlu0 %v1318, %s2287
        %v2289 = vpop.permute.xlu0 %2288
        %s2291 = sor.u32 256, 32
        %2292 = vbcast.lane.b32.xlu0 %v1337, %s2291
        %v2293 = vpop.permute.xlu0 %2292
        %s2295 = sor.u32 256, 40
        %2296 = vbcast.lane.b32.xlu0 %v1337, %s2295
        %v2297 = vpop.permute.xlu0 %2296
        %s2299 = sor.u32 256, 48
        %2300 = vbcast.lane.b32.xlu0 %v1337, %s2299
        %v2301 = vpop.permute.xlu0 %2300
        %s2303 = sor.u32 256, 56
        %2304 = vbcast.lane.b32.xlu0 %v1337, %s2303
        %v2305 = vpop.permute.xlu0 %2304
        %s2307 = sor.u32 256, 32
        %2308 = vbcast.lane.b32.xlu0 %v1356, %s2307
        %v2309 = vpop.permute.xlu0 %2308
        %s2311 = sor.u32 256, 40
        %2312 = vbcast.lane.b32.xlu0 %v1356, %s2311
        %v2313 = vpop.permute.xlu0 %2312
        %s2315 = sor.u32 256, 48
        %2316 = vbcast.lane.b32.xlu0 %v1356, %s2315
        %v2317 = vpop.permute.xlu0 %2316
        %s2319 = sor.u32 256, 56
        %2320 = vbcast.lane.b32.xlu0 %v1356, %s2319
        %v2321 = vpop.permute.xlu0 %2320
        %s2323 = sor.u32 256, 32
        %2324 = vbcast.lane.b32.xlu0 %v1375, %s2323
        %v2325 = vpop.permute.xlu0 %2324
        %s2327 = sor.u32 256, 40
        %2328 = vbcast.lane.b32.xlu0 %v1375, %s2327
        %v2329 = vpop.permute.xlu0 %2328
        %s2331 = sor.u32 256, 48
        %2332 = vbcast.lane.b32.xlu0 %v1375, %s2331
        %v2333 = vpop.permute.xlu0 %2332
        %s2335 = sor.u32 256, 56
        %2336 = vbcast.lane.b32.xlu0 %v1375, %s2335
        %v2337 = vpop.permute.xlu0 %2336
        %s2339 = sor.u32 256, 32
        %2340 = vbcast.lane.b32.xlu0 %v1394, %s2339
        %v2341 = vpop.permute.xlu0 %2340
        %s2343 = sor.u32 256, 40
        %2344 = vbcast.lane.b32.xlu0 %v1394, %s2343
        %v2345 = vpop.permute.xlu0 %2344
        %s2347 = sor.u32 256, 48
        %2348 = vbcast.lane.b32.xlu0 %v1394, %s2347
        %v2349 = vpop.permute.xlu0 %2348
        %s2351 = sor.u32 256, 56
        %2352 = vbcast.lane.b32.xlu0 %v1394, %s2351
        %v2353 = vpop.permute.xlu0 %2352
        %s2355 = sor.u32 256, 32
        %2356 = vbcast.lane.b32.xlu0 %v1413, %s2355
        %v2357 = vpop.permute.xlu0 %2356
        %s2359 = sor.u32 256, 40
        %2360 = vbcast.lane.b32.xlu0 %v1413, %s2359
        %v2361 = vpop.permute.xlu0 %2360
        %s2363 = sor.u32 256, 48
        %2364 = vbcast.lane.b32.xlu0 %v1413, %s2363
        %v2365 = vpop.permute.xlu0 %2364
        %s2367 = sor.u32 256, 56
        %2368 = vbcast.lane.b32.xlu0 %v1413, %s2367
        %v2369 = vpop.permute.xlu0 %2368
        %s2371 = sor.u32 256, 32
        %2372 = vbcast.lane.b32.xlu0 %v1432, %s2371
        %v2373 = vpop.permute.xlu0 %2372
        %s2375 = sor.u32 256, 40
        %2376 = vbcast.lane.b32.xlu0 %v1432, %s2375
        %v2377 = vpop.permute.xlu0 %2376
        %s2379 = sor.u32 256, 48
        %2380 = vbcast.lane.b32.xlu0 %v1432, %s2379
        %v2381 = vpop.permute.xlu0 %2380
        %s2383 = sor.u32 256, 56
        %2384 = vbcast.lane.b32.xlu0 %v1432, %s2383
        %v2385 = vpop.permute.xlu0 %2384
        %s2387 = sor.u32 256, 32
        %2388 = vbcast.lane.b32.xlu0 %v1451, %s2387
        %v2389 = vpop.permute.xlu0 %2388
        %s2391 = sor.u32 256, 40
        %2392 = vbcast.lane.b32.xlu0 %v1451, %s2391
        %v2393 = vpop.permute.xlu0 %2392
        %s2395 = sor.u32 256, 48
        %2396 = vbcast.lane.b32.xlu0 %v1451, %s2395
        %v2397 = vpop.permute.xlu0 %2396
        %s2399 = sor.u32 256, 56
        %2400 = vbcast.lane.b32.xlu0 %v1451, %s2399
        %v2401 = vpop.permute.xlu0 %2400
        %s2403 = sor.u32 256, 32
        %2404 = vbcast.lane.b32.xlu0 %v1470, %s2403
        %v2405 = vpop.permute.xlu0 %2404
        %s2407 = sor.u32 256, 40
        %2408 = vbcast.lane.b32.xlu0 %v1470, %s2407
        %v2409 = vpop.permute.xlu0 %2408
        %s2411 = sor.u32 256, 48
        %2412 = vbcast.lane.b32.xlu0 %v1470, %s2411
        %v2413 = vpop.permute.xlu0 %2412
        %s2415 = sor.u32 256, 56
        %2416 = vbcast.lane.b32.xlu0 %v1470, %s2415
        %v2417 = vpop.permute.xlu0 %2416
        %s2419 = sor.u32 256, 32
        %2420 = vbcast.lane.b32.xlu0 %v1489, %s2419
        %v2421 = vpop.permute.xlu0 %2420
        %s2423 = sor.u32 256, 40
        %2424 = vbcast.lane.b32.xlu0 %v1489, %s2423
        %v2425 = vpop.permute.xlu0 %2424
        %s2427 = sor.u32 256, 48
        %2428 = vbcast.lane.b32.xlu0 %v1489, %s2427
        %v2429 = vpop.permute.xlu0 %2428
        %s2431 = sor.u32 256, 56
        %2432 = vbcast.lane.b32.xlu0 %v1489, %s2431
        %v2433 = vpop.permute.xlu0 %2432
        %s2435 = sor.u32 256, 32
        %2436 = vbcast.lane.b32.xlu0 %v1508, %s2435
        %v2437 = vpop.permute.xlu0 %2436
        %s2439 = sor.u32 256, 40
        %2440 = vbcast.lane.b32.xlu0 %v1508, %s2439
        %v2441 = vpop.permute.xlu0 %2440
        %s2443 = sor.u32 256, 48
        %2444 = vbcast.lane.b32.xlu0 %v1508, %s2443
        %v2445 = vpop.permute.xlu0 %2444
        %s2447 = sor.u32 256, 56
        %2448 = vbcast.lane.b32.xlu0 %v1508, %s2447
        %v2449 = vpop.permute.xlu0 %2448
        %s2451 = sor.u32 256, 32
        %2452 = vbcast.lane.b32.xlu0 %v1527, %s2451
        %v2453 = vpop.permute.xlu0 %2452
        %s2455 = sor.u32 256, 40
        %2456 = vbcast.lane.b32.xlu0 %v1527, %s2455
        %v2457 = vpop.permute.xlu0 %2456
        %s2459 = sor.u32 256, 48
        %2460 = vbcast.lane.b32.xlu0 %v1527, %s2459
        %v2461 = vpop.permute.xlu0 %2460
        %s2463 = sor.u32 256, 56
        %2464 = vbcast.lane.b32.xlu0 %v1527, %s2463
        %v2465 = vpop.permute.xlu0 %2464
        %s2467 = sor.u32 256, 32
        %2468 = vbcast.lane.b32.xlu0 %v1546, %s2467
        %v2469 = vpop.permute.xlu0 %2468
        %s2471 = sor.u32 256, 40
        %2472 = vbcast.lane.b32.xlu0 %v1546, %s2471
        %v2473 = vpop.permute.xlu0 %2472
        %s2475 = sor.u32 256, 48
        %2476 = vbcast.lane.b32.xlu0 %v1546, %s2475
        %v2477 = vpop.permute.xlu0 %2476
        %s2479 = sor.u32 256, 56
        %2480 = vbcast.lane.b32.xlu0 %v1546, %s2479
        %v2481 = vpop.permute.xlu0 %2480
        %s2483 = sor.u32 256, 32
        %2484 = vbcast.lane.b32.xlu0 %v1565, %s2483
        %v2485 = vpop.permute.xlu0 %2484
        %s2487 = sor.u32 256, 40
        %2488 = vbcast.lane.b32.xlu0 %v1565, %s2487
        %v2489 = vpop.permute.xlu0 %2488
        %s2491 = sor.u32 256, 48
        %2492 = vbcast.lane.b32.xlu0 %v1565, %s2491
        %v2493 = vpop.permute.xlu0 %2492
        %s2495 = sor.u32 256, 56
        %2496 = vbcast.lane.b32.xlu0 %v1565, %s2495
        %v2497 = vpop.permute.xlu0 %2496
        %s2499 = sor.u32 256, 32
        %2500 = vbcast.lane.b32.xlu0 %v1584, %s2499
        %v2501 = vpop.permute.xlu0 %2500
        %s2503 = sor.u32 256, 40
        %2504 = vbcast.lane.b32.xlu0 %v1584, %s2503
        %v2505 = vpop.permute.xlu0 %2504
        %s2507 = sor.u32 256, 48
        %2508 = vbcast.lane.b32.xlu0 %v1584, %s2507
        %v2509 = vpop.permute.xlu0 %2508
        %s2511 = sor.u32 256, 56
        %2512 = vbcast.lane.b32.xlu0 %v1584, %s2511
        %v2513 = vpop.permute.xlu0 %2512
        %s2515 = sor.u32 256, 32
        %2516 = vbcast.lane.b32.xlu0 %v1603, %s2515
        %v2517 = vpop.permute.xlu0 %2516
        %s2519 = sor.u32 256, 40
        %2520 = vbcast.lane.b32.xlu0 %v1603, %s2519
        %v2521 = vpop.permute.xlu0 %2520
        %s2523 = sor.u32 256, 48
        %2524 = vbcast.lane.b32.xlu0 %v1603, %s2523
        %v2525 = vpop.permute.xlu0 %2524
        %s2527 = sor.u32 256, 56
        %2528 = vbcast.lane.b32.xlu0 %v1603, %s2527
        %v2529 = vpop.permute.xlu0 %2528
        %s2531 = sor.u32 256, 32
        %2532 = vbcast.lane.b32.xlu0 %v1622, %s2531
        %v2533 = vpop.permute.xlu0 %2532
        %s2535 = sor.u32 256, 40
        %2536 = vbcast.lane.b32.xlu0 %v1622, %s2535
        %v2537 = vpop.permute.xlu0 %2536
        %s2539 = sor.u32 256, 48
        %2540 = vbcast.lane.b32.xlu0 %v1622, %s2539
        %v2541 = vpop.permute.xlu0 %2540
        %s2543 = sor.u32 256, 56
        %2544 = vbcast.lane.b32.xlu0 %v1622, %s2543
        %v2545 = vpop.permute.xlu0 %2544
        %s2547 = sor.u32 256, 32
        %2548 = vbcast.lane.b32.xlu0 %v1641, %s2547
        %v2549 = vpop.permute.xlu0 %2548
        %s2551 = sor.u32 256, 40
        %2552 = vbcast.lane.b32.xlu0 %v1641, %s2551
        %v2553 = vpop.permute.xlu0 %2552
        %s2555 = sor.u32 256, 48
        %2556 = vbcast.lane.b32.xlu0 %v1641, %s2555
        %v2557 = vpop.permute.xlu0 %2556
        %s2559 = sor.u32 256, 56
        %2560 = vbcast.lane.b32.xlu0 %v1641, %s2559
        %v2561 = vpop.permute.xlu0 %2560
        %s2563 = sor.u32 256, 32
        %2564 = vbcast.lane.b32.xlu0 %v1660, %s2563
        %v2565 = vpop.permute.xlu0 %2564
        %s2567 = sor.u32 256, 40
        %2568 = vbcast.lane.b32.xlu0 %v1660, %s2567
        %v2569 = vpop.permute.xlu0 %2568
        %s2571 = sor.u32 256, 48
        %2572 = vbcast.lane.b32.xlu0 %v1660, %s2571
        %v2573 = vpop.permute.xlu0 %2572
        %s2575 = sor.u32 256, 56
        %2576 = vbcast.lane.b32.xlu0 %v1660, %s2575
        %v2577 = vpop.permute.xlu0 %2576
        %s2579 = sor.u32 256, 32
        %2580 = vbcast.lane.b32.xlu0 %v1679, %s2579
        %v2581 = vpop.permute.xlu0 %2580
        %s2583 = sor.u32 256, 40
        %2584 = vbcast.lane.b32.xlu0 %v1679, %s2583
        %v2585 = vpop.permute.xlu0 %2584
        %s2587 = sor.u32 256, 48
        %2588 = vbcast.lane.b32.xlu0 %v1679, %s2587
        %v2589 = vpop.permute.xlu0 %2588
        %s2591 = sor.u32 256, 56
        %2592 = vbcast.lane.b32.xlu0 %v1679, %s2591
        %v2593 = vpop.permute.xlu0 %2592
        %s2595 = sor.u32 256, 32
        %2596 = vbcast.lane.b32.xlu0 %v1698, %s2595
        %v2597 = vpop.permute.xlu0 %2596
        %s2599 = sor.u32 256, 40
        %2600 = vbcast.lane.b32.xlu0 %v1698, %s2599
        %v2601 = vpop.permute.xlu0 %2600
        %s2603 = sor.u32 256, 48
        %2604 = vbcast.lane.b32.xlu0 %v1698, %s2603
        %v2605 = vpop.permute.xlu0 %2604
        %s2607 = sor.u32 256, 56
        %2608 = vbcast.lane.b32.xlu0 %v1698, %s2607
        %v2609 = vpop.permute.xlu0 %2608
        %v2610 = vsel %vm649, 1, 0
        %vm2611 = vcmp.eq.s32.totalorder %v2610, 1
        %v2612 = vsel %vm2611, %v656, %v1717
        %v2613 = vsel %vm2611, %v660, %v1721
        %v2614 = vsel %vm2611, %v664, %v1725
        %v2615 = vsel %vm2611, %v668, %v1729
        %v2616 = vsel %vm2611, %v675, %v1733
        %v2617 = vsel %vm2611, %v679, %v1737
        %v2618 = vsel %vm2611, %v683, %v1741
        %v2619 = vsel %vm2611, %v687, %v1745
        %v2620 = vsel %vm2611, %v694, %v1749
        %v2621 = vsel %vm2611, %v698, %v1753
        %v2622 = vsel %vm2611, %v702, %v1757
        %v2623 = vsel %vm2611, %v706, %v1761
        %v2624 = vsel %vm2611, %v713, %v1765
        %v2625 = vsel %vm2611, %v717, %v1769
        %v2626 = vsel %vm2611, %v721, %v1773
        %v2627 = vsel %vm2611, %v725, %v1777
        %v2628 = vsel %vm2611, %v732, %v1781
        %v2629 = vsel %vm2611, %v736, %v1785
        %v2630 = vsel %vm2611, %v740, %v1789
        %v2631 = vsel %vm2611, %v744, %v1793
        %v2632 = vsel %vm2611, %v751, %v1797
        %v2633 = vsel %vm2611, %v755, %v1801
        %v2634 = vsel %vm2611, %v759, %v1805
        %v2635 = vsel %vm2611, %v763, %v1809
        %v2636 = vsel %vm2611, %v770, %v1813
        %v2637 = vsel %vm2611, %v774, %v1817
        %v2638 = vsel %vm2611, %v778, %v1821
        %v2639 = vsel %vm2611, %v782, %v1825
        %v2640 = vsel %vm2611, %v789, %v1829
        %v2641 = vsel %vm2611, %v793, %v1833
        %v2642 = vsel %vm2611, %v797, %v1837
        %v2643 = vsel %vm2611, %v801, %v1841
        %v2644 = vsel %vm2611, %v808, %v1845
        %v2645 = vsel %vm2611, %v812, %v1849
        %v2646 = vsel %vm2611, %v816, %v1853
        %v2647 = vsel %vm2611, %v820, %v1857
        %v2648 = vsel %vm2611, %v827, %v1861
        %v2649 = vsel %vm2611, %v831, %v1865
        %v2650 = vsel %vm2611, %v835, %v1869
        %v2651 = vsel %vm2611, %v839, %v1873
        %v2652 = vsel %vm2611, %v846, %v1877
        %v2653 = vsel %vm2611, %v850, %v1881
        %v2654 = vsel %vm2611, %v854, %v1885
        %v2655 = vsel %vm2611, %v858, %v1889
        %v2656 = vsel %vm2611, %v865, %v1893
        %v2657 = vsel %vm2611, %v869, %v1897
        %v2658 = vsel %vm2611, %v873, %v1901
        %v2659 = vsel %vm2611, %v877, %v1905
        %v2660 = vsel %vm2611, %v884, %v1909
        %v2661 = vsel %vm2611, %v888, %v1913
        %v2662 = vsel %vm2611, %v892, %v1917
        %v2663 = vsel %vm2611, %v896, %v1921
        %v2664 = vsel %vm2611, %v903, %v1925
        %v2665 = vsel %vm2611, %v907, %v1929
        %v2666 = vsel %vm2611, %v911, %v1933
        %v2667 = vsel %vm2611, %v915, %v1937
        %v2668 = vsel %vm2611, %v922, %v1941
        %v2669 = vsel %vm2611, %v926, %v1945
        %v2670 = vsel %vm2611, %v930, %v1949
        %v2671 = vsel %vm2611, %v934, %v1953
        %v2672 = vsel %vm2611, %v941, %v1957
        %v2673 = vsel %vm2611, %v945, %v1961
        %v2674 = vsel %vm2611, %v949, %v1965
        %v2675 = vsel %vm2611, %v953, %v1969
        %v2676 = vsel %vm2611, %v960, %v1973
        %v2677 = vsel %vm2611, %v964, %v1977
        %v2678 = vsel %vm2611, %v968, %v1981
        %v2679 = vsel %vm2611, %v972, %v1985
        %v2680 = vsel %vm2611, %v979, %v1989
        %v2681 = vsel %vm2611, %v983, %v1993
        %v2682 = vsel %vm2611, %v987, %v1997
        %v2683 = vsel %vm2611, %v991, %v2001
        %v2684 = vsel %vm2611, %v998, %v2005
        %v2685 = vsel %vm2611, %v1002, %v2009
        %v2686 = vsel %vm2611, %v1006, %v2013
        %v2687 = vsel %vm2611, %v1010, %v2017
        %v2688 = vsel %vm2611, %v1017, %v2021
        %v2689 = vsel %vm2611, %v1021, %v2025
        %v2690 = vsel %vm2611, %v1025, %v2029
        %v2691 = vsel %vm2611, %v1029, %v2033
        %v2692 = vsel %vm2611, %v1036, %v2037
        %v2693 = vsel %vm2611, %v1040, %v2041
        %v2694 = vsel %vm2611, %v1044, %v2045
        %v2695 = vsel %vm2611, %v1048, %v2049
        %v2696 = vsel %vm2611, %v1055, %v2053
        %v2697 = vsel %vm2611, %v1059, %v2057
        %v2698 = vsel %vm2611, %v1063, %v2061
        %v2699 = vsel %vm2611, %v1067, %v2065
        %v2700 = vsel %vm2611, %v1074, %v2069
        %v2701 = vsel %vm2611, %v1078, %v2073
        %v2702 = vsel %vm2611, %v1082, %v2077
        %v2703 = vsel %vm2611, %v1086, %v2081
        %v2704 = vsel %vm2611, %v1093, %v2085
        %v2705 = vsel %vm2611, %v1097, %v2089
        %v2706 = vsel %vm2611, %v1101, %v2093
        %v2707 = vsel %vm2611, %v1105, %v2097
        %v2708 = vsel %vm2611, %v1112, %v2101
        %v2709 = vsel %vm2611, %v1116, %v2105
        %v2710 = vsel %vm2611, %v1120, %v2109
        %v2711 = vsel %vm2611, %v1124, %v2113
        %v2712 = vsel %vm2611, %v1131, %v2117
        %v2713 = vsel %vm2611, %v1135, %v2121
        %v2714 = vsel %vm2611, %v1139, %v2125
        %v2715 = vsel %vm2611, %v1143, %v2129
        %v2716 = vsel %vm2611, %v1150, %v2133
        %v2717 = vsel %vm2611, %v1154, %v2137
        %v2718 = vsel %vm2611, %v1158, %v2141
        %v2719 = vsel %vm2611, %v1162, %v2145
        %v2720 = vsel %vm2611, %v1169, %v2149
        %v2721 = vsel %vm2611, %v1173, %v2153
        %v2722 = vsel %vm2611, %v1177, %v2157
        %v2723 = vsel %vm2611, %v1181, %v2161
        %v2724 = vsel %vm2611, %v1188, %v2165
        %v2725 = vsel %vm2611, %v1192, %v2169
        %v2726 = vsel %vm2611, %v1196, %v2173
        %v2727 = vsel %vm2611, %v1200, %v2177
        %v2728 = vsel %vm2611, %v1207, %v2181
        %v2729 = vsel %vm2611, %v1211, %v2185
        %v2730 = vsel %vm2611, %v1215, %v2189
        %v2731 = vsel %vm2611, %v1219, %v2193
        %v2732 = vsel %vm2611, %v1226, %v2197
        %v2733 = vsel %vm2611, %v1230, %v2201
        %v2734 = vsel %vm2611, %v1234, %v2205
        %v2735 = vsel %vm2611, %v1238, %v2209
        %v2736 = vsel %vm2611, %v1245, %v2213
        %v2737 = vsel %vm2611, %v1249, %v2217
        %v2738 = vsel %vm2611, %v1253, %v2221
        %v2739 = vsel %vm2611, %v1257, %v2225
        %v2740 = vsel %vm2611, %v1264, %v2229
        %v2741 = vsel %vm2611, %v1268, %v2233
        %v2742 = vsel %vm2611, %v1272, %v2237
        %v2743 = vsel %vm2611, %v1276, %v2241
        %v2744 = vsel %vm2611, %v1283, %v2245
        %v2745 = vsel %vm2611, %v1287, %v2249
        %v2746 = vsel %vm2611, %v1291, %v2253
        %v2747 = vsel %vm2611, %v1295, %v2257
        %v2748 = vsel %vm2611, %v1302, %v2261
        %v2749 = vsel %vm2611, %v1306, %v2265
        %v2750 = vsel %vm2611, %v1310, %v2269
        %v2751 = vsel %vm2611, %v1314, %v2273
        %v2752 = vsel %vm2611, %v1321, %v2277
        %v2753 = vsel %vm2611, %v1325, %v2281
        %v2754 = vsel %vm2611, %v1329, %v2285
        %v2755 = vsel %vm2611, %v1333, %v2289
        %v2756 = vsel %vm2611, %v1340, %v2293
        %v2757 = vsel %vm2611, %v1344, %v2297
        %v2758 = vsel %vm2611, %v1348, %v2301
        %v2759 = vsel %vm2611, %v1352, %v2305
        %v2760 = vsel %vm2611, %v1359, %v2309
        %v2761 = vsel %vm2611, %v1363, %v2313
        %v2762 = vsel %vm2611, %v1367, %v2317
        %v2763 = vsel %vm2611, %v1371, %v2321
        %v2764 = vsel %vm2611, %v1378, %v2325
        %v2765 = vsel %vm2611, %v1382, %v2329
        %v2766 = vsel %vm2611, %v1386, %v2333
        %v2767 = vsel %vm2611, %v1390, %v2337
        %v2768 = vsel %vm2611, %v1397, %v2341
        %v2769 = vsel %vm2611, %v1401, %v2345
        %v2770 = vsel %vm2611, %v1405, %v2349
        %v2771 = vsel %vm2611, %v1409, %v2353
        %v2772 = vsel %vm2611, %v1416, %v2357
        %v2773 = vsel %vm2611, %v1420, %v2361
        %v2774 = vsel %vm2611, %v1424, %v2365
        %v2775 = vsel %vm2611, %v1428, %v2369
        %v2776 = vsel %vm2611, %v1435, %v2373
        %v2777 = vsel %vm2611, %v1439, %v2377
        %v2778 = vsel %vm2611, %v1443, %v2381
        %v2779 = vsel %vm2611, %v1447, %v2385
        %v2780 = vsel %vm2611, %v1454, %v2389
        %v2781 = vsel %vm2611, %v1458, %v2393
        %v2782 = vsel %vm2611, %v1462, %v2397
        %v2783 = vsel %vm2611, %v1466, %v2401
        %v2784 = vsel %vm2611, %v1473, %v2405
        %v2785 = vsel %vm2611, %v1477, %v2409
        %v2786 = vsel %vm2611, %v1481, %v2413
        %v2787 = vsel %vm2611, %v1485, %v2417
        %v2788 = vsel %vm2611, %v1492, %v2421
        %v2789 = vsel %vm2611, %v1496, %v2425
        %v2790 = vsel %vm2611, %v1500, %v2429
        %v2791 = vsel %vm2611, %v1504, %v2433
        %v2792 = vsel %vm2611, %v1511, %v2437
        %v2793 = vsel %vm2611, %v1515, %v2441
        %v2794 = vsel %vm2611, %v1519, %v2445
        %v2795 = vsel %vm2611, %v1523, %v2449
        %v2796 = vsel %vm2611, %v1530, %v2453
        %v2797 = vsel %vm2611, %v1534, %v2457
        %v2798 = vsel %vm2611, %v1538, %v2461
        %v2799 = vsel %vm2611, %v1542, %v2465
        %v2800 = vsel %vm2611, %v1549, %v2469
        %v2801 = vsel %vm2611, %v1553, %v2473
        %v2802 = vsel %vm2611, %v1557, %v2477
        %v2803 = vsel %vm2611, %v1561, %v2481
        %v2804 = vsel %vm2611, %v1568, %v2485
        %v2805 = vsel %vm2611, %v1572, %v2489
        %v2806 = vsel %vm2611, %v1576, %v2493
        %v2807 = vsel %vm2611, %v1580, %v2497
        %v2808 = vsel %vm2611, %v1587, %v2501
        %v2809 = vsel %vm2611, %v1591, %v2505
        %v2810 = vsel %vm2611, %v1595, %v2509
        %v2811 = vsel %vm2611, %v1599, %v2513
        %v2812 = vsel %vm2611, %v1606, %v2517
        %v2813 = vsel %vm2611, %v1610, %v2521
        %v2814 = vsel %vm2611, %v1614, %v2525
        %v2815 = vsel %vm2611, %v1618, %v2529
        %v2816 = vsel %vm2611, %v1625, %v2533
        %v2817 = vsel %vm2611, %v1629, %v2537
        %v2818 = vsel %vm2611, %v1633, %v2541
        %v2819 = vsel %vm2611, %v1637, %v2545
        %v2820 = vsel %vm2611, %v1644, %v2549
        %v2821 = vsel %vm2611, %v1648, %v2553
        %v2822 = vsel %vm2611, %v1652, %v2557
        %v2823 = vsel %vm2611, %v1656, %v2561
        %v2824 = vsel %vm2611, %v1663, %v2565
        %v2825 = vsel %vm2611, %v1667, %v2569
        %v2826 = vsel %vm2611, %v1671, %v2573
        %v2827 = vsel %vm2611, %v1675, %v2577
        %v2828 = vsel %vm2611, %v1682, %v2581
        %v2829 = vsel %vm2611, %v1686, %v2585
        %v2830 = vsel %vm2611, %v1690, %v2589
        %v2831 = vsel %vm2611, %v1694, %v2593
        %v2832 = vsel %vm2611, %v1701, %v2597
        %v2833 = vsel %vm2611, %v1705, %v2601
        %v2834 = vsel %vm2611, %v1709, %v2605
        %v2835 = vsel %vm2611, %v1713, %v2609
        %v2836 = vld [vmem:[#allocation10] sm:$0x1]
        %v2838 = vlaneseq
        %v2839 = vshrl.u32 %v2838, 7
        %v2840 = vsub.s32 0, %v2839
        %v2841 = vrot.slane %v2836, %v2840
        %v2843 = vmul.f32 %v2612, %v2841
        %v2844 = vmul.f32 %v2613, %v2841
        %v2845 = vmul.f32 %v2614, %v2841
        %v2846 = vmul.f32 %v2615, %v2841
        %v2847 = vmul.f32 %v2616, %v2841
        %v2848 = vmul.f32 %v2617, %v2841
        %v2849 = vmul.f32 %v2618, %v2841
        %v2850 = vmul.f32 %v2619, %v2841
        %v2851 = vmul.f32 %v2620, %v2841
        %v2852 = vmul.f32 %v2621, %v2841
        %v2853 = vmul.f32 %v2622, %v2841
        %v2854 = vmul.f32 %v2623, %v2841
        %v2855 = vmul.f32 %v2624, %v2841
        %v2856 = vmul.f32 %v2625, %v2841
        %v2857 = vmul.f32 %v2626, %v2841
        %v2858 = vmul.f32 %v2627, %v2841
        %v2859 = vmul.f32 %v2628, %v2841
        %v2860 = vmul.f32 %v2629, %v2841
        %v2861 = vmul.f32 %v2630, %v2841
        %v2862 = vmul.f32 %v2631, %v2841
        %v2863 = vmul.f32 %v2632, %v2841
        %v2864 = vmul.f32 %v2633, %v2841
        %v2865 = vmul.f32 %v2634, %v2841
        %v2866 = vmul.f32 %v2635, %v2841
        %v2867 = vmul.f32 %v2636, %v2841
        %v2868 = vmul.f32 %v2637, %v2841
        %v2869 = vmul.f32 %v2638, %v2841
        %v2870 = vmul.f32 %v2639, %v2841
        %v2871 = vmul.f32 %v2640, %v2841
        %v2872 = vmul.f32 %v2641, %v2841
        %v2873 = vmul.f32 %v2642, %v2841
        %v2874 = vmul.f32 %v2643, %v2841
        %v2875 = vmul.f32 %v2644, %v2841
        %v2876 = vmul.f32 %v2645, %v2841
        %v2877 = vmul.f32 %v2646, %v2841
        %v2878 = vmul.f32 %v2647, %v2841
        %v2879 = vmul.f32 %v2648, %v2841
        %v2880 = vmul.f32 %v2649, %v2841
        %v2881 = vmul.f32 %v2650, %v2841
        %v2882 = vmul.f32 %v2651, %v2841
        %v2883 = vmul.f32 %v2652, %v2841
        %v2884 = vmul.f32 %v2653, %v2841
        %v2885 = vmul.f32 %v2654, %v2841
        %v2886 = vmul.f32 %v2655, %v2841
        %v2887 = vmul.f32 %v2656, %v2841
        %v2888 = vmul.f32 %v2657, %v2841
        %v2889 = vmul.f32 %v2658, %v2841
        %v2890 = vmul.f32 %v2659, %v2841
        %v2891 = vmul.f32 %v2660, %v2841
        %v2892 = vmul.f32 %v2661, %v2841
        %v2893 = vmul.f32 %v2662, %v2841
        %v2894 = vmul.f32 %v2663, %v2841
        %v2895 = vmul.f32 %v2664, %v2841
        %v2896 = vmul.f32 %v2665, %v2841
        %v2897 = vmul.f32 %v2666, %v2841
        %v2898 = vmul.f32 %v2667, %v2841
        %v2899 = vmul.f32 %v2668, %v2841
        %v2900 = vmul.f32 %v2669, %v2841
        %v2901 = vmul.f32 %v2670, %v2841
        %v2902 = vmul.f32 %v2671, %v2841
        %v2903 = vmul.f32 %v2672, %v2841
        %v2904 = vmul.f32 %v2673, %v2841
        %v2905 = vmul.f32 %v2674, %v2841
        %v2906 = vmul.f32 %v2675, %v2841
        %v2907 = vmul.f32 %v2676, %v2841
        %v2908 = vmul.f32 %v2677, %v2841
        %v2909 = vmul.f32 %v2678, %v2841
        %v2910 = vmul.f32 %v2679, %v2841
        %v2911 = vmul.f32 %v2680, %v2841
        %v2912 = vmul.f32 %v2681, %v2841
        %v2913 = vmul.f32 %v2682, %v2841
        %v2914 = vmul.f32 %v2683, %v2841
        %v2915 = vmul.f32 %v2684, %v2841
        %v2916 = vmul.f32 %v2685, %v2841
        %v2917 = vmul.f32 %v2686, %v2841
        %v2918 = vmul.f32 %v2687, %v2841
        %v2919 = vmul.f32 %v2688, %v2841
        %v2920 = vmul.f32 %v2689, %v2841
        %v2921 = vmul.f32 %v2690, %v2841
        %v2922 = vmul.f32 %v2691, %v2841
        %v2923 = vmul.f32 %v2692, %v2841
        %v2924 = vmul.f32 %v2693, %v2841
        %v2925 = vmul.f32 %v2694, %v2841
        %v2926 = vmul.f32 %v2695, %v2841
        %v2927 = vmul.f32 %v2696, %v2841
        %v2928 = vmul.f32 %v2697, %v2841
        %v2929 = vmul.f32 %v2698, %v2841
        %v2930 = vmul.f32 %v2699, %v2841
        %v2931 = vmul.f32 %v2700, %v2841
        %v2932 = vmul.f32 %v2701, %v2841
        %v2933 = vmul.f32 %v2702, %v2841
        %v2934 = vmul.f32 %v2703, %v2841
        %v2935 = vmul.f32 %v2704, %v2841
        %v2936 = vmul.f32 %v2705, %v2841
        %v2937 = vmul.f32 %v2706, %v2841
        %v2938 = vmul.f32 %v2707, %v2841
        %v2939 = vmul.f32 %v2708, %v2841
        %v2940 = vmul.f32 %v2709, %v2841
        %v2941 = vmul.f32 %v2710, %v2841
        %v2942 = vmul.f32 %v2711, %v2841
        %v2943 = vmul.f32 %v2712, %v2841
        %v2944 = vmul.f32 %v2713, %v2841
        %v2945 = vmul.f32 %v2714, %v2841
        %v2946 = vmul.f32 %v2715, %v2841
        %v2947 = vmul.f32 %v2716, %v2841
        %v2948 = vmul.f32 %v2717, %v2841
        %v2949 = vmul.f32 %v2718, %v2841
        %v2950 = vmul.f32 %v2719, %v2841
        %v2951 = vmul.f32 %v2720, %v2841
        %v2952 = vmul.f32 %v2721, %v2841
        %v2953 = vmul.f32 %v2722, %v2841
        %v2954 = vmul.f32 %v2723, %v2841
        %v2955 = vmul.f32 %v2724, %v2841
        %v2956 = vmul.f32 %v2725, %v2841
        %v2957 = vmul.f32 %v2726, %v2841
        %v2958 = vmul.f32 %v2727, %v2841
        %v2959 = vmul.f32 %v2728, %v2841
        %v2960 = vmul.f32 %v2729, %v2841
        %v2961 = vmul.f32 %v2730, %v2841
        %v2962 = vmul.f32 %v2731, %v2841
        %v2963 = vmul.f32 %v2732, %v2841
        %v2964 = vmul.f32 %v2733, %v2841
        %v2965 = vmul.f32 %v2734, %v2841
        %v2966 = vmul.f32 %v2735, %v2841
        %v2967 = vmul.f32 %v2736, %v2841
        %v2968 = vmul.f32 %v2737, %v2841
        %v2969 = vmul.f32 %v2738, %v2841
        %v2970 = vmul.f32 %v2739, %v2841
        %v2971 = vmul.f32 %v2740, %v2841
        %v2972 = vmul.f32 %v2741, %v2841
        %v2973 = vmul.f32 %v2742, %v2841
        %v2974 = vmul.f32 %v2743, %v2841
        %v2975 = vmul.f32 %v2744, %v2841
        %v2976 = vmul.f32 %v2745, %v2841
        %v2977 = vmul.f32 %v2746, %v2841
        %v2978 = vmul.f32 %v2747, %v2841
        %v2979 = vmul.f32 %v2748, %v2841
        %v2980 = vmul.f32 %v2749, %v2841
        %v2981 = vmul.f32 %v2750, %v2841
        %v2982 = vmul.f32 %v2751, %v2841
        %v2983 = vmul.f32 %v2752, %v2841
        %v2984 = vmul.f32 %v2753, %v2841
        %v2985 = vmul.f32 %v2754, %v2841
        %v2986 = vmul.f32 %v2755, %v2841
        %v2987 = vmul.f32 %v2756, %v2841
        %v2988 = vmul.f32 %v2757, %v2841
        %v2989 = vmul.f32 %v2758, %v2841
        %v2990 = vmul.f32 %v2759, %v2841
        %v2991 = vmul.f32 %v2760, %v2841
        %v2992 = vmul.f32 %v2761, %v2841
        %v2993 = vmul.f32 %v2762, %v2841
        %v2994 = vmul.f32 %v2763, %v2841
        %v2995 = vmul.f32 %v2764, %v2841
        %v2996 = vmul.f32 %v2765, %v2841
        %v2997 = vmul.f32 %v2766, %v2841
        %v2998 = vmul.f32 %v2767, %v2841
        %v2999 = vmul.f32 %v2768, %v2841
        %v3000 = vmul.f32 %v2769, %v2841
        %v3001 = vmul.f32 %v2770, %v2841
        %v3002 = vmul.f32 %v2771, %v2841
        %v3003 = vmul.f32 %v2772, %v2841
        %v3004 = vmul.f32 %v2773, %v2841
        %v3005 = vmul.f32 %v2774, %v2841
        %v3006 = vmul.f32 %v2775, %v2841
        %v3007 = vmul.f32 %v2776, %v2841
        %v3008 = vmul.f32 %v2777, %v2841
        %v3009 = vmul.f32 %v2778, %v2841
        %v3010 = vmul.f32 %v2779, %v2841
        %v3011 = vmul.f32 %v2780, %v2841
        %v3012 = vmul.f32 %v2781, %v2841
        %v3013 = vmul.f32 %v2782, %v2841
        %v3014 = vmul.f32 %v2783, %v2841
        %v3015 = vmul.f32 %v2784, %v2841
        %v3016 = vmul.f32 %v2785, %v2841
        %v3017 = vmul.f32 %v2786, %v2841
        %v3018 = vmul.f32 %v2787, %v2841
        %v3019 = vmul.f32 %v2788, %v2841
        %v3020 = vmul.f32 %v2789, %v2841
        %v3021 = vmul.f32 %v2790, %v2841
        %v3022 = vmul.f32 %v2791, %v2841
        %v3023 = vmul.f32 %v2792, %v2841
        %v3024 = vmul.f32 %v2793, %v2841
        %v3025 = vmul.f32 %v2794, %v2841
        %v3026 = vmul.f32 %v2795, %v2841
        %v3027 = vmul.f32 %v2796, %v2841
        %v3028 = vmul.f32 %v2797, %v2841
        %v3029 = vmul.f32 %v2798, %v2841
        %v3030 = vmul.f32 %v2799, %v2841
        %v3031 = vmul.f32 %v2800, %v2841
        %v3032 = vmul.f32 %v2801, %v2841
        %v3033 = vmul.f32 %v2802, %v2841
        %v3034 = vmul.f32 %v2803, %v2841
        %v3035 = vmul.f32 %v2804, %v2841
        %v3036 = vmul.f32 %v2805, %v2841
        %v3037 = vmul.f32 %v2806, %v2841
        %v3038 = vmul.f32 %v2807, %v2841
        %v3039 = vmul.f32 %v2808, %v2841
        %v3040 = vmul.f32 %v2809, %v2841
        %v3041 = vmul.f32 %v2810, %v2841
        %v3042 = vmul.f32 %v2811, %v2841
        %v3043 = vmul.f32 %v2812, %v2841
        %v3044 = vmul.f32 %v2813, %v2841
        %v3045 = vmul.f32 %v2814, %v2841
        %v3046 = vmul.f32 %v2815, %v2841
        %v3047 = vmul.f32 %v2816, %v2841
        %v3048 = vmul.f32 %v2817, %v2841
        %v3049 = vmul.f32 %v2818, %v2841
        %v3050 = vmul.f32 %v2819, %v2841
        %v3051 = vmul.f32 %v2820, %v2841
        %v3052 = vmul.f32 %v2821, %v2841
        %v3053 = vmul.f32 %v2822, %v2841
        %v3054 = vmul.f32 %v2823, %v2841
        %v3055 = vmul.f32 %v2824, %v2841
        %v3056 = vmul.f32 %v2825, %v2841
        %v3057 = vmul.f32 %v2826, %v2841
        %v3058 = vmul.f32 %v2827, %v2841
        %v3059 = vmul.f32 %v2828, %v2841
        %v3060 = vmul.f32 %v2829, %v2841
        %v3061 = vmul.f32 %v2830, %v2841
        %v3062 = vmul.f32 %v2831, %v2841
        %v3063 = vmul.f32 %v2832, %v2841
        %v3064 = vmul.f32 %v2833, %v2841
        %v3065 = vmul.f32 %v2834, %v2841
        %v3066 = vmul.f32 %v2835, %v2841
        %v3067 = vld [vmem:[#allocation11] sm:$0x1]
        %v3069 = vlaneseq
        %v3070 = vshrl.u32 %v3069, 7
        %v3071 = vsub.s32 0, %v3070
        %v3072 = vrot.slane %v3067, %v3071
        %v3074 = vadd.f32 %v2843, %v3072
        %v3075 = vadd.f32 %v2844, %v3072
        %v3076 = vadd.f32 %v2845, %v3072
        %v3077 = vadd.f32 %v2846, %v3072
        %v3078 = vadd.f32 %v2847, %v3072
        %v3079 = vadd.f32 %v2848, %v3072
        %v3080 = vadd.f32 %v2849, %v3072
        %v3081 = vadd.f32 %v2850, %v3072
        %v3082 = vadd.f32 %v2851, %v3072
        %v3083 = vadd.f32 %v2852, %v3072
        %v3084 = vadd.f32 %v2853, %v3072
        %v3085 = vadd.f32 %v2854, %v3072
        %v3086 = vadd.f32 %v2855, %v3072
        %v3087 = vadd.f32 %v2856, %v3072
        %v3088 = vadd.f32 %v2857, %v3072
        %v3089 = vadd.f32 %v2858, %v3072
        %v3090 = vadd.f32 %v2859, %v3072
        %v3091 = vadd.f32 %v2860, %v3072
        %v3092 = vadd.f32 %v2861, %v3072
        %v3093 = vadd.f32 %v2862, %v3072
        %v3094 = vadd.f32 %v2863, %v3072
        %v3095 = vadd.f32 %v2864, %v3072
        %v3096 = vadd.f32 %v2865, %v3072
        %v3097 = vadd.f32 %v2866, %v3072
        %v3098 = vadd.f32 %v2867, %v3072
        %v3099 = vadd.f32 %v2868, %v3072
        %v3100 = vadd.f32 %v2869, %v3072
        %v3101 = vadd.f32 %v2870, %v3072
        %v3102 = vadd.f32 %v2871, %v3072
        %v3103 = vadd.f32 %v2872, %v3072
        %v3104 = vadd.f32 %v2873, %v3072
        %v3105 = vadd.f32 %v2874, %v3072
        %v3106 = vadd.f32 %v2875, %v3072
        %v3107 = vadd.f32 %v2876, %v3072
        %v3108 = vadd.f32 %v2877, %v3072
        %v3109 = vadd.f32 %v2878, %v3072
        %v3110 = vadd.f32 %v2879, %v3072
        %v3111 = vadd.f32 %v2880, %v3072
        %v3112 = vadd.f32 %v2881, %v3072
        %v3113 = vadd.f32 %v2882, %v3072
        %v3114 = vadd.f32 %v2883, %v3072
        %v3115 = vadd.f32 %v2884, %v3072
        %v3116 = vadd.f32 %v2885, %v3072
        %v3117 = vadd.f32 %v2886, %v3072
        %v3118 = vadd.f32 %v2887, %v3072
        %v3119 = vadd.f32 %v2888, %v3072
        %v3120 = vadd.f32 %v2889, %v3072
        %v3121 = vadd.f32 %v2890, %v3072
        %v3122 = vadd.f32 %v2891, %v3072
        %v3123 = vadd.f32 %v2892, %v3072
        %v3124 = vadd.f32 %v2893, %v3072
        %v3125 = vadd.f32 %v2894, %v3072
        %v3126 = vadd.f32 %v2895, %v3072
        %v3127 = vadd.f32 %v2896, %v3072
        %v3128 = vadd.f32 %v2897, %v3072
        %v3129 = vadd.f32 %v2898, %v3072
        %v3130 = vadd.f32 %v2899, %v3072
        %v3131 = vadd.f32 %v2900, %v3072
        %v3132 = vadd.f32 %v2901, %v3072
        %v3133 = vadd.f32 %v2902, %v3072
        %v3134 = vadd.f32 %v2903, %v3072
        %v3135 = vadd.f32 %v2904, %v3072
        %v3136 = vadd.f32 %v2905, %v3072
        %v3137 = vadd.f32 %v2906, %v3072
        %v3138 = vadd.f32 %v2907, %v3072
        %v3139 = vadd.f32 %v2908, %v3072
        %v3140 = vadd.f32 %v2909, %v3072
        %v3141 = vadd.f32 %v2910, %v3072
        %v3142 = vadd.f32 %v2911, %v3072
        %v3143 = vadd.f32 %v2912, %v3072
        %v3144 = vadd.f32 %v2913, %v3072
        %v3145 = vadd.f32 %v2914, %v3072
        %v3146 = vadd.f32 %v2915, %v3072
        %v3147 = vadd.f32 %v2916, %v3072
        %v3148 = vadd.f32 %v2917, %v3072
        %v3149 = vadd.f32 %v2918, %v3072
        %v3150 = vadd.f32 %v2919, %v3072
        %v3151 = vadd.f32 %v2920, %v3072
        %v3152 = vadd.f32 %v2921, %v3072
        %v3153 = vadd.f32 %v2922, %v3072
        %v3154 = vadd.f32 %v2923, %v3072
        %v3155 = vadd.f32 %v2924, %v3072
        %v3156 = vadd.f32 %v2925, %v3072
        %v3157 = vadd.f32 %v2926, %v3072
        %v3158 = vadd.f32 %v2927, %v3072
        %v3159 = vadd.f32 %v2928, %v3072
        %v3160 = vadd.f32 %v2929, %v3072
        %v3161 = vadd.f32 %v2930, %v3072
        %v3162 = vadd.f32 %v2931, %v3072
        %v3163 = vadd.f32 %v2932, %v3072
        %v3164 = vadd.f32 %v2933, %v3072
        %v3165 = vadd.f32 %v2934, %v3072
        %v3166 = vadd.f32 %v2935, %v3072
        %v3167 = vadd.f32 %v2936, %v3072
        %v3168 = vadd.f32 %v2937, %v3072
        %v3169 = vadd.f32 %v2938, %v3072
        %v3170 = vadd.f32 %v2939, %v3072
        %v3171 = vadd.f32 %v2940, %v3072
        %v3172 = vadd.f32 %v2941, %v3072
        %v3173 = vadd.f32 %v2942, %v3072
        %v3174 = vadd.f32 %v2943, %v3072
        %v3175 = vadd.f32 %v2944, %v3072
        %v3176 = vadd.f32 %v2945, %v3072
        %v3177 = vadd.f32 %v2946, %v3072
        %v3178 = vadd.f32 %v2947, %v3072
        %v3179 = vadd.f32 %v2948, %v3072
        %v3180 = vadd.f32 %v2949, %v3072
        %v3181 = vadd.f32 %v2950, %v3072
        %v3182 = vadd.f32 %v2951, %v3072
        %v3183 = vadd.f32 %v2952, %v3072
        %v3184 = vadd.f32 %v2953, %v3072
        %v3185 = vadd.f32 %v2954, %v3072
        %v3186 = vadd.f32 %v2955, %v3072
        %v3187 = vadd.f32 %v2956, %v3072
        %v3188 = vadd.f32 %v2957, %v3072
        %v3189 = vadd.f32 %v2958, %v3072
        %v3190 = vadd.f32 %v2959, %v3072
        %v3191 = vadd.f32 %v2960, %v3072
        %v3192 = vadd.f32 %v2961, %v3072
        %v3193 = vadd.f32 %v2962, %v3072
        %v3194 = vadd.f32 %v2963, %v3072
        %v3195 = vadd.f32 %v2964, %v3072
        %v3196 = vadd.f32 %v2965, %v3072
        %v3197 = vadd.f32 %v2966, %v3072
        %v3198 = vadd.f32 %v2967, %v3072
        %v3199 = vadd.f32 %v2968, %v3072
        %v3200 = vadd.f32 %v2969, %v3072
        %v3201 = vadd.f32 %v2970, %v3072
        %v3202 = vadd.f32 %v2971, %v3072
        %v3203 = vadd.f32 %v2972, %v3072
        %v3204 = vadd.f32 %v2973, %v3072
        %v3205 = vadd.f32 %v2974, %v3072
        %v3206 = vadd.f32 %v2975, %v3072
        %v3207 = vadd.f32 %v2976, %v3072
        %v3208 = vadd.f32 %v2977, %v3072
        %v3209 = vadd.f32 %v2978, %v3072
        %v3210 = vadd.f32 %v2979, %v3072
        %v3211 = vadd.f32 %v2980, %v3072
        %v3212 = vadd.f32 %v2981, %v3072
        %v3213 = vadd.f32 %v2982, %v3072
        %v3214 = vadd.f32 %v2983, %v3072
        %v3215 = vadd.f32 %v2984, %v3072
        %v3216 = vadd.f32 %v2985, %v3072
        %v3217 = vadd.f32 %v2986, %v3072
        %v3218 = vadd.f32 %v2987, %v3072
        %v3219 = vadd.f32 %v2988, %v3072
        %v3220 = vadd.f32 %v2989, %v3072
        %v3221 = vadd.f32 %v2990, %v3072
        %v3222 = vadd.f32 %v2991, %v3072
        %v3223 = vadd.f32 %v2992, %v3072
        %v3224 = vadd.f32 %v2993, %v3072
        %v3225 = vadd.f32 %v2994, %v3072
        %v3226 = vadd.f32 %v2995, %v3072
        %v3227 = vadd.f32 %v2996, %v3072
        %v3228 = vadd.f32 %v2997, %v3072
        %v3229 = vadd.f32 %v2998, %v3072
        %v3230 = vadd.f32 %v2999, %v3072
        %v3231 = vadd.f32 %v3000, %v3072
        %v3232 = vadd.f32 %v3001, %v3072
        %v3233 = vadd.f32 %v3002, %v3072
        %v3234 = vadd.f32 %v3003, %v3072
        %v3235 = vadd.f32 %v3004, %v3072
        %v3236 = vadd.f32 %v3005, %v3072
        %v3237 = vadd.f32 %v3006, %v3072
        %v3238 = vadd.f32 %v3007, %v3072
        %v3239 = vadd.f32 %v3008, %v3072
        %v3240 = vadd.f32 %v3009, %v3072
        %v3241 = vadd.f32 %v3010, %v3072
        %v3242 = vadd.f32 %v3011, %v3072
        %v3243 = vadd.f32 %v3012, %v3072
        %v3244 = vadd.f32 %v3013, %v3072
        %v3245 = vadd.f32 %v3014, %v3072
        %v3246 = vadd.f32 %v3015, %v3072
        %v3247 = vadd.f32 %v3016, %v3072
        %v3248 = vadd.f32 %v3017, %v3072
        %v3249 = vadd.f32 %v3018, %v3072
        %v3250 = vadd.f32 %v3019, %v3072
        %v3251 = vadd.f32 %v3020, %v3072
        %v3252 = vadd.f32 %v3021, %v3072
        %v3253 = vadd.f32 %v3022, %v3072
        %v3254 = vadd.f32 %v3023, %v3072
        %v3255 = vadd.f32 %v3024, %v3072
        %v3256 = vadd.f32 %v3025, %v3072
        %v3257 = vadd.f32 %v3026, %v3072
        %v3258 = vadd.f32 %v3027, %v3072
        %v3259 = vadd.f32 %v3028, %v3072
        %v3260 = vadd.f32 %v3029, %v3072
        %v3261 = vadd.f32 %v3030, %v3072
        %v3262 = vadd.f32 %v3031, %v3072
        %v3263 = vadd.f32 %v3032, %v3072
        %v3264 = vadd.f32 %v3033, %v3072
        %v3265 = vadd.f32 %v3034, %v3072
        %v3266 = vadd.f32 %v3035, %v3072
        %v3267 = vadd.f32 %v3036, %v3072
        %v3268 = vadd.f32 %v3037, %v3072
        %v3269 = vadd.f32 %v3038, %v3072
        %v3270 = vadd.f32 %v3039, %v3072
        %v3271 = vadd.f32 %v3040, %v3072
        %v3272 = vadd.f32 %v3041, %v3072
        %v3273 = vadd.f32 %v3042, %v3072
        %v3274 = vadd.f32 %v3043, %v3072
        %v3275 = vadd.f32 %v3044, %v3072
        %v3276 = vadd.f32 %v3045, %v3072
        %v3277 = vadd.f32 %v3046, %v3072
        %v3278 = vadd.f32 %v3047, %v3072
        %v3279 = vadd.f32 %v3048, %v3072
        %v3280 = vadd.f32 %v3049, %v3072
        %v3281 = vadd.f32 %v3050, %v3072
        %v3282 = vadd.f32 %v3051, %v3072
        %v3283 = vadd.f32 %v3052, %v3072
        %v3284 = vadd.f32 %v3053, %v3072
        %v3285 = vadd.f32 %v3054, %v3072
        %v3286 = vadd.f32 %v3055, %v3072
        %v3287 = vadd.f32 %v3056, %v3072
        %v3288 = vadd.f32 %v3057, %v3072
        %v3289 = vadd.f32 %v3058, %v3072
        %v3290 = vadd.f32 %v3059, %v3072
        %v3291 = vadd.f32 %v3060, %v3072
        %v3292 = vadd.f32 %v3061, %v3072
        %v3293 = vadd.f32 %v3062, %v3072
        %v3294 = vadd.f32 %v3063, %v3072
        %v3295 = vadd.f32 %v3064, %v3072
        %v3296 = vadd.f32 %v3065, %v3072
        %v3297 = vadd.f32 %v3066, %v3072
        %v3298 = vmax.f32 %v3074, 0.0
        %v3299 = vmax.f32 %v3075, 0.0
        %v3300 = vmax.f32 %v3076, 0.0
        %v3301 = vmax.f32 %v3077, 0.0
        %v3302 = vmax.f32 %v3078, 0.0
        %v3303 = vmax.f32 %v3079, 0.0
        %v3304 = vmax.f32 %v3080, 0.0
        %v3305 = vmax.f32 %v3081, 0.0
        %v3306 = vmax.f32 %v3082, 0.0
        %v3307 = vmax.f32 %v3083, 0.0
        %v3308 = vmax.f32 %v3084, 0.0
        %v3309 = vmax.f32 %v3085, 0.0
        %v3310 = vmax.f32 %v3086, 0.0
        %v3311 = vmax.f32 %v3087, 0.0
        %v3312 = vmax.f32 %v3088, 0.0
        %v3313 = vmax.f32 %v3089, 0.0
        %v3314 = vmax.f32 %v3090, 0.0
        %v3315 = vmax.f32 %v3091, 0.0
        %v3316 = vmax.f32 %v3092, 0.0
        %v3317 = vmax.f32 %v3093, 0.0
        %v3318 = vmax.f32 %v3094, 0.0
        %v3319 = vmax.f32 %v3095, 0.0
        %v3320 = vmax.f32 %v3096, 0.0
        %v3321 = vmax.f32 %v3097, 0.0
        %v3322 = vmax.f32 %v3098, 0.0
        %v3323 = vmax.f32 %v3099, 0.0
        %v3324 = vmax.f32 %v3100, 0.0
        %v3325 = vmax.f32 %v3101, 0.0
        %v3326 = vmax.f32 %v3102, 0.0
        %v3327 = vmax.f32 %v3103, 0.0
        %v3328 = vmax.f32 %v3104, 0.0
        %v3329 = vmax.f32 %v3105, 0.0
        %v3330 = vmax.f32 %v3106, 0.0
        %v3331 = vmax.f32 %v3107, 0.0
        %v3332 = vmax.f32 %v3108, 0.0
        %v3333 = vmax.f32 %v3109, 0.0
        %v3334 = vmax.f32 %v3110, 0.0
        %v3335 = vmax.f32 %v3111, 0.0
        %v3336 = vmax.f32 %v3112, 0.0
        %v3337 = vmax.f32 %v3113, 0.0
        %v3338 = vmax.f32 %v3114, 0.0
        %v3339 = vmax.f32 %v3115, 0.0
        %v3340 = vmax.f32 %v3116, 0.0
        %v3341 = vmax.f32 %v3117, 0.0
        %v3342 = vmax.f32 %v3118, 0.0
        %v3343 = vmax.f32 %v3119, 0.0
        %v3344 = vmax.f32 %v3120, 0.0
        %v3345 = vmax.f32 %v3121, 0.0
        %v3346 = vmax.f32 %v3122, 0.0
        %v3347 = vmax.f32 %v3123, 0.0
        %v3348 = vmax.f32 %v3124, 0.0
        %v3349 = vmax.f32 %v3125, 0.0
        %v3350 = vmax.f32 %v3126, 0.0
        %v3351 = vmax.f32 %v3127, 0.0
        %v3352 = vmax.f32 %v3128, 0.0
        %v3353 = vmax.f32 %v3129, 0.0
        %v3354 = vmax.f32 %v3130, 0.0
        %v3355 = vmax.f32 %v3131, 0.0
        %v3356 = vmax.f32 %v3132, 0.0
        %v3357 = vmax.f32 %v3133, 0.0
        %v3358 = vmax.f32 %v3134, 0.0
        %v3359 = vmax.f32 %v3135, 0.0
        %v3360 = vmax.f32 %v3136, 0.0
        %v3361 = vmax.f32 %v3137, 0.0
        %v3362 = vmax.f32 %v3138, 0.0
        %v3363 = vmax.f32 %v3139, 0.0
        %v3364 = vmax.f32 %v3140, 0.0
        %v3365 = vmax.f32 %v3141, 0.0
        %v3366 = vmax.f32 %v3142, 0.0
        %v3367 = vmax.f32 %v3143, 0.0
        %v3368 = vmax.f32 %v3144, 0.0
        %v3369 = vmax.f32 %v3145, 0.0
        %v3370 = vmax.f32 %v3146, 0.0
        %v3371 = vmax.f32 %v3147, 0.0
        %v3372 = vmax.f32 %v3148, 0.0
        %v3373 = vmax.f32 %v3149, 0.0
        %v3374 = vmax.f32 %v3150, 0.0
        %v3375 = vmax.f32 %v3151, 0.0
        %v3376 = vmax.f32 %v3152, 0.0
        %v3377 = vmax.f32 %v3153, 0.0
        %v3378 = vmax.f32 %v3154, 0.0
        %v3379 = vmax.f32 %v3155, 0.0
        %v3380 = vmax.f32 %v3156, 0.0
        %v3381 = vmax.f32 %v3157, 0.0
        %v3382 = vmax.f32 %v3158, 0.0
        %v3383 = vmax.f32 %v3159, 0.0
        %v3384 = vmax.f32 %v3160, 0.0
        %v3385 = vmax.f32 %v3161, 0.0
        %v3386 = vmax.f32 %v3162, 0.0
        %v3387 = vmax.f32 %v3163, 0.0
        %v3388 = vmax.f32 %v3164, 0.0
        %v3389 = vmax.f32 %v3165, 0.0
        %v3390 = vmax.f32 %v3166, 0.0
        %v3391 = vmax.f32 %v3167, 0.0
        %v3392 = vmax.f32 %v3168, 0.0
        %v3393 = vmax.f32 %v3169, 0.0
        %v3394 = vmax.f32 %v3170, 0.0
        %v3395 = vmax.f32 %v3171, 0.0
        %v3396 = vmax.f32 %v3172, 0.0
        %v3397 = vmax.f32 %v3173, 0.0
        %v3398 = vmax.f32 %v3174, 0.0
        %v3399 = vmax.f32 %v3175, 0.0
        %v3400 = vmax.f32 %v3176, 0.0
        %v3401 = vmax.f32 %v3177, 0.0
        %v3402 = vmax.f32 %v3178, 0.0
        %v3403 = vmax.f32 %v3179, 0.0
        %v3404 = vmax.f32 %v3180, 0.0
        %v3405 = vmax.f32 %v3181, 0.0
        %v3406 = vmax.f32 %v3182, 0.0
        %v3407 = vmax.f32 %v3183, 0.0
        %v3408 = vmax.f32 %v3184, 0.0
        %v3409 = vmax.f32 %v3185, 0.0
        %v3410 = vmax.f32 %v3186, 0.0
        %v3411 = vmax.f32 %v3187, 0.0
        %v3412 = vmax.f32 %v3188, 0.0
        %v3413 = vmax.f32 %v3189, 0.0
        %v3414 = vmax.f32 %v3190, 0.0
        %v3415 = vmax.f32 %v3191, 0.0
        %v3416 = vmax.f32 %v3192, 0.0
        %v3417 = vmax.f32 %v3193, 0.0
        %v3418 = vmax.f32 %v3194, 0.0
        %v3419 = vmax.f32 %v3195, 0.0
        %v3420 = vmax.f32 %v3196, 0.0
        %v3421 = vmax.f32 %v3197, 0.0
        %v3422 = vmax.f32 %v3198, 0.0
        %v3423 = vmax.f32 %v3199, 0.0
        %v3424 = vmax.f32 %v3200, 0.0
        %v3425 = vmax.f32 %v3201, 0.0
        %v3426 = vmax.f32 %v3202, 0.0
        %v3427 = vmax.f32 %v3203, 0.0
        %v3428 = vmax.f32 %v3204, 0.0
        %v3429 = vmax.f32 %v3205, 0.0
        %v3430 = vmax.f32 %v3206, 0.0
        %v3431 = vmax.f32 %v3207, 0.0
        %v3432 = vmax.f32 %v3208, 0.0
        %v3433 = vmax.f32 %v3209, 0.0
        %v3434 = vmax.f32 %v3210, 0.0
        %v3435 = vmax.f32 %v3211, 0.0
        %v3436 = vmax.f32 %v3212, 0.0
        %v3437 = vmax.f32 %v3213, 0.0
        %v3438 = vmax.f32 %v3214, 0.0
        %v3439 = vmax.f32 %v3215, 0.0
        %v3440 = vmax.f32 %v3216, 0.0
        %v3441 = vmax.f32 %v3217, 0.0
        %v3442 = vmax.f32 %v3218, 0.0
        %v3443 = vmax.f32 %v3219, 0.0
        %v3444 = vmax.f32 %v3220, 0.0
        %v3445 = vmax.f32 %v3221, 0.0
        %v3446 = vmax.f32 %v3222, 0.0
        %v3447 = vmax.f32 %v3223, 0.0
        %v3448 = vmax.f32 %v3224, 0.0
        %v3449 = vmax.f32 %v3225, 0.0
        %v3450 = vmax.f32 %v3226, 0.0
        %v3451 = vmax.f32 %v3227, 0.0
        %v3452 = vmax.f32 %v3228, 0.0
        %v3453 = vmax.f32 %v3229, 0.0
        %v3454 = vmax.f32 %v3230, 0.0
        %v3455 = vmax.f32 %v3231, 0.0
        %v3456 = vmax.f32 %v3232, 0.0
        %v3457 = vmax.f32 %v3233, 0.0
        %v3458 = vmax.f32 %v3234, 0.0
        %v3459 = vmax.f32 %v3235, 0.0
        %v3460 = vmax.f32 %v3236, 0.0
        %v3461 = vmax.f32 %v3237, 0.0
        %v3462 = vmax.f32 %v3238, 0.0
        %v3463 = vmax.f32 %v3239, 0.0
        %v3464 = vmax.f32 %v3240, 0.0
        %v3465 = vmax.f32 %v3241, 0.0
        %v3466 = vmax.f32 %v3242, 0.0
        %v3467 = vmax.f32 %v3243, 0.0
        %v3468 = vmax.f32 %v3244, 0.0
        %v3469 = vmax.f32 %v3245, 0.0
        %v3470 = vmax.f32 %v3246, 0.0
        %v3471 = vmax.f32 %v3247, 0.0
        %v3472 = vmax.f32 %v3248, 0.0
        %v3473 = vmax.f32 %v3249, 0.0
        %v3474 = vmax.f32 %v3250, 0.0
        %v3475 = vmax.f32 %v3251, 0.0
        %v3476 = vmax.f32 %v3252, 0.0
        %v3477 = vmax.f32 %v3253, 0.0
        %v3478 = vmax.f32 %v3254, 0.0
        %v3479 = vmax.f32 %v3255, 0.0
        %v3480 = vmax.f32 %v3256, 0.0
        %v3481 = vmax.f32 %v3257, 0.0
        %v3482 = vmax.f32 %v3258, 0.0
        %v3483 = vmax.f32 %v3259, 0.0
        %v3484 = vmax.f32 %v3260, 0.0
        %v3485 = vmax.f32 %v3261, 0.0
        %v3486 = vmax.f32 %v3262, 0.0
        %v3487 = vmax.f32 %v3263, 0.0
        %v3488 = vmax.f32 %v3264, 0.0
        %v3489 = vmax.f32 %v3265, 0.0
        %v3490 = vmax.f32 %v3266, 0.0
        %v3491 = vmax.f32 %v3267, 0.0
        %v3492 = vmax.f32 %v3268, 0.0
        %v3493 = vmax.f32 %v3269, 0.0
        %v3494 = vmax.f32 %v3270, 0.0
        %v3495 = vmax.f32 %v3271, 0.0
        %v3496 = vmax.f32 %v3272, 0.0
        %v3497 = vmax.f32 %v3273, 0.0
        %v3498 = vmax.f32 %v3274, 0.0
        %v3499 = vmax.f32 %v3275, 0.0
        %v3500 = vmax.f32 %v3276, 0.0
        %v3501 = vmax.f32 %v3277, 0.0
        %v3502 = vmax.f32 %v3278, 0.0
        %v3503 = vmax.f32 %v3279, 0.0
        %v3504 = vmax.f32 %v3280, 0.0
        %v3505 = vmax.f32 %v3281, 0.0
        %v3506 = vmax.f32 %v3282, 0.0
        %v3507 = vmax.f32 %v3283, 0.0
        %v3508 = vmax.f32 %v3284, 0.0
        %v3509 = vmax.f32 %v3285, 0.0
        %v3510 = vmax.f32 %v3286, 0.0
        %v3511 = vmax.f32 %v3287, 0.0
        %v3512 = vmax.f32 %v3288, 0.0
        %v3513 = vmax.f32 %v3289, 0.0
        %v3514 = vmax.f32 %v3290, 0.0
        %v3515 = vmax.f32 %v3291, 0.0
        %v3516 = vmax.f32 %v3292, 0.0
        %v3517 = vmax.f32 %v3293, 0.0
        %v3518 = vmax.f32 %v3294, 0.0
        %v3519 = vmax.f32 %v3295, 0.0
        %v3520 = vmax.f32 %v3296, 0.0
        %v3521 = vmax.f32 %v3297, 0.0
        %v3522 = vmax.f32 %v3298, %v3299
        %v3523 = vmax.f32 %v3522, %v3300
        %v3524 = vmax.f32 %v3523, %v3301
        %v3525 = vrot.slane %v3524, 4
        %v3526 = vmax.f32 %v3524, %v3525
        %v3527 = vrot.slane %v3526, 2
        %v3528 = vmax.f32 %v3526, %v3527
        %v3529 = vrot.slane %v3528, 1
        %v3530 = vmax.f32 %v3528, %v3529
        %v3531 = vmax.f32 %v3302, %v3303
        %v3532 = vmax.f32 %v3531, %v3304
        %v3533 = vmax.f32 %v3532, %v3305
        %v3534 = vrot.slane %v3533, 4
        %v3535 = vmax.f32 %v3533, %v3534
        %v3536 = vrot.slane %v3535, 2
        %v3537 = vmax.f32 %v3535, %v3536
        %v3538 = vrot.slane %v3537, 1
        %v3539 = vmax.f32 %v3537, %v3538
        %v3540 = vmax.f32 %v3306, %v3307
        %v3541 = vmax.f32 %v3540, %v3308
        %v3542 = vmax.f32 %v3541, %v3309
        %v3543 = vrot.slane %v3542, 4
        %v3544 = vmax.f32 %v3542, %v3543
        %v3545 = vrot.slane %v3544, 2
        %v3546 = vmax.f32 %v3544, %v3545
        %v3547 = vrot.slane %v3546, 1
        %v3548 = vmax.f32 %v3546, %v3547
        %v3549 = vmax.f32 %v3310, %v3311
        %v3550 = vmax.f32 %v3549, %v3312
        %v3551 = vmax.f32 %v3550, %v3313
        %v3552 = vrot.slane %v3551, 4
        %v3553 = vmax.f32 %v3551, %v3552
        %v3554 = vrot.slane %v3553, 2
        %v3555 = vmax.f32 %v3553, %v3554
        %v3556 = vrot.slane %v3555, 1
        %v3557 = vmax.f32 %v3555, %v3556
        %v3558 = vmax.f32 %v3314, %v3315
        %v3559 = vmax.f32 %v3558, %v3316
        %v3560 = vmax.f32 %v3559, %v3317
        %v3561 = vrot.slane %v3560, 4
        %v3562 = vmax.f32 %v3560, %v3561
        %v3563 = vrot.slane %v3562, 2
        %v3564 = vmax.f32 %v3562, %v3563
        %v3565 = vrot.slane %v3564, 1
        %v3566 = vmax.f32 %v3564, %v3565
        %v3567 = vmax.f32 %v3318, %v3319
        %v3568 = vmax.f32 %v3567, %v3320
        %v3569 = vmax.f32 %v3568, %v3321
        %v3570 = vrot.slane %v3569, 4
        %v3571 = vmax.f32 %v3569, %v3570
        %v3572 = vrot.slane %v3571, 2
        %v3573 = vmax.f32 %v3571, %v3572
        %v3574 = vrot.slane %v3573, 1
        %v3575 = vmax.f32 %v3573, %v3574
        %v3576 = vmax.f32 %v3322, %v3323
        %v3577 = vmax.f32 %v3576, %v3324
        %v3578 = vmax.f32 %v3577, %v3325
        %v3579 = vrot.slane %v3578, 4
        %v3580 = vmax.f32 %v3578, %v3579
        %v3581 = vrot.slane %v3580, 2
        %v3582 = vmax.f32 %v3580, %v3581
        %v3583 = vrot.slane %v3582, 1
        %v3584 = vmax.f32 %v3582, %v3583
        %v3585 = vmax.f32 %v3326, %v3327
        %v3586 = vmax.f32 %v3585, %v3328
        %v3587 = vmax.f32 %v3586, %v3329
        %v3588 = vrot.slane %v3587, 4
        %v3589 = vmax.f32 %v3587, %v3588
        %v3590 = vrot.slane %v3589, 2
        %v3591 = vmax.f32 %v3589, %v3590
        %v3592 = vrot.slane %v3591, 1
        %v3593 = vmax.f32 %v3591, %v3592
        %v3594 = vmax.f32 %v3330, %v3331
        %v3595 = vmax.f32 %v3594, %v3332
        %v3596 = vmax.f32 %v3595, %v3333
        %v3597 = vrot.slane %v3596, 4
        %v3598 = vmax.f32 %v3596, %v3597
        %v3599 = vrot.slane %v3598, 2
        %v3600 = vmax.f32 %v3598, %v3599
        %v3601 = vrot.slane %v3600, 1
        %v3602 = vmax.f32 %v3600, %v3601
        %v3603 = vmax.f32 %v3334, %v3335
        %v3604 = vmax.f32 %v3603, %v3336
        %v3605 = vmax.f32 %v3604, %v3337
        %v3606 = vrot.slane %v3605, 4
        %v3607 = vmax.f32 %v3605, %v3606
        %v3608 = vrot.slane %v3607, 2
        %v3609 = vmax.f32 %v3607, %v3608
        %v3610 = vrot.slane %v3609, 1
        %v3611 = vmax.f32 %v3609, %v3610
        %v3612 = vmax.f32 %v3338, %v3339
        %v3613 = vmax.f32 %v3612, %v3340
        %v3614 = vmax.f32 %v3613, %v3341
        %v3615 = vrot.slane %v3614, 4
        %v3616 = vmax.f32 %v3614, %v3615
        %v3617 = vrot.slane %v3616, 2
        %v3618 = vmax.f32 %v3616, %v3617
        %v3619 = vrot.slane %v3618, 1
        %v3620 = vmax.f32 %v3618, %v3619
        %v3621 = vmax.f32 %v3342, %v3343
        %v3622 = vmax.f32 %v3621, %v3344
        %v3623 = vmax.f32 %v3622, %v3345
        %v3624 = vrot.slane %v3623, 4
        %v3625 = vmax.f32 %v3623, %v3624
        %v3626 = vrot.slane %v3625, 2
        %v3627 = vmax.f32 %v3625, %v3626
        %v3628 = vrot.slane %v3627, 1
        %v3629 = vmax.f32 %v3627, %v3628
        %v3630 = vmax.f32 %v3346, %v3347
        %v3631 = vmax.f32 %v3630, %v3348
        %v3632 = vmax.f32 %v3631, %v3349
        %v3633 = vrot.slane %v3632, 4
        %v3634 = vmax.f32 %v3632, %v3633
        %v3635 = vrot.slane %v3634, 2
        %v3636 = vmax.f32 %v3634, %v3635
        %v3637 = vrot.slane %v3636, 1
        %v3638 = vmax.f32 %v3636, %v3637
        %v3639 = vmax.f32 %v3350, %v3351
        %v3640 = vmax.f32 %v3639, %v3352
        %v3641 = vmax.f32 %v3640, %v3353
        %v3642 = vrot.slane %v3641, 4
        %v3643 = vmax.f32 %v3641, %v3642
        %v3644 = vrot.slane %v3643, 2
        %v3645 = vmax.f32 %v3643, %v3644
        %v3646 = vrot.slane %v3645, 1
        %v3647 = vmax.f32 %v3645, %v3646
        %v3648 = vmax.f32 %v3354, %v3355
        %v3649 = vmax.f32 %v3648, %v3356
        %v3650 = vmax.f32 %v3649, %v3357
        %v3651 = vrot.slane %v3650, 4
        %v3652 = vmax.f32 %v3650, %v3651
        %v3653 = vrot.slane %v3652, 2
        %v3654 = vmax.f32 %v3652, %v3653
        %v3655 = vrot.slane %v3654, 1
        %v3656 = vmax.f32 %v3654, %v3655
        %v3657 = vmax.f32 %v3358, %v3359
        %v3658 = vmax.f32 %v3657, %v3360
        %v3659 = vmax.f32 %v3658, %v3361
        %v3660 = vrot.slane %v3659, 4
        %v3661 = vmax.f32 %v3659, %v3660
        %v3662 = vrot.slane %v3661, 2
        %v3663 = vmax.f32 %v3661, %v3662
        %v3664 = vrot.slane %v3663, 1
        %v3665 = vmax.f32 %v3663, %v3664
        %v3666 = vmax.f32 %v3362, %v3363
        %v3667 = vmax.f32 %v3666, %v3364
        %v3668 = vmax.f32 %v3667, %v3365
        %v3669 = vrot.slane %v3668, 4
        %v3670 = vmax.f32 %v3668, %v3669
        %v3671 = vrot.slane %v3670, 2
        %v3672 = vmax.f32 %v3670, %v3671
        %v3673 = vrot.slane %v3672, 1
        %v3674 = vmax.f32 %v3672, %v3673
        %v3675 = vmax.f32 %v3366, %v3367
        %v3676 = vmax.f32 %v3675, %v3368
        %v3677 = vmax.f32 %v3676, %v3369
        %v3678 = vrot.slane %v3677, 4
        %v3679 = vmax.f32 %v3677, %v3678
        %v3680 = vrot.slane %v3679, 2
        %v3681 = vmax.f32 %v3679, %v3680
        %v3682 = vrot.slane %v3681, 1
        %v3683 = vmax.f32 %v3681, %v3682
        %v3684 = vmax.f32 %v3370, %v3371
        %v3685 = vmax.f32 %v3684, %v3372
        %v3686 = vmax.f32 %v3685, %v3373
        %v3687 = vrot.slane %v3686, 4
        %v3688 = vmax.f32 %v3686, %v3687
        %v3689 = vrot.slane %v3688, 2
        %v3690 = vmax.f32 %v3688, %v3689
        %v3691 = vrot.slane %v3690, 1
        %v3692 = vmax.f32 %v3690, %v3691
        %v3693 = vmax.f32 %v3374, %v3375
        %v3694 = vmax.f32 %v3693, %v3376
        %v3695 = vmax.f32 %v3694, %v3377
        %v3696 = vrot.slane %v3695, 4
        %v3697 = vmax.f32 %v3695, %v3696
        %v3698 = vrot.slane %v3697, 2
        %v3699 = vmax.f32 %v3697, %v3698
        %v3700 = vrot.slane %v3699, 1
        %v3701 = vmax.f32 %v3699, %v3700
        %v3702 = vmax.f32 %v3378, %v3379
        %v3703 = vmax.f32 %v3702, %v3380
        %v3704 = vmax.f32 %v3703, %v3381
        %v3705 = vrot.slane %v3704, 4
        %v3706 = vmax.f32 %v3704, %v3705
        %v3707 = vrot.slane %v3706, 2
        %v3708 = vmax.f32 %v3706, %v3707
        %v3709 = vrot.slane %v3708, 1
        %v3710 = vmax.f32 %v3708, %v3709
        %v3711 = vmax.f32 %v3382, %v3383
        %v3712 = vmax.f32 %v3711, %v3384
        %v3713 = vmax.f32 %v3712, %v3385
        %v3714 = vrot.slane %v3713, 4
        %v3715 = vmax.f32 %v3713, %v3714
        %v3716 = vrot.slane %v3715, 2
        %v3717 = vmax.f32 %v3715, %v3716
        %v3718 = vrot.slane %v3717, 1
        %v3719 = vmax.f32 %v3717, %v3718
        %v3720 = vmax.f32 %v3386, %v3387
        %v3721 = vmax.f32 %v3720, %v3388
        %v3722 = vmax.f32 %v3721, %v3389
        %v3723 = vrot.slane %v3722, 4
        %v3724 = vmax.f32 %v3722, %v3723
        %v3725 = vrot.slane %v3724, 2
        %v3726 = vmax.f32 %v3724, %v3725
        %v3727 = vrot.slane %v3726, 1
        %v3728 = vmax.f32 %v3726, %v3727
        %v3729 = vmax.f32 %v3390, %v3391
        %v3730 = vmax.f32 %v3729, %v3392
        %v3731 = vmax.f32 %v3730, %v3393
        %v3732 = vrot.slane %v3731, 4
        %v3733 = vmax.f32 %v3731, %v3732
        %v3734 = vrot.slane %v3733, 2
        %v3735 = vmax.f32 %v3733, %v3734
        %v3736 = vrot.slane %v3735, 1
        %v3737 = vmax.f32 %v3735, %v3736
        %v3738 = vmax.f32 %v3394, %v3395
        %v3739 = vmax.f32 %v3738, %v3396
        %v3740 = vmax.f32 %v3739, %v3397
        %v3741 = vrot.slane %v3740, 4
        %v3742 = vmax.f32 %v3740, %v3741
        %v3743 = vrot.slane %v3742, 2
        %v3744 = vmax.f32 %v3742, %v3743
        %v3745 = vrot.slane %v3744, 1
        %v3746 = vmax.f32 %v3744, %v3745
        %v3747 = vmax.f32 %v3398, %v3399
        %v3748 = vmax.f32 %v3747, %v3400
        %v3749 = vmax.f32 %v3748, %v3401
        %v3750 = vrot.slane %v3749, 4
        %v3751 = vmax.f32 %v3749, %v3750
        %v3752 = vrot.slane %v3751, 2
        %v3753 = vmax.f32 %v3751, %v3752
        %v3754 = vrot.slane %v3753, 1
        %v3755 = vmax.f32 %v3753, %v3754
        %v3756 = vmax.f32 %v3402, %v3403
        %v3757 = vmax.f32 %v3756, %v3404
        %v3758 = vmax.f32 %v3757, %v3405
        %v3759 = vrot.slane %v3758, 4
        %v3760 = vmax.f32 %v3758, %v3759
        %v3761 = vrot.slane %v3760, 2
        %v3762 = vmax.f32 %v3760, %v3761
        %v3763 = vrot.slane %v3762, 1
        %v3764 = vmax.f32 %v3762, %v3763
        %v3765 = vmax.f32 %v3406, %v3407
        %v3766 = vmax.f32 %v3765, %v3408
        %v3767 = vmax.f32 %v3766, %v3409
        %v3768 = vrot.slane %v3767, 4
        %v3769 = vmax.f32 %v3767, %v3768
        %v3770 = vrot.slane %v3769, 2
        %v3771 = vmax.f32 %v3769, %v3770
        %v3772 = vrot.slane %v3771, 1
        %v3773 = vmax.f32 %v3771, %v3772
        %v3774 = vmax.f32 %v3410, %v3411
        %v3775 = vmax.f32 %v3774, %v3412
        %v3776 = vmax.f32 %v3775, %v3413
        %v3777 = vrot.slane %v3776, 4
        %v3778 = vmax.f32 %v3776, %v3777
        %v3779 = vrot.slane %v3778, 2
        %v3780 = vmax.f32 %v3778, %v3779
        %v3781 = vrot.slane %v3780, 1
        %v3782 = vmax.f32 %v3780, %v3781
        %v3783 = vmax.f32 %v3414, %v3415
        %v3784 = vmax.f32 %v3783, %v3416
        %v3785 = vmax.f32 %v3784, %v3417
        %v3786 = vrot.slane %v3785, 4
        %v3787 = vmax.f32 %v3785, %v3786
        %v3788 = vrot.slane %v3787, 2
        %v3789 = vmax.f32 %v3787, %v3788
        %v3790 = vrot.slane %v3789, 1
        %v3791 = vmax.f32 %v3789, %v3790
        %v3792 = vmax.f32 %v3418, %v3419
        %v3793 = vmax.f32 %v3792, %v3420
        %v3794 = vmax.f32 %v3793, %v3421
        %v3795 = vrot.slane %v3794, 4
        %v3796 = vmax.f32 %v3794, %v3795
        %v3797 = vrot.slane %v3796, 2
        %v3798 = vmax.f32 %v3796, %v3797
        %v3799 = vrot.slane %v3798, 1
        %v3800 = vmax.f32 %v3798, %v3799
        %v3801 = vmax.f32 %v3422, %v3423
        %v3802 = vmax.f32 %v3801, %v3424
        %v3803 = vmax.f32 %v3802, %v3425
        %v3804 = vrot.slane %v3803, 4
        %v3805 = vmax.f32 %v3803, %v3804
        %v3806 = vrot.slane %v3805, 2
        %v3807 = vmax.f32 %v3805, %v3806
        %v3808 = vrot.slane %v3807, 1
        %v3809 = vmax.f32 %v3807, %v3808
        %v3810 = vmax.f32 %v3426, %v3427
        %v3811 = vmax.f32 %v3810, %v3428
        %v3812 = vmax.f32 %v3811, %v3429
        %v3813 = vrot.slane %v3812, 4
        %v3814 = vmax.f32 %v3812, %v3813
        %v3815 = vrot.slane %v3814, 2
        %v3816 = vmax.f32 %v3814, %v3815
        %v3817 = vrot.slane %v3816, 1
        %v3818 = vmax.f32 %v3816, %v3817
        %v3819 = vmax.f32 %v3430, %v3431
        %v3820 = vmax.f32 %v3819, %v3432
        %v3821 = vmax.f32 %v3820, %v3433
        %v3822 = vrot.slane %v3821, 4
        %v3823 = vmax.f32 %v3821, %v3822
        %v3824 = vrot.slane %v3823, 2
        %v3825 = vmax.f32 %v3823, %v3824
        %v3826 = vrot.slane %v3825, 1
        %v3827 = vmax.f32 %v3825, %v3826
        %v3828 = vmax.f32 %v3434, %v3435
        %v3829 = vmax.f32 %v3828, %v3436
        %v3830 = vmax.f32 %v3829, %v3437
        %v3831 = vrot.slane %v3830, 4
        %v3832 = vmax.f32 %v3830, %v3831
        %v3833 = vrot.slane %v3832, 2
        %v3834 = vmax.f32 %v3832, %v3833
        %v3835 = vrot.slane %v3834, 1
        %v3836 = vmax.f32 %v3834, %v3835
        %v3837 = vmax.f32 %v3438, %v3439
        %v3838 = vmax.f32 %v3837, %v3440
        %v3839 = vmax.f32 %v3838, %v3441
        %v3840 = vrot.slane %v3839, 4
        %v3841 = vmax.f32 %v3839, %v3840
        %v3842 = vrot.slane %v3841, 2
        %v3843 = vmax.f32 %v3841, %v3842
        %v3844 = vrot.slane %v3843, 1
        %v3845 = vmax.f32 %v3843, %v3844
        %v3846 = vmax.f32 %v3442, %v3443
        %v3847 = vmax.f32 %v3846, %v3444
        %v3848 = vmax.f32 %v3847, %v3445
        %v3849 = vrot.slane %v3848, 4
        %v3850 = vmax.f32 %v3848, %v3849
        %v3851 = vrot.slane %v3850, 2
        %v3852 = vmax.f32 %v3850, %v3851
        %v3853 = vrot.slane %v3852, 1
        %v3854 = vmax.f32 %v3852, %v3853
        %v3855 = vmax.f32 %v3446, %v3447
        %v3856 = vmax.f32 %v3855, %v3448
        %v3857 = vmax.f32 %v3856, %v3449
        %v3858 = vrot.slane %v3857, 4
        %v3859 = vmax.f32 %v3857, %v3858
        %v3860 = vrot.slane %v3859, 2
        %v3861 = vmax.f32 %v3859, %v3860
        %v3862 = vrot.slane %v3861, 1
        %v3863 = vmax.f32 %v3861, %v3862
        %v3864 = vmax.f32 %v3450, %v3451
        %v3865 = vmax.f32 %v3864, %v3452
        %v3866 = vmax.f32 %v3865, %v3453
        %v3867 = vrot.slane %v3866, 4
        %v3868 = vmax.f32 %v3866, %v3867
        %v3869 = vrot.slane %v3868, 2
        %v3870 = vmax.f32 %v3868, %v3869
        %v3871 = vrot.slane %v3870, 1
        %v3872 = vmax.f32 %v3870, %v3871
        %v3873 = vmax.f32 %v3454, %v3455
        %v3874 = vmax.f32 %v3873, %v3456
        %v3875 = vmax.f32 %v3874, %v3457
        %v3876 = vrot.slane %v3875, 4
        %v3877 = vmax.f32 %v3875, %v3876
        %v3878 = vrot.slane %v3877, 2
        %v3879 = vmax.f32 %v3877, %v3878
        %v3880 = vrot.slane %v3879, 1
        %v3881 = vmax.f32 %v3879, %v3880
        %v3882 = vmax.f32 %v3458, %v3459
        %v3883 = vmax.f32 %v3882, %v3460
        %v3884 = vmax.f32 %v3883, %v3461
        %v3885 = vrot.slane %v3884, 4
        %v3886 = vmax.f32 %v3884, %v3885
        %v3887 = vrot.slane %v3886, 2
        %v3888 = vmax.f32 %v3886, %v3887
        %v3889 = vrot.slane %v3888, 1
        %v3890 = vmax.f32 %v3888, %v3889
        %v3891 = vmax.f32 %v3462, %v3463
        %v3892 = vmax.f32 %v3891, %v3464
        %v3893 = vmax.f32 %v3892, %v3465
        %v3894 = vrot.slane %v3893, 4
        %v3895 = vmax.f32 %v3893, %v3894
        %v3896 = vrot.slane %v3895, 2
        %v3897 = vmax.f32 %v3895, %v3896
        %v3898 = vrot.slane %v3897, 1
        %v3899 = vmax.f32 %v3897, %v3898
        %v3900 = vmax.f32 %v3466, %v3467
        %v3901 = vmax.f32 %v3900, %v3468
        %v3902 = vmax.f32 %v3901, %v3469
        %v3903 = vrot.slane %v3902, 4
        %v3904 = vmax.f32 %v3902, %v3903
        %v3905 = vrot.slane %v3904, 2
        %v3906 = vmax.f32 %v3904, %v3905
        %v3907 = vrot.slane %v3906, 1
        %v3908 = vmax.f32 %v3906, %v3907
        %v3909 = vmax.f32 %v3470, %v3471
        %v3910 = vmax.f32 %v3909, %v3472
        %v3911 = vmax.f32 %v3910, %v3473
        %v3912 = vrot.slane %v3911, 4
        %v3913 = vmax.f32 %v3911, %v3912
        %v3914 = vrot.slane %v3913, 2
        %v3915 = vmax.f32 %v3913, %v3914
        %v3916 = vrot.slane %v3915, 1
        %v3917 = vmax.f32 %v3915, %v3916
        %v3918 = vmax.f32 %v3474, %v3475
        %v3919 = vmax.f32 %v3918, %v3476
        %v3920 = vmax.f32 %v3919, %v3477
        %v3921 = vrot.slane %v3920, 4
        %v3922 = vmax.f32 %v3920, %v3921
        %v3923 = vrot.slane %v3922, 2
        %v3924 = vmax.f32 %v3922, %v3923
        %v3925 = vrot.slane %v3924, 1
        %v3926 = vmax.f32 %v3924, %v3925
        %v3927 = vmax.f32 %v3478, %v3479
        %v3928 = vmax.f32 %v3927, %v3480
        %v3929 = vmax.f32 %v3928, %v3481
        %v3930 = vrot.slane %v3929, 4
        %v3931 = vmax.f32 %v3929, %v3930
        %v3932 = vrot.slane %v3931, 2
        %v3933 = vmax.f32 %v3931, %v3932
        %v3934 = vrot.slane %v3933, 1
        %v3935 = vmax.f32 %v3933, %v3934
        %v3936 = vmax.f32 %v3482, %v3483
        %v3937 = vmax.f32 %v3936, %v3484
        %v3938 = vmax.f32 %v3937, %v3485
        %v3939 = vrot.slane %v3938, 4
        %v3940 = vmax.f32 %v3938, %v3939
        %v3941 = vrot.slane %v3940, 2
        %v3942 = vmax.f32 %v3940, %v3941
        %v3943 = vrot.slane %v3942, 1
        %v3944 = vmax.f32 %v3942, %v3943
        %v3945 = vmax.f32 %v3486, %v3487
        %v3946 = vmax.f32 %v3945, %v3488
        %v3947 = vmax.f32 %v3946, %v3489
        %v3948 = vrot.slane %v3947, 4
        %v3949 = vmax.f32 %v3947, %v3948
        %v3950 = vrot.slane %v3949, 2
        %v3951 = vmax.f32 %v3949, %v3950
        %v3952 = vrot.slane %v3951, 1
        %v3953 = vmax.f32 %v3951, %v3952
        %v3954 = vmax.f32 %v3490, %v3491
        %v3955 = vmax.f32 %v3954, %v3492
        %v3956 = vmax.f32 %v3955, %v3493
        %v3957 = vrot.slane %v3956, 4
        %v3958 = vmax.f32 %v3956, %v3957
        %v3959 = vrot.slane %v3958, 2
        %v3960 = vmax.f32 %v3958, %v3959
        %v3961 = vrot.slane %v3960, 1
        %v3962 = vmax.f32 %v3960, %v3961
        %v3963 = vmax.f32 %v3494, %v3495
        %v3964 = vmax.f32 %v3963, %v3496
        %v3965 = vmax.f32 %v3964, %v3497
        %v3966 = vrot.slane %v3965, 4
        %v3967 = vmax.f32 %v3965, %v3966
        %v3968 = vrot.slane %v3967, 2
        %v3969 = vmax.f32 %v3967, %v3968
        %v3970 = vrot.slane %v3969, 1
        %v3971 = vmax.f32 %v3969, %v3970
        %v3972 = vmax.f32 %v3498, %v3499
        %v3973 = vmax.f32 %v3972, %v3500
        %v3974 = vmax.f32 %v3973, %v3501
        %v3975 = vrot.slane %v3974, 4
        %v3976 = vmax.f32 %v3974, %v3975
        %v3977 = vrot.slane %v3976, 2
        %v3978 = vmax.f32 %v3976, %v3977
        %v3979 = vrot.slane %v3978, 1
        %v3980 = vmax.f32 %v3978, %v3979
        %v3981 = vmax.f32 %v3502, %v3503
        %v3982 = vmax.f32 %v3981, %v3504
        %v3983 = vmax.f32 %v3982, %v3505
        %v3984 = vrot.slane %v3983, 4
        %v3985 = vmax.f32 %v3983, %v3984
        %v3986 = vrot.slane %v3985, 2
        %v3987 = vmax.f32 %v3985, %v3986
        %v3988 = vrot.slane %v3987, 1
        %v3989 = vmax.f32 %v3987, %v3988
        %v3990 = vmax.f32 %v3506, %v3507
        %v3991 = vmax.f32 %v3990, %v3508
        %v3992 = vmax.f32 %v3991, %v3509
        %v3993 = vrot.slane %v3992, 4
        %v3994 = vmax.f32 %v3992, %v3993
        %v3995 = vrot.slane %v3994, 2
        %v3996 = vmax.f32 %v3994, %v3995
        %v3997 = vrot.slane %v3996, 1
        %v3998 = vmax.f32 %v3996, %v3997
        %v3999 = vmax.f32 %v3510, %v3511
        %v4000 = vmax.f32 %v3999, %v3512
        %v4001 = vmax.f32 %v4000, %v3513
        %v4002 = vrot.slane %v4001, 4
        %v4003 = vmax.f32 %v4001, %v4002
        %v4004 = vrot.slane %v4003, 2
        %v4005 = vmax.f32 %v4003, %v4004
        %v4006 = vrot.slane %v4005, 1
        %v4007 = vmax.f32 %v4005, %v4006
        %v4008 = vmax.f32 %v3514, %v3515
        %v4009 = vmax.f32 %v4008, %v3516
        %v4010 = vmax.f32 %v4009, %v3517
        %v4011 = vrot.slane %v4010, 4
        %v4012 = vmax.f32 %v4010, %v4011
        %v4013 = vrot.slane %v4012, 2
        %v4014 = vmax.f32 %v4012, %v4013
        %v4015 = vrot.slane %v4014, 1
        %v4016 = vmax.f32 %v4014, %v4015
        %v4017 = vmax.f32 %v3518, %v3519
        %v4018 = vmax.f32 %v4017, %v3520
        %v4019 = vmax.f32 %v4018, %v3521
        %v4020 = vrot.slane %v4019, 4
        %v4021 = vmax.f32 %v4019, %v4020
        %v4022 = vrot.slane %v4021, 2
        %v4023 = vmax.f32 %v4021, %v4022
        %v4024 = vrot.slane %v4023, 1
        %v4025 = vmax.f32 %v4023, %v4024
        %vm4082 = vcmask 1041409
        %v4083 = vsel %vm4082, %v3539, %v3530
        %vm4084 = vcmask 1042434
        %v4085 = vsel %vm4084, %v3548, %v4083
        %vm4086 = vcmask 1043459
        %v4087 = vsel %vm4086, %v3557, %v4085
        %vm4088 = vcmask 1044484
        %v4089 = vsel %vm4088, %v3566, %v4087
        %vm4090 = vcmask 1045509
        %v4091 = vsel %vm4090, %v3575, %v4089
        %vm4092 = vcmask 1046534
        %v4093 = vsel %vm4092, %v3584, %v4091
        %vm4094 = vcmask 1047559
        %v4095 = vsel %vm4094, %v3593, %v4093
        %v4096 = vsel %vm4082, %v3611, %v3602
        %v4097 = vsel %vm4084, %v3620, %v4096
        %v4098 = vsel %vm4086, %v3629, %v4097
        %v4099 = vsel %vm4088, %v3638, %v4098
        %v4100 = vsel %vm4090, %v3647, %v4099
        %v4101 = vsel %vm4092, %v3656, %v4100
        %v4102 = vsel %vm4094, %v3665, %v4101
        %v4103 = vsel %vm4082, %v3683, %v3674
        %v4104 = vsel %vm4084, %v3692, %v4103
        %v4105 = vsel %vm4086, %v3701, %v4104
        %v4106 = vsel %vm4088, %v3710, %v4105
        %v4107 = vsel %vm4090, %v3719, %v4106
        %v4108 = vsel %vm4092, %v3728, %v4107
        %v4109 = vsel %vm4094, %v3737, %v4108
        %v4110 = vsel %vm4082, %v3755, %v3746
        %v4111 = vsel %vm4084, %v3764, %v4110
        %v4112 = vsel %vm4086, %v3773, %v4111
        %v4113 = vsel %vm4088, %v3782, %v4112
        %v4114 = vsel %vm4090, %v3791, %v4113
        %v4115 = vsel %vm4092, %v3800, %v4114
        %v4116 = vsel %vm4094, %v3809, %v4115
        %v4117 = vsel %vm4082, %v3827, %v3818
        %v4118 = vsel %vm4084, %v3836, %v4117
        %v4119 = vsel %vm4086, %v3845, %v4118
        %v4120 = vsel %vm4088, %v3854, %v4119
        %v4121 = vsel %vm4090, %v3863, %v4120
        %v4122 = vsel %vm4092, %v3872, %v4121
        %v4123 = vsel %vm4094, %v3881, %v4122
        %v4124 = vsel %vm4082, %v3899, %v3890
        %v4125 = vsel %vm4084, %v3908, %v4124
        %v4126 = vsel %vm4086, %v3917, %v4125
        %v4127 = vsel %vm4088, %v3926, %v4126
        %v4128 = vsel %vm4090, %v3935, %v4127
        %v4129 = vsel %vm4092, %v3944, %v4128
        %v4130 = vsel %vm4094, %v3953, %v4129
        %v4131 = vsel %vm4082, %v3971, %v3962
        %v4132 = vsel %vm4084, %v3980, %v4131
        %v4133 = vsel %vm4086, %v3989, %v4132
        %v4134 = vsel %vm4088, %v3998, %v4133
        %v4135 = vsel %vm4090, %v4007, %v4134
        %v4136 = vsel %vm4092, %v4016, %v4135
        %v4137 = vsel %vm4094, %v4025, %v4136
        %4145 = vrot.lane.b32.xlu0 %v4095, 64
        %v4146 = vpop.permute.xlu0 %4145
        %4147 = vrot.lane.b32.xlu0 %v4102, 64
        %v4148 = vpop.permute.xlu0 %4147
        %4149 = vrot.lane.b32.xlu0 %v4109, 64
        %v4150 = vpop.permute.xlu0 %4149
        %4151 = vrot.lane.b32.xlu0 %v4116, 64
        %v4152 = vpop.permute.xlu0 %4151
        %4153 = vrot.lane.b32.xlu0 %v4123, 64
        %v4154 = vpop.permute.xlu0 %4153
        %4155 = vrot.lane.b32.xlu0 %v4130, 64
        %v4156 = vpop.permute.xlu0 %4155
        %4157 = vrot.lane.b32.xlu0 %v4137, 64
        %v4158 = vpop.permute.xlu0 %4157
        %v4166 = vrot.slane %v4146, 1
        %v4167 = vrot.slane %v4146, 2
        %v4168 = vrot.slane %v4146, 3
        %v4169 = vrot.slane %v4146, 4
        %v4170 = vrot.slane %v4146, 5
        %v4171 = vrot.slane %v4146, 6
        %v4172 = vrot.slane %v4146, 7
        %v4173 = vrot.slane %v4148, 1
        %v4174 = vrot.slane %v4148, 2
        %v4175 = vrot.slane %v4148, 3
        %v4176 = vrot.slane %v4148, 4
        %v4177 = vrot.slane %v4148, 5
        %v4178 = vrot.slane %v4148, 6
        %v4179 = vrot.slane %v4148, 7
        %v4180 = vrot.slane %v4150, 1
        %v4181 = vrot.slane %v4150, 2
        %v4182 = vrot.slane %v4150, 3
        %v4183 = vrot.slane %v4150, 4
        %v4184 = vrot.slane %v4150, 5
        %v4185 = vrot.slane %v4150, 6
        %v4186 = vrot.slane %v4150, 7
        %v4187 = vrot.slane %v4152, 1
        %v4188 = vrot.slane %v4152, 2
        %v4189 = vrot.slane %v4152, 3
        %v4190 = vrot.slane %v4152, 4
        %v4191 = vrot.slane %v4152, 5
        %v4192 = vrot.slane %v4152, 6
        %v4193 = vrot.slane %v4152, 7
        %v4194 = vrot.slane %v4154, 1
        %v4195 = vrot.slane %v4154, 2
        %v4196 = vrot.slane %v4154, 3
        %v4197 = vrot.slane %v4154, 4
        %v4198 = vrot.slane %v4154, 5
        %v4199 = vrot.slane %v4154, 6
        %v4200 = vrot.slane %v4154, 7
        %v4201 = vrot.slane %v4156, 1
        %v4202 = vrot.slane %v4156, 2
        %v4203 = vrot.slane %v4156, 3
        %v4204 = vrot.slane %v4156, 4
        %v4205 = vrot.slane %v4156, 5
        %v4206 = vrot.slane %v4156, 6
        %v4207 = vrot.slane %v4156, 7
        %v4208 = vrot.slane %v4158, 1
        %v4209 = vrot.slane %v4158, 2
        %v4210 = vrot.slane %v4158, 3
        %v4211 = vrot.slane %v4158, 4
        %v4212 = vrot.slane %v4158, 5
        %v4213 = vrot.slane %v4158, 6
        %v4214 = vrot.slane %v4158, 7
        %v4271 = vmax.f32 %v3530, %v4146
        %v4272 = vmax.f32 %v3539, %v4166
        %v4273 = vmax.f32 %v3548, %v4167
        %v4274 = vmax.f32 %v3557, %v4168
        %v4275 = vmax.f32 %v3566, %v4169
        %v4276 = vmax.f32 %v3575, %v4170
        %v4277 = vmax.f32 %v3584, %v4171
        %v4278 = vmax.f32 %v3593, %v4172
        %v4279 = vmax.f32 %v3602, %v4148
        %v4280 = vmax.f32 %v3611, %v4173
        %v4281 = vmax.f32 %v3620, %v4174
        %v4282 = vmax.f32 %v3629, %v4175
        %v4283 = vmax.f32 %v3638, %v4176
        %v4284 = vmax.f32 %v3647, %v4177
        %v4285 = vmax.f32 %v3656, %v4178
        %v4286 = vmax.f32 %v3665, %v4179
        %v4287 = vmax.f32 %v3674, %v4150
        %v4288 = vmax.f32 %v3683, %v4180
        %v4289 = vmax.f32 %v3692, %v4181
        %v4290 = vmax.f32 %v3701, %v4182
        %v4291 = vmax.f32 %v3710, %v4183
        %v4292 = vmax.f32 %v3719, %v4184
        %v4293 = vmax.f32 %v3728, %v4185
        %v4294 = vmax.f32 %v3737, %v4186
        %v4295 = vmax.f32 %v3746, %v4152
        %v4296 = vmax.f32 %v3755, %v4187
        %v4297 = vmax.f32 %v3764, %v4188
        %v4298 = vmax.f32 %v3773, %v4189
        %v4299 = vmax.f32 %v3782, %v4190
        %v4300 = vmax.f32 %v3791, %v4191
        %v4301 = vmax.f32 %v3800, %v4192
        %v4302 = vmax.f32 %v3809, %v4193
        %v4303 = vmax.f32 %v3818, %v4154
        %v4304 = vmax.f32 %v3827, %v4194
        %v4305 = vmax.f32 %v3836, %v4195
        %v4306 = vmax.f32 %v3845, %v4196
        %v4307 = vmax.f32 %v3854, %v4197
        %v4308 = vmax.f32 %v3863, %v4198
        %v4309 = vmax.f32 %v3872, %v4199
        %v4310 = vmax.f32 %v3881, %v4200
        %v4311 = vmax.f32 %v3890, %v4156
        %v4312 = vmax.f32 %v3899, %v4201
        %v4313 = vmax.f32 %v3908, %v4202
        %v4314 = vmax.f32 %v3917, %v4203
        %v4315 = vmax.f32 %v3926, %v4204
        %v4316 = vmax.f32 %v3935, %v4205
        %v4317 = vmax.f32 %v3944, %v4206
        %v4318 = vmax.f32 %v3953, %v4207
        %v4319 = vmax.f32 %v3962, %v4158
        %v4320 = vmax.f32 %v3971, %v4208
        %v4321 = vmax.f32 %v3980, %v4209
        %v4322 = vmax.f32 %v3989, %v4210
        %v4323 = vmax.f32 %v3998, %v4211
        %v4324 = vmax.f32 %v4007, %v4212
        %v4325 = vmax.f32 %v4016, %v4213
        %v4326 = vmax.f32 %v4025, %v4214
        %v4327 = vlaneseq
        %v4328 = vshrl.u32 %v4327, 7
        %v4329 = vsub.s32 0, %v4328
        %v4330 = vrot.slane %v4271, %v4329
        %v4331 = vlaneseq
        %v4332 = vshrl.u32 %v4331, 7
        %v4333 = vsub.s32 0, %v4332
        %v4334 = vrot.slane %v4272, %v4333
        %v4335 = vlaneseq
        %v4336 = vshrl.u32 %v4335, 7
        %v4337 = vsub.s32 0, %v4336
        %v4338 = vrot.slane %v4273, %v4337
        %v4339 = vlaneseq
        %v4340 = vshrl.u32 %v4339, 7
        %v4341 = vsub.s32 0, %v4340
        %v4342 = vrot.slane %v4274, %v4341
        %v4343 = vlaneseq
        %v4344 = vshrl.u32 %v4343, 7
        %v4345 = vsub.s32 0, %v4344
        %v4346 = vrot.slane %v4275, %v4345
        %v4347 = vlaneseq
        %v4348 = vshrl.u32 %v4347, 7
        %v4349 = vsub.s32 0, %v4348
        %v4350 = vrot.slane %v4276, %v4349
        %v4351 = vlaneseq
        %v4352 = vshrl.u32 %v4351, 7
        %v4353 = vsub.s32 0, %v4352
        %v4354 = vrot.slane %v4277, %v4353
        %v4355 = vlaneseq
        %v4356 = vshrl.u32 %v4355, 7
        %v4357 = vsub.s32 0, %v4356
        %v4358 = vrot.slane %v4278, %v4357
        %v4359 = vlaneseq
        %v4360 = vshrl.u32 %v4359, 7
        %v4361 = vsub.s32 0, %v4360
        %v4362 = vrot.slane %v4279, %v4361
        %v4363 = vlaneseq
        %v4364 = vshrl.u32 %v4363, 7
        %v4365 = vsub.s32 0, %v4364
        %v4366 = vrot.slane %v4280, %v4365
        %v4367 = vlaneseq
        %v4368 = vshrl.u32 %v4367, 7
        %v4369 = vsub.s32 0, %v4368
        %v4370 = vrot.slane %v4281, %v4369
        %v4371 = vlaneseq
        %v4372 = vshrl.u32 %v4371, 7
        %v4373 = vsub.s32 0, %v4372
        %v4374 = vrot.slane %v4282, %v4373
        %v4375 = vlaneseq
        %v4376 = vshrl.u32 %v4375, 7
        %v4377 = vsub.s32 0, %v4376
        %v4378 = vrot.slane %v4283, %v4377
        %v4379 = vlaneseq
        %v4380 = vshrl.u32 %v4379, 7
        %v4381 = vsub.s32 0, %v4380
        %v4382 = vrot.slane %v4284, %v4381
        %v4383 = vlaneseq
        %v4384 = vshrl.u32 %v4383, 7
        %v4385 = vsub.s32 0, %v4384
        %v4386 = vrot.slane %v4285, %v4385
        %v4387 = vlaneseq
        %v4388 = vshrl.u32 %v4387, 7
        %v4389 = vsub.s32 0, %v4388
        %v4390 = vrot.slane %v4286, %v4389
        %v4391 = vlaneseq
        %v4392 = vshrl.u32 %v4391, 7
        %v4393 = vsub.s32 0, %v4392
        %v4394 = vrot.slane %v4287, %v4393
        %v4395 = vlaneseq
        %v4396 = vshrl.u32 %v4395, 7
        %v4397 = vsub.s32 0, %v4396
        %v4398 = vrot.slane %v4288, %v4397
        %v4399 = vlaneseq
        %v4400 = vshrl.u32 %v4399, 7
        %v4401 = vsub.s32 0, %v4400
        %v4402 = vrot.slane %v4289, %v4401
        %v4403 = vlaneseq
        %v4404 = vshrl.u32 %v4403, 7
        %v4405 = vsub.s32 0, %v4404
        %v4406 = vrot.slane %v4290, %v4405
        %v4407 = vlaneseq
        %v4408 = vshrl.u32 %v4407, 7
        %v4409 = vsub.s32 0, %v4408
        %v4410 = vrot.slane %v4291, %v4409
        %v4411 = vlaneseq
        %v4412 = vshrl.u32 %v4411, 7
        %v4413 = vsub.s32 0, %v4412
        %v4414 = vrot.slane %v4292, %v4413
        %v4415 = vlaneseq
        %v4416 = vshrl.u32 %v4415, 7
        %v4417 = vsub.s32 0, %v4416
        %v4418 = vrot.slane %v4293, %v4417
        %v4419 = vlaneseq
        %v4420 = vshrl.u32 %v4419, 7
        %v4421 = vsub.s32 0, %v4420
        %v4422 = vrot.slane %v4294, %v4421
        %v4423 = vlaneseq
        %v4424 = vshrl.u32 %v4423, 7
        %v4425 = vsub.s32 0, %v4424
        %v4426 = vrot.slane %v4295, %v4425
        %v4427 = vlaneseq
        %v4428 = vshrl.u32 %v4427, 7
        %v4429 = vsub.s32 0, %v4428
        %v4430 = vrot.slane %v4296, %v4429
        %v4431 = vlaneseq
        %v4432 = vshrl.u32 %v4431, 7
        %v4433 = vsub.s32 0, %v4432
        %v4434 = vrot.slane %v4297, %v4433
        %v4435 = vlaneseq
        %v4436 = vshrl.u32 %v4435, 7
        %v4437 = vsub.s32 0, %v4436
        %v4438 = vrot.slane %v4298, %v4437
        %v4439 = vlaneseq
        %v4440 = vshrl.u32 %v4439, 7
        %v4441 = vsub.s32 0, %v4440
        %v4442 = vrot.slane %v4299, %v4441
        %v4443 = vlaneseq
        %v4444 = vshrl.u32 %v4443, 7
        %v4445 = vsub.s32 0, %v4444
        %v4446 = vrot.slane %v4300, %v4445
        %v4447 = vlaneseq
        %v4448 = vshrl.u32 %v4447, 7
        %v4449 = vsub.s32 0, %v4448
        %v4450 = vrot.slane %v4301, %v4449
        %v4451 = vlaneseq
        %v4452 = vshrl.u32 %v4451, 7
        %v4453 = vsub.s32 0, %v4452
        %v4454 = vrot.slane %v4302, %v4453
        %v4455 = vlaneseq
        %v4456 = vshrl.u32 %v4455, 7
        %v4457 = vsub.s32 0, %v4456
        %v4458 = vrot.slane %v4303, %v4457
        %v4459 = vlaneseq
        %v4460 = vshrl.u32 %v4459, 7
        %v4461 = vsub.s32 0, %v4460
        %v4462 = vrot.slane %v4304, %v4461
        %v4463 = vlaneseq
        %v4464 = vshrl.u32 %v4463, 7
        %v4465 = vsub.s32 0, %v4464
        %v4466 = vrot.slane %v4305, %v4465
        %v4467 = vlaneseq
        %v4468 = vshrl.u32 %v4467, 7
        %v4469 = vsub.s32 0, %v4468
        %v4470 = vrot.slane %v4306, %v4469
        %v4471 = vlaneseq
        %v4472 = vshrl.u32 %v4471, 7
        %v4473 = vsub.s32 0, %v4472
        %v4474 = vrot.slane %v4307, %v4473
        %v4475 = vlaneseq
        %v4476 = vshrl.u32 %v4475, 7
        %v4477 = vsub.s32 0, %v4476
        %v4478 = vrot.slane %v4308, %v4477
        %v4479 = vlaneseq
        %v4480 = vshrl.u32 %v4479, 7
        %v4481 = vsub.s32 0, %v4480
        %v4482 = vrot.slane %v4309, %v4481
        %v4483 = vlaneseq
        %v4484 = vshrl.u32 %v4483, 7
        %v4485 = vsub.s32 0, %v4484
        %v4486 = vrot.slane %v4310, %v4485
        %v4487 = vlaneseq
        %v4488 = vshrl.u32 %v4487, 7
        %v4489 = vsub.s32 0, %v4488
        %v4490 = vrot.slane %v4311, %v4489
        %v4491 = vlaneseq
        %v4492 = vshrl.u32 %v4491, 7
        %v4493 = vsub.s32 0, %v4492
        %v4494 = vrot.slane %v4312, %v4493
        %v4495 = vlaneseq
        %v4496 = vshrl.u32 %v4495, 7
        %v4497 = vsub.s32 0, %v4496
        %v4498 = vrot.slane %v4313, %v4497
        %v4499 = vlaneseq
        %v4500 = vshrl.u32 %v4499, 7
        %v4501 = vsub.s32 0, %v4500
        %v4502 = vrot.slane %v4314, %v4501
        %v4503 = vlaneseq
        %v4504 = vshrl.u32 %v4503, 7
        %v4505 = vsub.s32 0, %v4504
        %v4506 = vrot.slane %v4315, %v4505
        %v4507 = vlaneseq
        %v4508 = vshrl.u32 %v4507, 7
        %v4509 = vsub.s32 0, %v4508
        %v4510 = vrot.slane %v4316, %v4509
        %v4511 = vlaneseq
        %v4512 = vshrl.u32 %v4511, 7
        %v4513 = vsub.s32 0, %v4512
        %v4514 = vrot.slane %v4317, %v4513
        %v4515 = vlaneseq
        %v4516 = vshrl.u32 %v4515, 7
        %v4517 = vsub.s32 0, %v4516
        %v4518 = vrot.slane %v4318, %v4517
        %v4519 = vlaneseq
        %v4520 = vshrl.u32 %v4519, 7
        %v4521 = vsub.s32 0, %v4520
        %v4522 = vrot.slane %v4319, %v4521
        %v4523 = vlaneseq
        %v4524 = vshrl.u32 %v4523, 7
        %v4525 = vsub.s32 0, %v4524
        %v4526 = vrot.slane %v4320, %v4525
        %v4527 = vlaneseq
        %v4528 = vshrl.u32 %v4527, 7
        %v4529 = vsub.s32 0, %v4528
        %v4530 = vrot.slane %v4321, %v4529
        %v4531 = vlaneseq
        %v4532 = vshrl.u32 %v4531, 7
        %v4533 = vsub.s32 0, %v4532
        %v4534 = vrot.slane %v4322, %v4533
        %v4535 = vlaneseq
        %v4536 = vshrl.u32 %v4535, 7
        %v4537 = vsub.s32 0, %v4536
        %v4538 = vrot.slane %v4323, %v4537
        %v4539 = vlaneseq
        %v4540 = vshrl.u32 %v4539, 7
        %v4541 = vsub.s32 0, %v4540
        %v4542 = vrot.slane %v4324, %v4541
        %v4543 = vlaneseq
        %v4544 = vshrl.u32 %v4543, 7
        %v4545 = vsub.s32 0, %v4544
        %v4546 = vrot.slane %v4325, %v4545
        %v4547 = vlaneseq
        %v4548 = vshrl.u32 %v4547, 7
        %v4549 = vsub.s32 0, %v4548
        %v4550 = vrot.slane %v4326, %v4549
        %v4551 = vsub.f32 %v3298, %v4330
        %v4552 = vsub.f32 %v3299, %v4330
        %v4553 = vsub.f32 %v3300, %v4330
        %v4554 = vsub.f32 %v3301, %v4330
        %v4555 = vsub.f32 %v3302, %v4334
        %v4556 = vsub.f32 %v3303, %v4334
        %v4557 = vsub.f32 %v3304, %v4334
        %v4558 = vsub.f32 %v3305, %v4334
        %v4559 = vsub.f32 %v3306, %v4338
        %v4560 = vsub.f32 %v3307, %v4338
        %v4561 = vsub.f32 %v3308, %v4338
        %v4562 = vsub.f32 %v3309, %v4338
        %v4563 = vsub.f32 %v3310, %v4342
        %v4564 = vsub.f32 %v3311, %v4342
        %v4565 = vsub.f32 %v3312, %v4342
        %v4566 = vsub.f32 %v3313, %v4342
        %v4567 = vsub.f32 %v3314, %v4346
        %v4568 = vsub.f32 %v3315, %v4346
        %v4569 = vsub.f32 %v3316, %v4346
        %v4570 = vsub.f32 %v3317, %v4346
        %v4571 = vsub.f32 %v3318, %v4350
        %v4572 = vsub.f32 %v3319, %v4350
        %v4573 = vsub.f32 %v3320, %v4350
        %v4574 = vsub.f32 %v3321, %v4350
        %v4575 = vsub.f32 %v3322, %v4354
        %v4576 = vsub.f32 %v3323, %v4354
        %v4577 = vsub.f32 %v3324, %v4354
        %v4578 = vsub.f32 %v3325, %v4354
        %v4579 = vsub.f32 %v3326, %v4358
        %v4580 = vsub.f32 %v3327, %v4358
        %v4581 = vsub.f32 %v3328, %v4358
        %v4582 = vsub.f32 %v3329, %v4358
        %v4583 = vsub.f32 %v3330, %v4362
        %v4584 = vsub.f32 %v3331, %v4362
        %v4585 = vsub.f32 %v3332, %v4362
        %v4586 = vsub.f32 %v3333, %v4362
        %v4587 = vsub.f32 %v3334, %v4366
        %v4588 = vsub.f32 %v3335, %v4366
        %v4589 = vsub.f32 %v3336, %v4366
        %v4590 = vsub.f32 %v3337, %v4366
        %v4591 = vsub.f32 %v3338, %v4370
        %v4592 = vsub.f32 %v3339, %v4370
        %v4593 = vsub.f32 %v3340, %v4370
        %v4594 = vsub.f32 %v3341, %v4370
        %v4595 = vsub.f32 %v3342, %v4374
        %v4596 = vsub.f32 %v3343, %v4374
        %v4597 = vsub.f32 %v3344, %v4374
        %v4598 = vsub.f32 %v3345, %v4374
        %v4599 = vsub.f32 %v3346, %v4378
        %v4600 = vsub.f32 %v3347, %v4378
        %v4601 = vsub.f32 %v3348, %v4378
        %v4602 = vsub.f32 %v3349, %v4378
        %v4603 = vsub.f32 %v3350, %v4382
        %v4604 = vsub.f32 %v3351, %v4382
        %v4605 = vsub.f32 %v3352, %v4382
        %v4606 = vsub.f32 %v3353, %v4382
        %v4607 = vsub.f32 %v3354, %v4386
        %v4608 = vsub.f32 %v3355, %v4386
        %v4609 = vsub.f32 %v3356, %v4386
        %v4610 = vsub.f32 %v3357, %v4386
        %v4611 = vsub.f32 %v3358, %v4390
        %v4612 = vsub.f32 %v3359, %v4390
        %v4613 = vsub.f32 %v3360, %v4390
        %v4614 = vsub.f32 %v3361, %v4390
        %v4615 = vsub.f32 %v3362, %v4394
        %v4616 = vsub.f32 %v3363, %v4394
        %v4617 = vsub.f32 %v3364, %v4394
        %v4618 = vsub.f32 %v3365, %v4394
        %v4619 = vsub.f32 %v3366, %v4398
        %v4620 = vsub.f32 %v3367, %v4398
        %v4621 = vsub.f32 %v3368, %v4398
        %v4622 = vsub.f32 %v3369, %v4398
        %v4623 = vsub.f32 %v3370, %v4402
        %v4624 = vsub.f32 %v3371, %v4402
        %v4625 = vsub.f32 %v3372, %v4402
        %v4626 = vsub.f32 %v3373, %v4402
        %v4627 = vsub.f32 %v3374, %v4406
        %v4628 = vsub.f32 %v3375, %v4406
        %v4629 = vsub.f32 %v3376, %v4406
        %v4630 = vsub.f32 %v3377, %v4406
        %v4631 = vsub.f32 %v3378, %v4410
        %v4632 = vsub.f32 %v3379, %v4410
        %v4633 = vsub.f32 %v3380, %v4410
        %v4634 = vsub.f32 %v3381, %v4410
        %v4635 = vsub.f32 %v3382, %v4414
        %v4636 = vsub.f32 %v3383, %v4414
        %v4637 = vsub.f32 %v3384, %v4414
        %v4638 = vsub.f32 %v3385, %v4414
        %v4639 = vsub.f32 %v3386, %v4418
        %v4640 = vsub.f32 %v3387, %v4418
        %v4641 = vsub.f32 %v3388, %v4418
        %v4642 = vsub.f32 %v3389, %v4418
        %v4643 = vsub.f32 %v3390, %v4422
        %v4644 = vsub.f32 %v3391, %v4422
        %v4645 = vsub.f32 %v3392, %v4422
        %v4646 = vsub.f32 %v3393, %v4422
        %v4647 = vsub.f32 %v3394, %v4426
        %v4648 = vsub.f32 %v3395, %v4426
        %v4649 = vsub.f32 %v3396, %v4426
        %v4650 = vsub.f32 %v3397, %v4426
        %v4651 = vsub.f32 %v3398, %v4430
        %v4652 = vsub.f32 %v3399, %v4430
        %v4653 = vsub.f32 %v3400, %v4430
        %v4654 = vsub.f32 %v3401, %v4430
        %v4655 = vsub.f32 %v3402, %v4434
        %v4656 = vsub.f32 %v3403, %v4434
        %v4657 = vsub.f32 %v3404, %v4434
        %v4658 = vsub.f32 %v3405, %v4434
        %v4659 = vsub.f32 %v3406, %v4438
        %v4660 = vsub.f32 %v3407, %v4438
        %v4661 = vsub.f32 %v3408, %v4438
        %v4662 = vsub.f32 %v3409, %v4438
        %v4663 = vsub.f32 %v3410, %v4442
        %v4664 = vsub.f32 %v3411, %v4442
        %v4665 = vsub.f32 %v3412, %v4442
        %v4666 = vsub.f32 %v3413, %v4442
        %v4667 = vsub.f32 %v3414, %v4446
        %v4668 = vsub.f32 %v3415, %v4446
        %v4669 = vsub.f32 %v3416, %v4446
        %v4670 = vsub.f32 %v3417, %v4446
        %v4671 = vsub.f32 %v3418, %v4450
        %v4672 = vsub.f32 %v3419, %v4450
        %v4673 = vsub.f32 %v3420, %v4450
        %v4674 = vsub.f32 %v3421, %v4450
        %v4675 = vsub.f32 %v3422, %v4454
        %v4676 = vsub.f32 %v3423, %v4454
        %v4677 = vsub.f32 %v3424, %v4454
        %v4678 = vsub.f32 %v3425, %v4454
        %v4679 = vsub.f32 %v3426, %v4458
        %v4680 = vsub.f32 %v3427, %v4458
        %v4681 = vsub.f32 %v3428, %v4458
        %v4682 = vsub.f32 %v3429, %v4458
        %v4683 = vsub.f32 %v3430, %v4462
        %v4684 = vsub.f32 %v3431, %v4462
        %v4685 = vsub.f32 %v3432, %v4462
        %v4686 = vsub.f32 %v3433, %v4462
        %v4687 = vsub.f32 %v3434, %v4466
        %v4688 = vsub.f32 %v3435, %v4466
        %v4689 = vsub.f32 %v3436, %v4466
        %v4690 = vsub.f32 %v3437, %v4466
        %v4691 = vsub.f32 %v3438, %v4470
        %v4692 = vsub.f32 %v3439, %v4470
        %v4693 = vsub.f32 %v3440, %v4470
        %v4694 = vsub.f32 %v3441, %v4470
        %v4695 = vsub.f32 %v3442, %v4474
        %v4696 = vsub.f32 %v3443, %v4474
        %v4697 = vsub.f32 %v3444, %v4474
        %v4698 = vsub.f32 %v3445, %v4474
        %v4699 = vsub.f32 %v3446, %v4478
        %v4700 = vsub.f32 %v3447, %v4478
        %v4701 = vsub.f32 %v3448, %v4478
        %v4702 = vsub.f32 %v3449, %v4478
        %v4703 = vsub.f32 %v3450, %v4482
        %v4704 = vsub.f32 %v3451, %v4482
        %v4705 = vsub.f32 %v3452, %v4482
        %v4706 = vsub.f32 %v3453, %v4482
        %v4707 = vsub.f32 %v3454, %v4486
        %v4708 = vsub.f32 %v3455, %v4486
        %v4709 = vsub.f32 %v3456, %v4486
        %v4710 = vsub.f32 %v3457, %v4486
        %v4711 = vsub.f32 %v3458, %v4490
        %v4712 = vsub.f32 %v3459, %v4490
        %v4713 = vsub.f32 %v3460, %v4490
        %v4714 = vsub.f32 %v3461, %v4490
        %v4715 = vsub.f32 %v3462, %v4494
        %v4716 = vsub.f32 %v3463, %v4494
        %v4717 = vsub.f32 %v3464, %v4494
        %v4718 = vsub.f32 %v3465, %v4494
        %v4719 = vsub.f32 %v3466, %v4498
        %v4720 = vsub.f32 %v3467, %v4498
        %v4721 = vsub.f32 %v3468, %v4498
        %v4722 = vsub.f32 %v3469, %v4498
        %v4723 = vsub.f32 %v3470, %v4502
        %v4724 = vsub.f32 %v3471, %v4502
        %v4725 = vsub.f32 %v3472, %v4502
        %v4726 = vsub.f32 %v3473, %v4502
        %v4727 = vsub.f32 %v3474, %v4506
        %v4728 = vsub.f32 %v3475, %v4506
        %v4729 = vsub.f32 %v3476, %v4506
        %v4730 = vsub.f32 %v3477, %v4506
        %v4731 = vsub.f32 %v3478, %v4510
        %v4732 = vsub.f32 %v3479, %v4510
        %v4733 = vsub.f32 %v3480, %v4510
        %v4734 = vsub.f32 %v3481, %v4510
        %v4735 = vsub.f32 %v3482, %v4514
        %v4736 = vsub.f32 %v3483, %v4514
        %v4737 = vsub.f32 %v3484, %v4514
        %v4738 = vsub.f32 %v3485, %v4514
        %v4739 = vsub.f32 %v3486, %v4518
        %v4740 = vsub.f32 %v3487, %v4518
        %v4741 = vsub.f32 %v3488, %v4518
        %v4742 = vsub.f32 %v3489, %v4518
        %v4743 = vsub.f32 %v3490, %v4522
        %v4744 = vsub.f32 %v3491, %v4522
        %v4745 = vsub.f32 %v3492, %v4522
        %v4746 = vsub.f32 %v3493, %v4522
        %v4747 = vsub.f32 %v3494, %v4526
        %v4748 = vsub.f32 %v3495, %v4526
        %v4749 = vsub.f32 %v3496, %v4526
        %v4750 = vsub.f32 %v3497, %v4526
        %v4751 = vsub.f32 %v3498, %v4530
        %v4752 = vsub.f32 %v3499, %v4530
        %v4753 = vsub.f32 %v3500, %v4530
        %v4754 = vsub.f32 %v3501, %v4530
        %v4755 = vsub.f32 %v3502, %v4534
        %v4756 = vsub.f32 %v3503, %v4534
        %v4757 = vsub.f32 %v3504, %v4534
        %v4758 = vsub.f32 %v3505, %v4534
        %v4759 = vsub.f32 %v3506, %v4538
        %v4760 = vsub.f32 %v3507, %v4538
        %v4761 = vsub.f32 %v3508, %v4538
        %v4762 = vsub.f32 %v3509, %v4538
        %v4763 = vsub.f32 %v3510, %v4542
        %v4764 = vsub.f32 %v3511, %v4542
        %v4765 = vsub.f32 %v3512, %v4542
        %v4766 = vsub.f32 %v3513, %v4542
        %v4767 = vsub.f32 %v3514, %v4546
        %v4768 = vsub.f32 %v3515, %v4546
        %v4769 = vsub.f32 %v3516, %v4546
        %v4770 = vsub.f32 %v3517, %v4546
        %v4771 = vsub.f32 %v3518, %v4550
        %v4772 = vsub.f32 %v3519, %v4550
        %v4773 = vsub.f32 %v3520, %v4550
        %v4774 = vsub.f32 %v3521, %v4550
        %v4775 = vmul.f32 %v4551, 1.442695
        %v4776 = vpow.pop %v4775
        %v4777 = vmul.f32 %v4552, 1.442695
        %v4778 = vpow.pop %v4777
        %v4779 = vmul.f32 %v4553, 1.442695
        %v4780 = vpow.pop %v4779
        %v4781 = vmul.f32 %v4554, 1.442695
        %v4782 = vpow.pop %v4781
        %v4783 = vmul.f32 %v4555, 1.442695
        %v4784 = vpow.pop %v4783
        %v4785 = vmul.f32 %v4556, 1.442695
        %v4786 = vpow.pop %v4785
        %v4787 = vmul.f32 %v4557, 1.442695
        %v4788 = vpow.pop %v4787
        %v4789 = vmul.f32 %v4558, 1.442695
        %v4790 = vpow.pop %v4789
        %v4791 = vmul.f32 %v4559, 1.442695
        %v4792 = vpow.pop %v4791
        %v4793 = vmul.f32 %v4560, 1.442695
        %v4794 = vpow.pop %v4793
        %v4795 = vmul.f32 %v4561, 1.442695
        %v4796 = vpow.pop %v4795
        %v4797 = vmul.f32 %v4562, 1.442695
        %v4798 = vpow.pop %v4797
        %v4799 = vmul.f32 %v4563, 1.442695
        %v4800 = vpow.pop %v4799
        %v4801 = vmul.f32 %v4564, 1.442695
        %v4802 = vpow.pop %v4801
        %v4803 = vmul.f32 %v4565, 1.442695
        %v4804 = vpow.pop %v4803
        %v4805 = vmul.f32 %v4566, 1.442695
        %v4806 = vpow.pop %v4805
        %v4807 = vmul.f32 %v4567, 1.442695
        %v4808 = vpow.pop %v4807
        %v4809 = vmul.f32 %v4568, 1.442695
        %v4810 = vpow.pop %v4809
        %v4811 = vmul.f32 %v4569, 1.442695
        %v4812 = vpow.pop %v4811
        %v4813 = vmul.f32 %v4570, 1.442695
        %v4814 = vpow.pop %v4813
        %v4815 = vmul.f32 %v4571, 1.442695
        %v4816 = vpow.pop %v4815
        %v4817 = vmul.f32 %v4572, 1.442695
        %v4818 = vpow.pop %v4817
        %v4819 = vmul.f32 %v4573, 1.442695
        %v4820 = vpow.pop %v4819
        %v4821 = vmul.f32 %v4574, 1.442695
        %v4822 = vpow.pop %v4821
        %v4823 = vmul.f32 %v4575, 1.442695
        %v4824 = vpow.pop %v4823
        %v4825 = vmul.f32 %v4576, 1.442695
        %v4826 = vpow.pop %v4825
        %v4827 = vmul.f32 %v4577, 1.442695
        %v4828 = vpow.pop %v4827
        %v4829 = vmul.f32 %v4578, 1.442695
        %v4830 = vpow.pop %v4829
        %v4831 = vmul.f32 %v4579, 1.442695
        %v4832 = vpow.pop %v4831
        %v4833 = vmul.f32 %v4580, 1.442695
        %v4834 = vpow.pop %v4833
        %v4835 = vmul.f32 %v4581, 1.442695
        %v4836 = vpow.pop %v4835
        %v4837 = vmul.f32 %v4582, 1.442695
        %v4838 = vpow.pop %v4837
        %v4839 = vmul.f32 %v4583, 1.442695
        %v4840 = vpow.pop %v4839
        %v4841 = vmul.f32 %v4584, 1.442695
        %v4842 = vpow.pop %v4841
        %v4843 = vmul.f32 %v4585, 1.442695
        %v4844 = vpow.pop %v4843
        %v4845 = vmul.f32 %v4586, 1.442695
        %v4846 = vpow.pop %v4845
        %v4847 = vmul.f32 %v4587, 1.442695
        %v4848 = vpow.pop %v4847
        %v4849 = vmul.f32 %v4588, 1.442695
        %v4850 = vpow.pop %v4849
        %v4851 = vmul.f32 %v4589, 1.442695
        %v4852 = vpow.pop %v4851
        %v4853 = vmul.f32 %v4590, 1.442695
        %v4854 = vpow.pop %v4853
        %v4855 = vmul.f32 %v4591, 1.442695
        %v4856 = vpow.pop %v4855
        %v4857 = vmul.f32 %v4592, 1.442695
        %v4858 = vpow.pop %v4857
        %v4859 = vmul.f32 %v4593, 1.442695
        %v4860 = vpow.pop %v4859
        %v4861 = vmul.f32 %v4594, 1.442695
        %v4862 = vpow.pop %v4861
        %v4863 = vmul.f32 %v4595, 1.442695
        %v4864 = vpow.pop %v4863
        %v4865 = vmul.f32 %v4596, 1.442695
        %v4866 = vpow.pop %v4865
        %v4867 = vmul.f32 %v4597, 1.442695
        %v4868 = vpow.pop %v4867
        %v4869 = vmul.f32 %v4598, 1.442695
        %v4870 = vpow.pop %v4869
        %v4871 = vmul.f32 %v4599, 1.442695
        %v4872 = vpow.pop %v4871
        %v4873 = vmul.f32 %v4600, 1.442695
        %v4874 = vpow.pop %v4873
        %v4875 = vmul.f32 %v4601, 1.442695
        %v4876 = vpow.pop %v4875
        %v4877 = vmul.f32 %v4602, 1.442695
        %v4878 = vpow.pop %v4877
        %v4879 = vmul.f32 %v4603, 1.442695
        %v4880 = vpow.pop %v4879
        %v4881 = vmul.f32 %v4604, 1.442695
        %v4882 = vpow.pop %v4881
        %v4883 = vmul.f32 %v4605, 1.442695
        %v4884 = vpow.pop %v4883
        %v4885 = vmul.f32 %v4606, 1.442695
        %v4886 = vpow.pop %v4885
        %v4887 = vmul.f32 %v4607, 1.442695
        %v4888 = vpow.pop %v4887
        %v4889 = vmul.f32 %v4608, 1.442695
        %v4890 = vpow.pop %v4889
        %v4891 = vmul.f32 %v4609, 1.442695
        %v4892 = vpow.pop %v4891
        %v4893 = vmul.f32 %v4610, 1.442695
        %v4894 = vpow.pop %v4893
        %v4895 = vmul.f32 %v4611, 1.442695
        %v4896 = vpow.pop %v4895
        %v4897 = vmul.f32 %v4612, 1.442695
        %v4898 = vpow.pop %v4897
        %v4899 = vmul.f32 %v4613, 1.442695
        %v4900 = vpow.pop %v4899
        %v4901 = vmul.f32 %v4614, 1.442695
        %v4902 = vpow.pop %v4901
        %v4903 = vmul.f32 %v4615, 1.442695
        %v4904 = vpow.pop %v4903
        %v4905 = vmul.f32 %v4616, 1.442695
        %v4906 = vpow.pop %v4905
        %v4907 = vmul.f32 %v4617, 1.442695
        %v4908 = vpow.pop %v4907
        %v4909 = vmul.f32 %v4618, 1.442695
        %v4910 = vpow.pop %v4909
        %v4911 = vmul.f32 %v4619, 1.442695
        %v4912 = vpow.pop %v4911
        %v4913 = vmul.f32 %v4620, 1.442695
        %v4914 = vpow.pop %v4913
        %v4915 = vmul.f32 %v4621, 1.442695
        %v4916 = vpow.pop %v4915
        %v4917 = vmul.f32 %v4622, 1.442695
        %v4918 = vpow.pop %v4917
        %v4919 = vmul.f32 %v4623, 1.442695
        %v4920 = vpow.pop %v4919
        %v4921 = vmul.f32 %v4624, 1.442695
        %v4922 = vpow.pop %v4921
        %v4923 = vmul.f32 %v4625, 1.442695
        %v4924 = vpow.pop %v4923
        %v4925 = vmul.f32 %v4626, 1.442695
        %v4926 = vpow.pop %v4925
        %v4927 = vmul.f32 %v4627, 1.442695
        %v4928 = vpow.pop %v4927
        %v4929 = vmul.f32 %v4628, 1.442695
        %v4930 = vpow.pop %v4929
        %v4931 = vmul.f32 %v4629, 1.442695
        %v4932 = vpow.pop %v4931
        %v4933 = vmul.f32 %v4630, 1.442695
        %v4934 = vpow.pop %v4933
        %v4935 = vmul.f32 %v4631, 1.442695
        %v4936 = vpow.pop %v4935
        %v4937 = vmul.f32 %v4632, 1.442695
        %v4938 = vpow.pop %v4937
        %v4939 = vmul.f32 %v4633, 1.442695
        %v4940 = vpow.pop %v4939
        %v4941 = vmul.f32 %v4634, 1.442695
        %v4942 = vpow.pop %v4941
        %v4943 = vmul.f32 %v4635, 1.442695
        %v4944 = vpow.pop %v4943
        %v4945 = vmul.f32 %v4636, 1.442695
        %v4946 = vpow.pop %v4945
        %v4947 = vmul.f32 %v4637, 1.442695
        %v4948 = vpow.pop %v4947
        %v4949 = vmul.f32 %v4638, 1.442695
        %v4950 = vpow.pop %v4949
        %v4951 = vmul.f32 %v4639, 1.442695
        %v4952 = vpow.pop %v4951
        %v4953 = vmul.f32 %v4640, 1.442695
        %v4954 = vpow.pop %v4953
        %v4955 = vmul.f32 %v4641, 1.442695
        %v4956 = vpow.pop %v4955
        %v4957 = vmul.f32 %v4642, 1.442695
        %v4958 = vpow.pop %v4957
        %v4959 = vmul.f32 %v4643, 1.442695
        %v4960 = vpow.pop %v4959
        %v4961 = vmul.f32 %v4644, 1.442695
        %v4962 = vpow.pop %v4961
        %v4963 = vmul.f32 %v4645, 1.442695
        %v4964 = vpow.pop %v4963
        %v4965 = vmul.f32 %v4646, 1.442695
        %v4966 = vpow.pop %v4965
        %v4967 = vmul.f32 %v4647, 1.442695
        %v4968 = vpow.pop %v4967
        %v4969 = vmul.f32 %v4648, 1.442695
        %v4970 = vpow.pop %v4969
        %v4971 = vmul.f32 %v4649, 1.442695
        %v4972 = vpow.pop %v4971
        %v4973 = vmul.f32 %v4650, 1.442695
        %v4974 = vpow.pop %v4973
        %v4975 = vmul.f32 %v4651, 1.442695
        %v4976 = vpow.pop %v4975
        %v4977 = vmul.f32 %v4652, 1.442695
        %v4978 = vpow.pop %v4977
        %v4979 = vmul.f32 %v4653, 1.442695
        %v4980 = vpow.pop %v4979
        %v4981 = vmul.f32 %v4654, 1.442695
        %v4982 = vpow.pop %v4981
        %v4983 = vmul.f32 %v4655, 1.442695
        %v4984 = vpow.pop %v4983
        %v4985 = vmul.f32 %v4656, 1.442695
        %v4986 = vpow.pop %v4985
        %v4987 = vmul.f32 %v4657, 1.442695
        %v4988 = vpow.pop %v4987
        %v4989 = vmul.f32 %v4658, 1.442695
        %v4990 = vpow.pop %v4989
        %v4991 = vmul.f32 %v4659, 1.442695
        %v4992 = vpow.pop %v4991
        %v4993 = vmul.f32 %v4660, 1.442695
        %v4994 = vpow.pop %v4993
        %v4995 = vmul.f32 %v4661, 1.442695
        %v4996 = vpow.pop %v4995
        %v4997 = vmul.f32 %v4662, 1.442695
        %v4998 = vpow.pop %v4997
        %v4999 = vmul.f32 %v4663, 1.442695
        %v5000 = vpow.pop %v4999
        %v5001 = vmul.f32 %v4664, 1.442695
        %v5002 = vpow.pop %v5001
        %v5003 = vmul.f32 %v4665, 1.442695
        %v5004 = vpow.pop %v5003
        %v5005 = vmul.f32 %v4666, 1.442695
        %v5006 = vpow.pop %v5005
        %v5007 = vmul.f32 %v4667, 1.442695
        %v5008 = vpow.pop %v5007
        %v5009 = vmul.f32 %v4668, 1.442695
        %v5010 = vpow.pop %v5009
        %v5011 = vmul.f32 %v4669, 1.442695
        %v5012 = vpow.pop %v5011
        %v5013 = vmul.f32 %v4670, 1.442695
        %v5014 = vpow.pop %v5013
        %v5015 = vmul.f32 %v4671, 1.442695
        %v5016 = vpow.pop %v5015
        %v5017 = vmul.f32 %v4672, 1.442695
        %v5018 = vpow.pop %v5017
        %v5019 = vmul.f32 %v4673, 1.442695
        %v5020 = vpow.pop %v5019
        %v5021 = vmul.f32 %v4674, 1.442695
        %v5022 = vpow.pop %v5021
        %v5023 = vmul.f32 %v4675, 1.442695
        %v5024 = vpow.pop %v5023
        %v5025 = vmul.f32 %v4676, 1.442695
        %v5026 = vpow.pop %v5025
        %v5027 = vmul.f32 %v4677, 1.442695
        %v5028 = vpow.pop %v5027
        %v5029 = vmul.f32 %v4678, 1.442695
        %v5030 = vpow.pop %v5029
        %v5031 = vmul.f32 %v4679, 1.442695
        %v5032 = vpow.pop %v5031
        %v5033 = vmul.f32 %v4680, 1.442695
        %v5034 = vpow.pop %v5033
        %v5035 = vmul.f32 %v4681, 1.442695
        %v5036 = vpow.pop %v5035
        %v5037 = vmul.f32 %v4682, 1.442695
        %v5038 = vpow.pop %v5037
        %v5039 = vmul.f32 %v4683, 1.442695
        %v5040 = vpow.pop %v5039
        %v5041 = vmul.f32 %v4684, 1.442695
        %v5042 = vpow.pop %v5041
        %v5043 = vmul.f32 %v4685, 1.442695
        %v5044 = vpow.pop %v5043
        %v5045 = vmul.f32 %v4686, 1.442695
        %v5046 = vpow.pop %v5045
        %v5047 = vmul.f32 %v4687, 1.442695
        %v5048 = vpow.pop %v5047
        %v5049 = vmul.f32 %v4688, 1.442695
        %v5050 = vpow.pop %v5049
        %v5051 = vmul.f32 %v4689, 1.442695
        %v5052 = vpow.pop %v5051
        %v5053 = vmul.f32 %v4690, 1.442695
        %v5054 = vpow.pop %v5053
        %v5055 = vmul.f32 %v4691, 1.442695
        %v5056 = vpow.pop %v5055
        %v5057 = vmul.f32 %v4692, 1.442695
        %v5058 = vpow.pop %v5057
        %v5059 = vmul.f32 %v4693, 1.442695
        %v5060 = vpow.pop %v5059
        %v5061 = vmul.f32 %v4694, 1.442695
        %v5062 = vpow.pop %v5061
        %v5063 = vmul.f32 %v4695, 1.442695
        %v5064 = vpow.pop %v5063
        %v5065 = vmul.f32 %v4696, 1.442695
        %v5066 = vpow.pop %v5065
        %v5067 = vmul.f32 %v4697, 1.442695
        %v5068 = vpow.pop %v5067
        %v5069 = vmul.f32 %v4698, 1.442695
        %v5070 = vpow.pop %v5069
        %v5071 = vmul.f32 %v4699, 1.442695
        %v5072 = vpow.pop %v5071
        %v5073 = vmul.f32 %v4700, 1.442695
        %v5074 = vpow.pop %v5073
        %v5075 = vmul.f32 %v4701, 1.442695
        %v5076 = vpow.pop %v5075
        %v5077 = vmul.f32 %v4702, 1.442695
        %v5078 = vpow.pop %v5077
        %v5079 = vmul.f32 %v4703, 1.442695
        %v5080 = vpow.pop %v5079
        %v5081 = vmul.f32 %v4704, 1.442695
        %v5082 = vpow.pop %v5081
        %v5083 = vmul.f32 %v4705, 1.442695
        %v5084 = vpow.pop %v5083
        %v5085 = vmul.f32 %v4706, 1.442695
        %v5086 = vpow.pop %v5085
        %v5087 = vmul.f32 %v4707, 1.442695
        %v5088 = vpow.pop %v5087
        %v5089 = vmul.f32 %v4708, 1.442695
        %v5090 = vpow.pop %v5089
        %v5091 = vmul.f32 %v4709, 1.442695
        %v5092 = vpow.pop %v5091
        %v5093 = vmul.f32 %v4710, 1.442695
        %v5094 = vpow.pop %v5093
        %v5095 = vmul.f32 %v4711, 1.442695
        %v5096 = vpow.pop %v5095
        %v5097 = vmul.f32 %v4712, 1.442695
        %v5098 = vpow.pop %v5097
        %v5099 = vmul.f32 %v4713, 1.442695
        %v5100 = vpow.pop %v5099
        %v5101 = vmul.f32 %v4714, 1.442695
        %v5102 = vpow.pop %v5101
        %v5103 = vmul.f32 %v4715, 1.442695
        %v5104 = vpow.pop %v5103
        %v5105 = vmul.f32 %v4716, 1.442695
        %v5106 = vpow.pop %v5105
        %v5107 = vmul.f32 %v4717, 1.442695
        %v5108 = vpow.pop %v5107
        %v5109 = vmul.f32 %v4718, 1.442695
        %v5110 = vpow.pop %v5109
        %v5111 = vmul.f32 %v4719, 1.442695
        %v5112 = vpow.pop %v5111
        %v5113 = vmul.f32 %v4720, 1.442695
        %v5114 = vpow.pop %v5113
        %v5115 = vmul.f32 %v4721, 1.442695
        %v5116 = vpow.pop %v5115
        %v5117 = vmul.f32 %v4722, 1.442695
        %v5118 = vpow.pop %v5117
        %v5119 = vmul.f32 %v4723, 1.442695
        %v5120 = vpow.pop %v5119
        %v5121 = vmul.f32 %v4724, 1.442695
        %v5122 = vpow.pop %v5121
        %v5123 = vmul.f32 %v4725, 1.442695
        %v5124 = vpow.pop %v5123
        %v5125 = vmul.f32 %v4726, 1.442695
        %v5126 = vpow.pop %v5125
        %v5127 = vmul.f32 %v4727, 1.442695
        %v5128 = vpow.pop %v5127
        %v5129 = vmul.f32 %v4728, 1.442695
        %v5130 = vpow.pop %v5129
        %v5131 = vmul.f32 %v4729, 1.442695
        %v5132 = vpow.pop %v5131
        %v5133 = vmul.f32 %v4730, 1.442695
        %v5134 = vpow.pop %v5133
        %v5135 = vmul.f32 %v4731, 1.442695
        %v5136 = vpow.pop %v5135
        %v5137 = vmul.f32 %v4732, 1.442695
        %v5138 = vpow.pop %v5137
        %v5139 = vmul.f32 %v4733, 1.442695
        %v5140 = vpow.pop %v5139
        %v5141 = vmul.f32 %v4734, 1.442695
        %v5142 = vpow.pop %v5141
        %v5143 = vmul.f32 %v4735, 1.442695
        %v5144 = vpow.pop %v5143
        %v5145 = vmul.f32 %v4736, 1.442695
        %v5146 = vpow.pop %v5145
        %v5147 = vmul.f32 %v4737, 1.442695
        %v5148 = vpow.pop %v5147
        %v5149 = vmul.f32 %v4738, 1.442695
        %v5150 = vpow.pop %v5149
        %v5151 = vmul.f32 %v4739, 1.442695
        %v5152 = vpow.pop %v5151
        %v5153 = vmul.f32 %v4740, 1.442695
        %v5154 = vpow.pop %v5153
        %v5155 = vmul.f32 %v4741, 1.442695
        %v5156 = vpow.pop %v5155
        %v5157 = vmul.f32 %v4742, 1.442695
        %v5158 = vpow.pop %v5157
        %v5159 = vmul.f32 %v4743, 1.442695
        %v5160 = vpow.pop %v5159
        %v5161 = vmul.f32 %v4744, 1.442695
        %v5162 = vpow.pop %v5161
        %v5163 = vmul.f32 %v4745, 1.442695
        %v5164 = vpow.pop %v5163
        %v5165 = vmul.f32 %v4746, 1.442695
        %v5166 = vpow.pop %v5165
        %v5167 = vmul.f32 %v4747, 1.442695
        %v5168 = vpow.pop %v5167
        %v5169 = vmul.f32 %v4748, 1.442695
        %v5170 = vpow.pop %v5169
        %v5171 = vmul.f32 %v4749, 1.442695
        %v5172 = vpow.pop %v5171
        %v5173 = vmul.f32 %v4750, 1.442695
        %v5174 = vpow.pop %v5173
        %v5175 = vmul.f32 %v4751, 1.442695
        %v5176 = vpow.pop %v5175
        %v5177 = vmul.f32 %v4752, 1.442695
        %v5178 = vpow.pop %v5177
        %v5179 = vmul.f32 %v4753, 1.442695
        %v5180 = vpow.pop %v5179
        %v5181 = vmul.f32 %v4754, 1.442695
        %v5182 = vpow.pop %v5181
        %v5183 = vmul.f32 %v4755, 1.442695
        %v5184 = vpow.pop %v5183
        %v5185 = vmul.f32 %v4756, 1.442695
        %v5186 = vpow.pop %v5185
        %v5187 = vmul.f32 %v4757, 1.442695
        %v5188 = vpow.pop %v5187
        %v5189 = vmul.f32 %v4758, 1.442695
        %v5190 = vpow.pop %v5189
        %v5191 = vmul.f32 %v4759, 1.442695
        %v5192 = vpow.pop %v5191
        %v5193 = vmul.f32 %v4760, 1.442695
        %v5194 = vpow.pop %v5193
        %v5195 = vmul.f32 %v4761, 1.442695
        %v5196 = vpow.pop %v5195
        %v5197 = vmul.f32 %v4762, 1.442695
        %v5198 = vpow.pop %v5197
        %v5199 = vmul.f32 %v4763, 1.442695
        %v5200 = vpow.pop %v5199
        %v5201 = vmul.f32 %v4764, 1.442695
        %v5202 = vpow.pop %v5201
        %v5203 = vmul.f32 %v4765, 1.442695
        %v5204 = vpow.pop %v5203
        %v5205 = vmul.f32 %v4766, 1.442695
        %v5206 = vpow.pop %v5205
        %v5207 = vmul.f32 %v4767, 1.442695
        %v5208 = vpow.pop %v5207
        %v5209 = vmul.f32 %v4768, 1.442695
        %v5210 = vpow.pop %v5209
        %v5211 = vmul.f32 %v4769, 1.442695
        %v5212 = vpow.pop %v5211
        %v5213 = vmul.f32 %v4770, 1.442695
        %v5214 = vpow.pop %v5213
        %v5215 = vmul.f32 %v4771, 1.442695
        %v5216 = vpow.pop %v5215
        %v5217 = vmul.f32 %v4772, 1.442695
        %v5218 = vpow.pop %v5217
        %v5219 = vmul.f32 %v4773, 1.442695
        %v5220 = vpow.pop %v5219
        %v5221 = vmul.f32 %v4774, 1.442695
        %v5222 = vpow.pop %v5221
        %v5223 = vadd.f32 %v4776, %v4778
        %v5224 = vadd.f32 %v5223, %v4780
        %v5225 = vadd.f32 %v5224, %v4782
        %v5226 = vrot.slane %v5225, 4
        %v5227 = vadd.f32 %v5225, %v5226
        %v5228 = vrot.slane %v5227, 2
        %v5229 = vadd.f32 %v5227, %v5228
        %v5230 = vrot.slane %v5229, 1
        %v5231 = vadd.f32 %v5229, %v5230
        %v5232 = vadd.f32 %v4784, %v4786
        %v5233 = vadd.f32 %v5232, %v4788
        %v5234 = vadd.f32 %v5233, %v4790
        %v5235 = vrot.slane %v5234, 4
        %v5236 = vadd.f32 %v5234, %v5235
        %v5237 = vrot.slane %v5236, 2
        %v5238 = vadd.f32 %v5236, %v5237
        %v5239 = vrot.slane %v5238, 1
        %v5240 = vadd.f32 %v5238, %v5239
        %v5241 = vadd.f32 %v4792, %v4794
        %v5242 = vadd.f32 %v5241, %v4796
        %v5243 = vadd.f32 %v5242, %v4798
        %v5244 = vrot.slane %v5243, 4
        %v5245 = vadd.f32 %v5243, %v5244
        %v5246 = vrot.slane %v5245, 2
        %v5247 = vadd.f32 %v5245, %v5246
        %v5248 = vrot.slane %v5247, 1
        %v5249 = vadd.f32 %v5247, %v5248
        %v5250 = vadd.f32 %v4800, %v4802
        %v5251 = vadd.f32 %v5250, %v4804
        %v5252 = vadd.f32 %v5251, %v4806
        %v5253 = vrot.slane %v5252, 4
        %v5254 = vadd.f32 %v5252, %v5253
        %v5255 = vrot.slane %v5254, 2
        %v5256 = vadd.f32 %v5254, %v5255
        %v5257 = vrot.slane %v5256, 1
        %v5258 = vadd.f32 %v5256, %v5257
        %v5259 = vadd.f32 %v4808, %v4810
        %v5260 = vadd.f32 %v5259, %v4812
        %v5261 = vadd.f32 %v5260, %v4814
        %v5262 = vrot.slane %v5261, 4
        %v5263 = vadd.f32 %v5261, %v5262
        %v5264 = vrot.slane %v5263, 2
        %v5265 = vadd.f32 %v5263, %v5264
        %v5266 = vrot.slane %v5265, 1
        %v5267 = vadd.f32 %v5265, %v5266
        %v5268 = vadd.f32 %v4816, %v4818
        %v5269 = vadd.f32 %v5268, %v4820
        %v5270 = vadd.f32 %v5269, %v4822
        %v5271 = vrot.slane %v5270, 4
        %v5272 = vadd.f32 %v5270, %v5271
        %v5273 = vrot.slane %v5272, 2
        %v5274 = vadd.f32 %v5272, %v5273
        %v5275 = vrot.slane %v5274, 1
        %v5276 = vadd.f32 %v5274, %v5275
        %v5277 = vadd.f32 %v4824, %v4826
        %v5278 = vadd.f32 %v5277, %v4828
        %v5279 = vadd.f32 %v5278, %v4830
        %v5280 = vrot.slane %v5279, 4
        %v5281 = vadd.f32 %v5279, %v5280
        %v5282 = vrot.slane %v5281, 2
        %v5283 = vadd.f32 %v5281, %v5282
        %v5284 = vrot.slane %v5283, 1
        %v5285 = vadd.f32 %v5283, %v5284
        %v5286 = vadd.f32 %v4832, %v4834
        %v5287 = vadd.f32 %v5286, %v4836
        %v5288 = vadd.f32 %v5287, %v4838
        %v5289 = vrot.slane %v5288, 4
        %v5290 = vadd.f32 %v5288, %v5289
        %v5291 = vrot.slane %v5290, 2
        %v5292 = vadd.f32 %v5290, %v5291
        %v5293 = vrot.slane %v5292, 1
        %v5294 = vadd.f32 %v5292, %v5293
        %v5295 = vadd.f32 %v4840, %v4842
        %v5296 = vadd.f32 %v5295, %v4844
        %v5297 = vadd.f32 %v5296, %v4846
        %v5298 = vrot.slane %v5297, 4
        %v5299 = vadd.f32 %v5297, %v5298
        %v5300 = vrot.slane %v5299, 2
        %v5301 = vadd.f32 %v5299, %v5300
        %v5302 = vrot.slane %v5301, 1
        %v5303 = vadd.f32 %v5301, %v5302
        %v5304 = vadd.f32 %v4848, %v4850
        %v5305 = vadd.f32 %v5304, %v4852
        %v5306 = vadd.f32 %v5305, %v4854
        %v5307 = vrot.slane %v5306, 4
        %v5308 = vadd.f32 %v5306, %v5307
        %v5309 = vrot.slane %v5308, 2
        %v5310 = vadd.f32 %v5308, %v5309
        %v5311 = vrot.slane %v5310, 1
        %v5312 = vadd.f32 %v5310, %v5311
        %v5313 = vadd.f32 %v4856, %v4858
        %v5314 = vadd.f32 %v5313, %v4860
        %v5315 = vadd.f32 %v5314, %v4862
        %v5316 = vrot.slane %v5315, 4
        %v5317 = vadd.f32 %v5315, %v5316
        %v5318 = vrot.slane %v5317, 2
        %v5319 = vadd.f32 %v5317, %v5318
        %v5320 = vrot.slane %v5319, 1
        %v5321 = vadd.f32 %v5319, %v5320
        %v5322 = vadd.f32 %v4864, %v4866
        %v5323 = vadd.f32 %v5322, %v4868
        %v5324 = vadd.f32 %v5323, %v4870
        %v5325 = vrot.slane %v5324, 4
        %v5326 = vadd.f32 %v5324, %v5325
        %v5327 = vrot.slane %v5326, 2
        %v5328 = vadd.f32 %v5326, %v5327
        %v5329 = vrot.slane %v5328, 1
        %v5330 = vadd.f32 %v5328, %v5329
        %v5331 = vadd.f32 %v4872, %v4874
        %v5332 = vadd.f32 %v5331, %v4876
        %v5333 = vadd.f32 %v5332, %v4878
        %v5334 = vrot.slane %v5333, 4
        %v5335 = vadd.f32 %v5333, %v5334
        %v5336 = vrot.slane %v5335, 2
        %v5337 = vadd.f32 %v5335, %v5336
        %v5338 = vrot.slane %v5337, 1
        %v5339 = vadd.f32 %v5337, %v5338
        %v5340 = vadd.f32 %v4880, %v4882
        %v5341 = vadd.f32 %v5340, %v4884
        %v5342 = vadd.f32 %v5341, %v4886
        %v5343 = vrot.slane %v5342, 4
        %v5344 = vadd.f32 %v5342, %v5343
        %v5345 = vrot.slane %v5344, 2
        %v5346 = vadd.f32 %v5344, %v5345
        %v5347 = vrot.slane %v5346, 1
        %v5348 = vadd.f32 %v5346, %v5347
        %v5349 = vadd.f32 %v4888, %v4890
        %v5350 = vadd.f32 %v5349, %v4892
        %v5351 = vadd.f32 %v5350, %v4894
        %v5352 = vrot.slane %v5351, 4
        %v5353 = vadd.f32 %v5351, %v5352
        %v5354 = vrot.slane %v5353, 2
        %v5355 = vadd.f32 %v5353, %v5354
        %v5356 = vrot.slane %v5355, 1
        %v5357 = vadd.f32 %v5355, %v5356
        %v5358 = vadd.f32 %v4896, %v4898
        %v5359 = vadd.f32 %v5358, %v4900
        %v5360 = vadd.f32 %v5359, %v4902
        %v5361 = vrot.slane %v5360, 4
        %v5362 = vadd.f32 %v5360, %v5361
        %v5363 = vrot.slane %v5362, 2
        %v5364 = vadd.f32 %v5362, %v5363
        %v5365 = vrot.slane %v5364, 1
        %v5366 = vadd.f32 %v5364, %v5365
        %v5367 = vadd.f32 %v4904, %v4906
        %v5368 = vadd.f32 %v5367, %v4908
        %v5369 = vadd.f32 %v5368, %v4910
        %v5370 = vrot.slane %v5369, 4
        %v5371 = vadd.f32 %v5369, %v5370
        %v5372 = vrot.slane %v5371, 2
        %v5373 = vadd.f32 %v5371, %v5372
        %v5374 = vrot.slane %v5373, 1
        %v5375 = vadd.f32 %v5373, %v5374
        %v5376 = vadd.f32 %v4912, %v4914
        %v5377 = vadd.f32 %v5376, %v4916
        %v5378 = vadd.f32 %v5377, %v4918
        %v5379 = vrot.slane %v5378, 4
        %v5380 = vadd.f32 %v5378, %v5379
        %v5381 = vrot.slane %v5380, 2
        %v5382 = vadd.f32 %v5380, %v5381
        %v5383 = vrot.slane %v5382, 1
        %v5384 = vadd.f32 %v5382, %v5383
        %v5385 = vadd.f32 %v4920, %v4922
        %v5386 = vadd.f32 %v5385, %v4924
        %v5387 = vadd.f32 %v5386, %v4926
        %v5388 = vrot.slane %v5387, 4
        %v5389 = vadd.f32 %v5387, %v5388
        %v5390 = vrot.slane %v5389, 2
        %v5391 = vadd.f32 %v5389, %v5390
        %v5392 = vrot.slane %v5391, 1
        %v5393 = vadd.f32 %v5391, %v5392
        %v5394 = vadd.f32 %v4928, %v4930
        %v5395 = vadd.f32 %v5394, %v4932
        %v5396 = vadd.f32 %v5395, %v4934
        %v5397 = vrot.slane %v5396, 4
        %v5398 = vadd.f32 %v5396, %v5397
        %v5399 = vrot.slane %v5398, 2
        %v5400 = vadd.f32 %v5398, %v5399
        %v5401 = vrot.slane %v5400, 1
        %v5402 = vadd.f32 %v5400, %v5401
        %v5403 = vadd.f32 %v4936, %v4938
        %v5404 = vadd.f32 %v5403, %v4940
        %v5405 = vadd.f32 %v5404, %v4942
        %v5406 = vrot.slane %v5405, 4
        %v5407 = vadd.f32 %v5405, %v5406
        %v5408 = vrot.slane %v5407, 2
        %v5409 = vadd.f32 %v5407, %v5408
        %v5410 = vrot.slane %v5409, 1
        %v5411 = vadd.f32 %v5409, %v5410
        %v5412 = vadd.f32 %v4944, %v4946
        %v5413 = vadd.f32 %v5412, %v4948
        %v5414 = vadd.f32 %v5413, %v4950
        %v5415 = vrot.slane %v5414, 4
        %v5416 = vadd.f32 %v5414, %v5415
        %v5417 = vrot.slane %v5416, 2
        %v5418 = vadd.f32 %v5416, %v5417
        %v5419 = vrot.slane %v5418, 1
        %v5420 = vadd.f32 %v5418, %v5419
        %v5421 = vadd.f32 %v4952, %v4954
        %v5422 = vadd.f32 %v5421, %v4956
        %v5423 = vadd.f32 %v5422, %v4958
        %v5424 = vrot.slane %v5423, 4
        %v5425 = vadd.f32 %v5423, %v5424
        %v5426 = vrot.slane %v5425, 2
        %v5427 = vadd.f32 %v5425, %v5426
        %v5428 = vrot.slane %v5427, 1
        %v5429 = vadd.f32 %v5427, %v5428
        %v5430 = vadd.f32 %v4960, %v4962
        %v5431 = vadd.f32 %v5430, %v4964
        %v5432 = vadd.f32 %v5431, %v4966
        %v5433 = vrot.slane %v5432, 4
        %v5434 = vadd.f32 %v5432, %v5433
        %v5435 = vrot.slane %v5434, 2
        %v5436 = vadd.f32 %v5434, %v5435
        %v5437 = vrot.slane %v5436, 1
        %v5438 = vadd.f32 %v5436, %v5437
        %v5439 = vadd.f32 %v4968, %v4970
        %v5440 = vadd.f32 %v5439, %v4972
        %v5441 = vadd.f32 %v5440, %v4974
        %v5442 = vrot.slane %v5441, 4
        %v5443 = vadd.f32 %v5441, %v5442
        %v5444 = vrot.slane %v5443, 2
        %v5445 = vadd.f32 %v5443, %v5444
        %v5446 = vrot.slane %v5445, 1
        %v5447 = vadd.f32 %v5445, %v5446
        %v5448 = vadd.f32 %v4976, %v4978
        %v5449 = vadd.f32 %v5448, %v4980
        %v5450 = vadd.f32 %v5449, %v4982
        %v5451 = vrot.slane %v5450, 4
        %v5452 = vadd.f32 %v5450, %v5451
        %v5453 = vrot.slane %v5452, 2
        %v5454 = vadd.f32 %v5452, %v5453
        %v5455 = vrot.slane %v5454, 1
        %v5456 = vadd.f32 %v5454, %v5455
        %v5457 = vadd.f32 %v4984, %v4986
        %v5458 = vadd.f32 %v5457, %v4988
        %v5459 = vadd.f32 %v5458, %v4990
        %v5460 = vrot.slane %v5459, 4
        %v5461 = vadd.f32 %v5459, %v5460
        %v5462 = vrot.slane %v5461, 2
        %v5463 = vadd.f32 %v5461, %v5462
        %v5464 = vrot.slane %v5463, 1
        %v5465 = vadd.f32 %v5463, %v5464
        %v5466 = vadd.f32 %v4992, %v4994
        %v5467 = vadd.f32 %v5466, %v4996
        %v5468 = vadd.f32 %v5467, %v4998
        %v5469 = vrot.slane %v5468, 4
        %v5470 = vadd.f32 %v5468, %v5469
        %v5471 = vrot.slane %v5470, 2
        %v5472 = vadd.f32 %v5470, %v5471
        %v5473 = vrot.slane %v5472, 1
        %v5474 = vadd.f32 %v5472, %v5473
        %v5475 = vadd.f32 %v5000, %v5002
        %v5476 = vadd.f32 %v5475, %v5004
        %v5477 = vadd.f32 %v5476, %v5006
        %v5478 = vrot.slane %v5477, 4
        %v5479 = vadd.f32 %v5477, %v5478
        %v5480 = vrot.slane %v5479, 2
        %v5481 = vadd.f32 %v5479, %v5480
        %v5482 = vrot.slane %v5481, 1
        %v5483 = vadd.f32 %v5481, %v5482
        %v5484 = vadd.f32 %v5008, %v5010
        %v5485 = vadd.f32 %v5484, %v5012
        %v5486 = vadd.f32 %v5485, %v5014
        %v5487 = vrot.slane %v5486, 4
        %v5488 = vadd.f32 %v5486, %v5487
        %v5489 = vrot.slane %v5488, 2
        %v5490 = vadd.f32 %v5488, %v5489
        %v5491 = vrot.slane %v5490, 1
        %v5492 = vadd.f32 %v5490, %v5491
        %v5493 = vadd.f32 %v5016, %v5018
        %v5494 = vadd.f32 %v5493, %v5020
        %v5495 = vadd.f32 %v5494, %v5022
        %v5496 = vrot.slane %v5495, 4
        %v5497 = vadd.f32 %v5495, %v5496
        %v5498 = vrot.slane %v5497, 2
        %v5499 = vadd.f32 %v5497, %v5498
        %v5500 = vrot.slane %v5499, 1
        %v5501 = vadd.f32 %v5499, %v5500
        %v5502 = vadd.f32 %v5024, %v5026
        %v5503 = vadd.f32 %v5502, %v5028
        %v5504 = vadd.f32 %v5503, %v5030
        %v5505 = vrot.slane %v5504, 4
        %v5506 = vadd.f32 %v5504, %v5505
        %v5507 = vrot.slane %v5506, 2
        %v5508 = vadd.f32 %v5506, %v5507
        %v5509 = vrot.slane %v5508, 1
        %v5510 = vadd.f32 %v5508, %v5509
        %v5511 = vadd.f32 %v5032, %v5034
        %v5512 = vadd.f32 %v5511, %v5036
        %v5513 = vadd.f32 %v5512, %v5038
        %v5514 = vrot.slane %v5513, 4
        %v5515 = vadd.f32 %v5513, %v5514
        %v5516 = vrot.slane %v5515, 2
        %v5517 = vadd.f32 %v5515, %v5516
        %v5518 = vrot.slane %v5517, 1
        %v5519 = vadd.f32 %v5517, %v5518
        %v5520 = vadd.f32 %v5040, %v5042
        %v5521 = vadd.f32 %v5520, %v5044
        %v5522 = vadd.f32 %v5521, %v5046
        %v5523 = vrot.slane %v5522, 4
        %v5524 = vadd.f32 %v5522, %v5523
        %v5525 = vrot.slane %v5524, 2
        %v5526 = vadd.f32 %v5524, %v5525
        %v5527 = vrot.slane %v5526, 1
        %v5528 = vadd.f32 %v5526, %v5527
        %v5529 = vadd.f32 %v5048, %v5050
        %v5530 = vadd.f32 %v5529, %v5052
        %v5531 = vadd.f32 %v5530, %v5054
        %v5532 = vrot.slane %v5531, 4
        %v5533 = vadd.f32 %v5531, %v5532
        %v5534 = vrot.slane %v5533, 2
        %v5535 = vadd.f32 %v5533, %v5534
        %v5536 = vrot.slane %v5535, 1
        %v5537 = vadd.f32 %v5535, %v5536
        %v5538 = vadd.f32 %v5056, %v5058
        %v5539 = vadd.f32 %v5538, %v5060
        %v5540 = vadd.f32 %v5539, %v5062
        %v5541 = vrot.slane %v5540, 4
        %v5542 = vadd.f32 %v5540, %v5541
        %v5543 = vrot.slane %v5542, 2
        %v5544 = vadd.f32 %v5542, %v5543
        %v5545 = vrot.slane %v5544, 1
        %v5546 = vadd.f32 %v5544, %v5545
        %v5547 = vadd.f32 %v5064, %v5066
        %v5548 = vadd.f32 %v5547, %v5068
        %v5549 = vadd.f32 %v5548, %v5070
        %v5550 = vrot.slane %v5549, 4
        %v5551 = vadd.f32 %v5549, %v5550
        %v5552 = vrot.slane %v5551, 2
        %v5553 = vadd.f32 %v5551, %v5552
        %v5554 = vrot.slane %v5553, 1
        %v5555 = vadd.f32 %v5553, %v5554
        %v5556 = vadd.f32 %v5072, %v5074
        %v5557 = vadd.f32 %v5556, %v5076
        %v5558 = vadd.f32 %v5557, %v5078
        %v5559 = vrot.slane %v5558, 4
        %v5560 = vadd.f32 %v5558, %v5559
        %v5561 = vrot.slane %v5560, 2
        %v5562 = vadd.f32 %v5560, %v5561
        %v5563 = vrot.slane %v5562, 1
        %v5564 = vadd.f32 %v5562, %v5563
        %v5565 = vadd.f32 %v5080, %v5082
        %v5566 = vadd.f32 %v5565, %v5084
        %v5567 = vadd.f32 %v5566, %v5086
        %v5568 = vrot.slane %v5567, 4
        %v5569 = vadd.f32 %v5567, %v5568
        %v5570 = vrot.slane %v5569, 2
        %v5571 = vadd.f32 %v5569, %v5570
        %v5572 = vrot.slane %v5571, 1
        %v5573 = vadd.f32 %v5571, %v5572
        %v5574 = vadd.f32 %v5088, %v5090
        %v5575 = vadd.f32 %v5574, %v5092
        %v5576 = vadd.f32 %v5575, %v5094
        %v5577 = vrot.slane %v5576, 4
        %v5578 = vadd.f32 %v5576, %v5577
        %v5579 = vrot.slane %v5578, 2
        %v5580 = vadd.f32 %v5578, %v5579
        %v5581 = vrot.slane %v5580, 1
        %v5582 = vadd.f32 %v5580, %v5581
        %v5583 = vadd.f32 %v5096, %v5098
        %v5584 = vadd.f32 %v5583, %v5100
        %v5585 = vadd.f32 %v5584, %v5102
        %v5586 = vrot.slane %v5585, 4
        %v5587 = vadd.f32 %v5585, %v5586
        %v5588 = vrot.slane %v5587, 2
        %v5589 = vadd.f32 %v5587, %v5588
        %v5590 = vrot.slane %v5589, 1
        %v5591 = vadd.f32 %v5589, %v5590
        %v5592 = vadd.f32 %v5104, %v5106
        %v5593 = vadd.f32 %v5592, %v5108
        %v5594 = vadd.f32 %v5593, %v5110
        %v5595 = vrot.slane %v5594, 4
        %v5596 = vadd.f32 %v5594, %v5595
        %v5597 = vrot.slane %v5596, 2
        %v5598 = vadd.f32 %v5596, %v5597
        %v5599 = vrot.slane %v5598, 1
        %v5600 = vadd.f32 %v5598, %v5599
        %v5601 = vadd.f32 %v5112, %v5114
        %v5602 = vadd.f32 %v5601, %v5116
        %v5603 = vadd.f32 %v5602, %v5118
        %v5604 = vrot.slane %v5603, 4
        %v5605 = vadd.f32 %v5603, %v5604
        %v5606 = vrot.slane %v5605, 2
        %v5607 = vadd.f32 %v5605, %v5606
        %v5608 = vrot.slane %v5607, 1
        %v5609 = vadd.f32 %v5607, %v5608
        %v5610 = vadd.f32 %v5120, %v5122
        %v5611 = vadd.f32 %v5610, %v5124
        %v5612 = vadd.f32 %v5611, %v5126
        %v5613 = vrot.slane %v5612, 4
        %v5614 = vadd.f32 %v5612, %v5613
        %v5615 = vrot.slane %v5614, 2
        %v5616 = vadd.f32 %v5614, %v5615
        %v5617 = vrot.slane %v5616, 1
        %v5618 = vadd.f32 %v5616, %v5617
        %v5619 = vadd.f32 %v5128, %v5130
        %v5620 = vadd.f32 %v5619, %v5132
        %v5621 = vadd.f32 %v5620, %v5134
        %v5622 = vrot.slane %v5621, 4
        %v5623 = vadd.f32 %v5621, %v5622
        %v5624 = vrot.slane %v5623, 2
        %v5625 = vadd.f32 %v5623, %v5624
        %v5626 = vrot.slane %v5625, 1
        %v5627 = vadd.f32 %v5625, %v5626
        %v5628 = vadd.f32 %v5136, %v5138
        %v5629 = vadd.f32 %v5628, %v5140
        %v5630 = vadd.f32 %v5629, %v5142
        %v5631 = vrot.slane %v5630, 4
        %v5632 = vadd.f32 %v5630, %v5631
        %v5633 = vrot.slane %v5632, 2
        %v5634 = vadd.f32 %v5632, %v5633
        %v5635 = vrot.slane %v5634, 1
        %v5636 = vadd.f32 %v5634, %v5635
        %v5637 = vadd.f32 %v5144, %v5146
        %v5638 = vadd.f32 %v5637, %v5148
        %v5639 = vadd.f32 %v5638, %v5150
        %v5640 = vrot.slane %v5639, 4
        %v5641 = vadd.f32 %v5639, %v5640
        %v5642 = vrot.slane %v5641, 2
        %v5643 = vadd.f32 %v5641, %v5642
        %v5644 = vrot.slane %v5643, 1
        %v5645 = vadd.f32 %v5643, %v5644
        %v5646 = vadd.f32 %v5152, %v5154
        %v5647 = vadd.f32 %v5646, %v5156
        %v5648 = vadd.f32 %v5647, %v5158
        %v5649 = vrot.slane %v5648, 4
        %v5650 = vadd.f32 %v5648, %v5649
        %v5651 = vrot.slane %v5650, 2
        %v5652 = vadd.f32 %v5650, %v5651
        %v5653 = vrot.slane %v5652, 1
        %v5654 = vadd.f32 %v5652, %v5653
        %v5655 = vadd.f32 %v5160, %v5162
        %v5656 = vadd.f32 %v5655, %v5164
        %v5657 = vadd.f32 %v5656, %v5166
        %v5658 = vrot.slane %v5657, 4
        %v5659 = vadd.f32 %v5657, %v5658
        %v5660 = vrot.slane %v5659, 2
        %v5661 = vadd.f32 %v5659, %v5660
        %v5662 = vrot.slane %v5661, 1
        %v5663 = vadd.f32 %v5661, %v5662
        %v5664 = vadd.f32 %v5168, %v5170
        %v5665 = vadd.f32 %v5664, %v5172
        %v5666 = vadd.f32 %v5665, %v5174
        %v5667 = vrot.slane %v5666, 4
        %v5668 = vadd.f32 %v5666, %v5667
        %v5669 = vrot.slane %v5668, 2
        %v5670 = vadd.f32 %v5668, %v5669
        %v5671 = vrot.slane %v5670, 1
        %v5672 = vadd.f32 %v5670, %v5671
        %v5673 = vadd.f32 %v5176, %v5178
        %v5674 = vadd.f32 %v5673, %v5180
        %v5675 = vadd.f32 %v5674, %v5182
        %v5676 = vrot.slane %v5675, 4
        %v5677 = vadd.f32 %v5675, %v5676
        %v5678 = vrot.slane %v5677, 2
        %v5679 = vadd.f32 %v5677, %v5678
        %v5680 = vrot.slane %v5679, 1
        %v5681 = vadd.f32 %v5679, %v5680
        %v5682 = vadd.f32 %v5184, %v5186
        %v5683 = vadd.f32 %v5682, %v5188
        %v5684 = vadd.f32 %v5683, %v5190
        %v5685 = vrot.slane %v5684, 4
        %v5686 = vadd.f32 %v5684, %v5685
        %v5687 = vrot.slane %v5686, 2
        %v5688 = vadd.f32 %v5686, %v5687
        %v5689 = vrot.slane %v5688, 1
        %v5690 = vadd.f32 %v5688, %v5689
        %v5691 = vadd.f32 %v5192, %v5194
        %v5692 = vadd.f32 %v5691, %v5196
        %v5693 = vadd.f32 %v5692, %v5198
        %v5694 = vrot.slane %v5693, 4
        %v5695 = vadd.f32 %v5693, %v5694
        %v5696 = vrot.slane %v5695, 2
        %v5697 = vadd.f32 %v5695, %v5696
        %v5698 = vrot.slane %v5697, 1
        %v5699 = vadd.f32 %v5697, %v5698
        %v5700 = vadd.f32 %v5200, %v5202
        %v5701 = vadd.f32 %v5700, %v5204
        %v5702 = vadd.f32 %v5701, %v5206
        %v5703 = vrot.slane %v5702, 4
        %v5704 = vadd.f32 %v5702, %v5703
        %v5705 = vrot.slane %v5704, 2
        %v5706 = vadd.f32 %v5704, %v5705
        %v5707 = vrot.slane %v5706, 1
        %v5708 = vadd.f32 %v5706, %v5707
        %v5709 = vadd.f32 %v5208, %v5210
        %v5710 = vadd.f32 %v5709, %v5212
        %v5711 = vadd.f32 %v5710, %v5214
        %v5712 = vrot.slane %v5711, 4
        %v5713 = vadd.f32 %v5711, %v5712
        %v5714 = vrot.slane %v5713, 2
        %v5715 = vadd.f32 %v5713, %v5714
        %v5716 = vrot.slane %v5715, 1
        %v5717 = vadd.f32 %v5715, %v5716
        %v5718 = vadd.f32 %v5216, %v5218
        %v5719 = vadd.f32 %v5718, %v5220
        %v5720 = vadd.f32 %v5719, %v5222
        %v5721 = vrot.slane %v5720, 4
        %v5722 = vadd.f32 %v5720, %v5721
        %v5723 = vrot.slane %v5722, 2
        %v5724 = vadd.f32 %v5722, %v5723
        %v5725 = vrot.slane %v5724, 1
        %v5726 = vadd.f32 %v5724, %v5725
        %v5783 = vsel %vm4082, %v5240, %v5231
        %v5784 = vsel %vm4084, %v5249, %v5783
        %v5785 = vsel %vm4086, %v5258, %v5784
        %v5786 = vsel %vm4088, %v5267, %v5785
        %v5787 = vsel %vm4090, %v5276, %v5786
        %v5788 = vsel %vm4092, %v5285, %v5787
        %v5789 = vsel %vm4094, %v5294, %v5788
        %v5790 = vsel %vm4082, %v5312, %v5303
        %v5791 = vsel %vm4084, %v5321, %v5790
        %v5792 = vsel %vm4086, %v5330, %v5791
        %v5793 = vsel %vm4088, %v5339, %v5792
        %v5794 = vsel %vm4090, %v5348, %v5793
        %v5795 = vsel %vm4092, %v5357, %v5794
        %v5796 = vsel %vm4094, %v5366, %v5795
        %v5797 = vsel %vm4082, %v5384, %v5375
        %v5798 = vsel %vm4084, %v5393, %v5797
        %v5799 = vsel %vm4086, %v5402, %v5798
        %v5800 = vsel %vm4088, %v5411, %v5799
        %v5801 = vsel %vm4090, %v5420, %v5800
        %v5802 = vsel %vm4092, %v5429, %v5801
        %v5803 = vsel %vm4094, %v5438, %v5802
        %v5804 = vsel %vm4082, %v5456, %v5447
        %v5805 = vsel %vm4084, %v5465, %v5804
        %v5806 = vsel %vm4086, %v5474, %v5805
        %v5807 = vsel %vm4088, %v5483, %v5806
        %v5808 = vsel %vm4090, %v5492, %v5807
        %v5809 = vsel %vm4092, %v5501, %v5808
        %v5810 = vsel %vm4094, %v5510, %v5809
        %v5811 = vsel %vm4082, %v5528, %v5519
        %v5812 = vsel %vm4084, %v5537, %v5811
        %v5813 = vsel %vm4086, %v5546, %v5812
        %v5814 = vsel %vm4088, %v5555, %v5813
        %v5815 = vsel %vm4090, %v5564, %v5814
        %v5816 = vsel %vm4092, %v5573, %v5815
        %v5817 = vsel %vm4094, %v5582, %v5816
        %v5818 = vsel %vm4082, %v5600, %v5591
        %v5819 = vsel %vm4084, %v5609, %v5818
        %v5820 = vsel %vm4086, %v5618, %v5819
        %v5821 = vsel %vm4088, %v5627, %v5820
        %v5822 = vsel %vm4090, %v5636, %v5821
        %v5823 = vsel %vm4092, %v5645, %v5822
        %v5824 = vsel %vm4094, %v5654, %v5823
        %v5825 = vsel %vm4082, %v5672, %v5663
        %v5826 = vsel %vm4084, %v5681, %v5825
        %v5827 = vsel %vm4086, %v5690, %v5826
        %v5828 = vsel %vm4088, %v5699, %v5827
        %v5829 = vsel %vm4090, %v5708, %v5828
        %v5830 = vsel %vm4092, %v5717, %v5829
        %v5831 = vsel %vm4094, %v5726, %v5830
        %5839 = vrot.lane.b32.xlu0 %v5789, 64
        %v5840 = vpop.permute.xlu0 %5839
        %5841 = vrot.lane.b32.xlu0 %v5796, 64
        %v5842 = vpop.permute.xlu0 %5841
        %5843 = vrot.lane.b32.xlu0 %v5803, 64
        %v5844 = vpop.permute.xlu0 %5843
        %5845 = vrot.lane.b32.xlu0 %v5810, 64
        %v5846 = vpop.permute.xlu0 %5845
        %5847 = vrot.lane.b32.xlu0 %v5817, 64
        %v5848 = vpop.permute.xlu0 %5847
        %5849 = vrot.lane.b32.xlu0 %v5824, 64
        %v5850 = vpop.permute.xlu0 %5849
        %5851 = vrot.lane.b32.xlu0 %v5831, 64
        %v5852 = vpop.permute.xlu0 %5851
        %v5860 = vrot.slane %v5840, 1
        %v5861 = vrot.slane %v5840, 2
        %v5862 = vrot.slane %v5840, 3
        %v5863 = vrot.slane %v5840, 4
        %v5864 = vrot.slane %v5840, 5
        %v5865 = vrot.slane %v5840, 6
        %v5866 = vrot.slane %v5840, 7
        %v5867 = vrot.slane %v5842, 1
        %v5868 = vrot.slane %v5842, 2
        %v5869 = vrot.slane %v5842, 3
        %v5870 = vrot.slane %v5842, 4
        %v5871 = vrot.slane %v5842, 5
        %v5872 = vrot.slane %v5842, 6
        %v5873 = vrot.slane %v5842, 7
        %v5874 = vrot.slane %v5844, 1
        %v5875 = vrot.slane %v5844, 2
        %v5876 = vrot.slane %v5844, 3
        %v5877 = vrot.slane %v5844, 4
        %v5878 = vrot.slane %v5844, 5
        %v5879 = vrot.slane %v5844, 6
        %v5880 = vrot.slane %v5844, 7
        %v5881 = vrot.slane %v5846, 1
        %v5882 = vrot.slane %v5846, 2
        %v5883 = vrot.slane %v5846, 3
        %v5884 = vrot.slane %v5846, 4
        %v5885 = vrot.slane %v5846, 5
        %v5886 = vrot.slane %v5846, 6
        %v5887 = vrot.slane %v5846, 7
        %v5888 = vrot.slane %v5848, 1
        %v5889 = vrot.slane %v5848, 2
        %v5890 = vrot.slane %v5848, 3
        %v5891 = vrot.slane %v5848, 4
        %v5892 = vrot.slane %v5848, 5
        %v5893 = vrot.slane %v5848, 6
        %v5894 = vrot.slane %v5848, 7
        %v5895 = vrot.slane %v5850, 1
        %v5896 = vrot.slane %v5850, 2
        %v5897 = vrot.slane %v5850, 3
        %v5898 = vrot.slane %v5850, 4
        %v5899 = vrot.slane %v5850, 5
        %v5900 = vrot.slane %v5850, 6
        %v5901 = vrot.slane %v5850, 7
        %v5902 = vrot.slane %v5852, 1
        %v5903 = vrot.slane %v5852, 2
        %v5904 = vrot.slane %v5852, 3
        %v5905 = vrot.slane %v5852, 4
        %v5906 = vrot.slane %v5852, 5
        %v5907 = vrot.slane %v5852, 6
        %v5908 = vrot.slane %v5852, 7
        %v5965 = vadd.f32 %v5231, %v5840
        %v5966 = vadd.f32 %v5240, %v5860
        %v5967 = vadd.f32 %v5249, %v5861
        %v5968 = vadd.f32 %v5258, %v5862
        %v5969 = vadd.f32 %v5267, %v5863
        %v5970 = vadd.f32 %v5276, %v5864
        %v5971 = vadd.f32 %v5285, %v5865
        %v5972 = vadd.f32 %v5294, %v5866
        %v5973 = vadd.f32 %v5303, %v5842
        %v5974 = vadd.f32 %v5312, %v5867
        %v5975 = vadd.f32 %v5321, %v5868
        %v5976 = vadd.f32 %v5330, %v5869
        %v5977 = vadd.f32 %v5339, %v5870
        %v5978 = vadd.f32 %v5348, %v5871
        %v5979 = vadd.f32 %v5357, %v5872
        %v5980 = vadd.f32 %v5366, %v5873
        %v5981 = vadd.f32 %v5375, %v5844
        %v5982 = vadd.f32 %v5384, %v5874
        %v5983 = vadd.f32 %v5393, %v5875
        %v5984 = vadd.f32 %v5402, %v5876
        %v5985 = vadd.f32 %v5411, %v5877
        %v5986 = vadd.f32 %v5420, %v5878
        %v5987 = vadd.f32 %v5429, %v5879
        %v5988 = vadd.f32 %v5438, %v5880
        %v5989 = vadd.f32 %v5447, %v5846
        %v5990 = vadd.f32 %v5456, %v5881
        %v5991 = vadd.f32 %v5465, %v5882
        %v5992 = vadd.f32 %v5474, %v5883
        %v5993 = vadd.f32 %v5483, %v5884
        %v5994 = vadd.f32 %v5492, %v5885
        %v5995 = vadd.f32 %v5501, %v5886
        %v5996 = vadd.f32 %v5510, %v5887
        %v5997 = vadd.f32 %v5519, %v5848
        %v5998 = vadd.f32 %v5528, %v5888
        %v5999 = vadd.f32 %v5537, %v5889
        %v6000 = vadd.f32 %v5546, %v5890
        %v6001 = vadd.f32 %v5555, %v5891
        %v6002 = vadd.f32 %v5564, %v5892
        %v6003 = vadd.f32 %v5573, %v5893
        %v6004 = vadd.f32 %v5582, %v5894
        %v6005 = vadd.f32 %v5591, %v5850
        %v6006 = vadd.f32 %v5600, %v5895
        %v6007 = vadd.f32 %v5609, %v5896
        %v6008 = vadd.f32 %v5618, %v5897
        %v6009 = vadd.f32 %v5627, %v5898
        %v6010 = vadd.f32 %v5636, %v5899
        %v6011 = vadd.f32 %v5645, %v5900
        %v6012 = vadd.f32 %v5654, %v5901
        %v6013 = vadd.f32 %v5663, %v5852
        %v6014 = vadd.f32 %v5672, %v5902
        %v6015 = vadd.f32 %v5681, %v5903
        %v6016 = vadd.f32 %v5690, %v5904
        %v6017 = vadd.f32 %v5699, %v5905
        %v6018 = vadd.f32 %v5708, %v5906
        %v6019 = vadd.f32 %v5717, %v5907
        %v6020 = vadd.f32 %v5726, %v5908
        %v6021 = vlog2.pop %v5965
        %v6022 = vmul.f32 %v6021, 0.6931472
        %v6023 = vlog2.pop %v5966
        %v6024 = vmul.f32 %v6023, 0.6931472
        %v6025 = vlog2.pop %v5967
        %v6026 = vmul.f32 %v6025, 0.6931472
        %v6027 = vlog2.pop %v5968
        %v6028 = vmul.f32 %v6027, 0.6931472
        %v6029 = vlog2.pop %v5969
        %v6030 = vmul.f32 %v6029, 0.6931472
        %v6031 = vlog2.pop %v5970
        %v6032 = vmul.f32 %v6031, 0.6931472
        %v6033 = vlog2.pop %v5971
        %v6034 = vmul.f32 %v6033, 0.6931472
        %v6035 = vlog2.pop %v5972
        %v6036 = vmul.f32 %v6035, 0.6931472
        %v6037 = vlog2.pop %v5973
        %v6038 = vmul.f32 %v6037, 0.6931472
        %v6039 = vlog2.pop %v5974
        %v6040 = vmul.f32 %v6039, 0.6931472
        %v6041 = vlog2.pop %v5975
        %v6042 = vmul.f32 %v6041, 0.6931472
        %v6043 = vlog2.pop %v5976
        %v6044 = vmul.f32 %v6043, 0.6931472
        %v6045 = vlog2.pop %v5977
        %v6046 = vmul.f32 %v6045, 0.6931472
        %v6047 = vlog2.pop %v5978
        %v6048 = vmul.f32 %v6047, 0.6931472
        %v6049 = vlog2.pop %v5979
        %v6050 = vmul.f32 %v6049, 0.6931472
        %v6051 = vlog2.pop %v5980
        %v6052 = vmul.f32 %v6051, 0.6931472
        %v6053 = vlog2.pop %v5981
        %v6054 = vmul.f32 %v6053, 0.6931472
        %v6055 = vlog2.pop %v5982
        %v6056 = vmul.f32 %v6055, 0.6931472
        %v6057 = vlog2.pop %v5983
        %v6058 = vmul.f32 %v6057, 0.6931472
        %v6059 = vlog2.pop %v5984
        %v6060 = vmul.f32 %v6059, 0.6931472
        %v6061 = vlog2.pop %v5985
        %v6062 = vmul.f32 %v6061, 0.6931472
        %v6063 = vlog2.pop %v5986
        %v6064 = vmul.f32 %v6063, 0.6931472
        %v6065 = vlog2.pop %v5987
        %v6066 = vmul.f32 %v6065, 0.6931472
        %v6067 = vlog2.pop %v5988
        %v6068 = vmul.f32 %v6067, 0.6931472
        %v6069 = vlog2.pop %v5989
        %v6070 = vmul.f32 %v6069, 0.6931472
        %v6071 = vlog2.pop %v5990
        %v6072 = vmul.f32 %v6071, 0.6931472
        %v6073 = vlog2.pop %v5991
        %v6074 = vmul.f32 %v6073, 0.6931472
        %v6075 = vlog2.pop %v5992
        %v6076 = vmul.f32 %v6075, 0.6931472
        %v6077 = vlog2.pop %v5993
        %v6078 = vmul.f32 %v6077, 0.6931472
        %v6079 = vlog2.pop %v5994
        %v6080 = vmul.f32 %v6079, 0.6931472
        %v6081 = vlog2.pop %v5995
        %v6082 = vmul.f32 %v6081, 0.6931472
        %v6083 = vlog2.pop %v5996
        %v6084 = vmul.f32 %v6083, 0.6931472
        %v6085 = vlog2.pop %v5997
        %v6086 = vmul.f32 %v6085, 0.6931472
        %v6087 = vlog2.pop %v5998
        %v6088 = vmul.f32 %v6087, 0.6931472
        %v6089 = vlog2.pop %v5999
        %v6090 = vmul.f32 %v6089, 0.6931472
        %v6091 = vlog2.pop %v6000
        %v6092 = vmul.f32 %v6091, 0.6931472
        %v6093 = vlog2.pop %v6001
        %v6094 = vmul.f32 %v6093, 0.6931472
        %v6095 = vlog2.pop %v6002
        %v6096 = vmul.f32 %v6095, 0.6931472
        %v6097 = vlog2.pop %v6003
        %v6098 = vmul.f32 %v6097, 0.6931472
        %v6099 = vlog2.pop %v6004
        %v6100 = vmul.f32 %v6099, 0.6931472
        %v6101 = vlog2.pop %v6005
        %v6102 = vmul.f32 %v6101, 0.6931472
        %v6103 = vlog2.pop %v6006
        %v6104 = vmul.f32 %v6103, 0.6931472
        %v6105 = vlog2.pop %v6007
        %v6106 = vmul.f32 %v6105, 0.6931472
        %v6107 = vlog2.pop %v6008
        %v6108 = vmul.f32 %v6107, 0.6931472
        %v6109 = vlog2.pop %v6009
        %v6110 = vmul.f32 %v6109, 0.6931472
        %v6111 = vlog2.pop %v6010
        %v6112 = vmul.f32 %v6111, 0.6931472
        %v6113 = vlog2.pop %v6011
        %v6114 = vmul.f32 %v6113, 0.6931472
        %v6115 = vlog2.pop %v6012
        %v6116 = vmul.f32 %v6115, 0.6931472
        %v6117 = vlog2.pop %v6013
        %v6118 = vmul.f32 %v6117, 0.6931472
        %v6119 = vlog2.pop %v6014
        %v6120 = vmul.f32 %v6119, 0.6931472
        %v6121 = vlog2.pop %v6015
        %v6122 = vmul.f32 %v6121, 0.6931472
        %v6123 = vlog2.pop %v6016
        %v6124 = vmul.f32 %v6123, 0.6931472
        %v6125 = vlog2.pop %v6017
        %v6126 = vmul.f32 %v6125, 0.6931472
        %v6127 = vlog2.pop %v6018
        %v6128 = vmul.f32 %v6127, 0.6931472
        %v6129 = vlog2.pop %v6019
        %v6130 = vmul.f32 %v6129, 0.6931472
        %v6131 = vlog2.pop %v6020
        %v6132 = vmul.f32 %v6131, 0.6931472
        %v6133 = vlaneseq
        %v6134 = vshrl.u32 %v6133, 7
        %v6135 = vsub.s32 0, %v6134
        %v6136 = vrot.slane %v6022, %v6135
        %v6137 = vlaneseq
        %v6138 = vshrl.u32 %v6137, 7
        %v6139 = vsub.s32 0, %v6138
        %v6140 = vrot.slane %v6024, %v6139
        %v6141 = vlaneseq
        %v6142 = vshrl.u32 %v6141, 7
        %v6143 = vsub.s32 0, %v6142
        %v6144 = vrot.slane %v6026, %v6143
        %v6145 = vlaneseq
        %v6146 = vshrl.u32 %v6145, 7
        %v6147 = vsub.s32 0, %v6146
        %v6148 = vrot.slane %v6028, %v6147
        %v6149 = vlaneseq
        %v6150 = vshrl.u32 %v6149, 7
        %v6151 = vsub.s32 0, %v6150
        %v6152 = vrot.slane %v6030, %v6151
        %v6153 = vlaneseq
        %v6154 = vshrl.u32 %v6153, 7
        %v6155 = vsub.s32 0, %v6154
        %v6156 = vrot.slane %v6032, %v6155
        %v6157 = vlaneseq
        %v6158 = vshrl.u32 %v6157, 7
        %v6159 = vsub.s32 0, %v6158
        %v6160 = vrot.slane %v6034, %v6159
        %v6161 = vlaneseq
        %v6162 = vshrl.u32 %v6161, 7
        %v6163 = vsub.s32 0, %v6162
        %v6164 = vrot.slane %v6036, %v6163
        %v6165 = vlaneseq
        %v6166 = vshrl.u32 %v6165, 7
        %v6167 = vsub.s32 0, %v6166
        %v6168 = vrot.slane %v6038, %v6167
        %v6169 = vlaneseq
        %v6170 = vshrl.u32 %v6169, 7
        %v6171 = vsub.s32 0, %v6170
        %v6172 = vrot.slane %v6040, %v6171
        %v6173 = vlaneseq
        %v6174 = vshrl.u32 %v6173, 7
        %v6175 = vsub.s32 0, %v6174
        %v6176 = vrot.slane %v6042, %v6175
        %v6177 = vlaneseq
        %v6178 = vshrl.u32 %v6177, 7
        %v6179 = vsub.s32 0, %v6178
        %v6180 = vrot.slane %v6044, %v6179
        %v6181 = vlaneseq
        %v6182 = vshrl.u32 %v6181, 7
        %v6183 = vsub.s32 0, %v6182
        %v6184 = vrot.slane %v6046, %v6183
        %v6185 = vlaneseq
        %v6186 = vshrl.u32 %v6185, 7
        %v6187 = vsub.s32 0, %v6186
        %v6188 = vrot.slane %v6048, %v6187
        %v6189 = vlaneseq
        %v6190 = vshrl.u32 %v6189, 7
        %v6191 = vsub.s32 0, %v6190
        %v6192 = vrot.slane %v6050, %v6191
        %v6193 = vlaneseq
        %v6194 = vshrl.u32 %v6193, 7
        %v6195 = vsub.s32 0, %v6194
        %v6196 = vrot.slane %v6052, %v6195
        %v6197 = vlaneseq
        %v6198 = vshrl.u32 %v6197, 7
        %v6199 = vsub.s32 0, %v6198
        %v6200 = vrot.slane %v6054, %v6199
        %v6201 = vlaneseq
        %v6202 = vshrl.u32 %v6201, 7
        %v6203 = vsub.s32 0, %v6202
        %v6204 = vrot.slane %v6056, %v6203
        %v6205 = vlaneseq
        %v6206 = vshrl.u32 %v6205, 7
        %v6207 = vsub.s32 0, %v6206
        %v6208 = vrot.slane %v6058, %v6207
        %v6209 = vlaneseq
        %v6210 = vshrl.u32 %v6209, 7
        %v6211 = vsub.s32 0, %v6210
        %v6212 = vrot.slane %v6060, %v6211
        %v6213 = vlaneseq
        %v6214 = vshrl.u32 %v6213, 7
        %v6215 = vsub.s32 0, %v6214
        %v6216 = vrot.slane %v6062, %v6215
        %v6217 = vlaneseq
        %v6218 = vshrl.u32 %v6217, 7
        %v6219 = vsub.s32 0, %v6218
        %v6220 = vrot.slane %v6064, %v6219
        %v6221 = vlaneseq
        %v6222 = vshrl.u32 %v6221, 7
        %v6223 = vsub.s32 0, %v6222
        %v6224 = vrot.slane %v6066, %v6223
        %v6225 = vlaneseq
        %v6226 = vshrl.u32 %v6225, 7
        %v6227 = vsub.s32 0, %v6226
        %v6228 = vrot.slane %v6068, %v6227
        %v6229 = vlaneseq
        %v6230 = vshrl.u32 %v6229, 7
        %v6231 = vsub.s32 0, %v6230
        %v6232 = vrot.slane %v6070, %v6231
        %v6233 = vlaneseq
        %v6234 = vshrl.u32 %v6233, 7
        %v6235 = vsub.s32 0, %v6234
        %v6236 = vrot.slane %v6072, %v6235
        %v6237 = vlaneseq
        %v6238 = vshrl.u32 %v6237, 7
        %v6239 = vsub.s32 0, %v6238
        %v6240 = vrot.slane %v6074, %v6239
        %v6241 = vlaneseq
        %v6242 = vshrl.u32 %v6241, 7
        %v6243 = vsub.s32 0, %v6242
        %v6244 = vrot.slane %v6076, %v6243
        %v6245 = vlaneseq
        %v6246 = vshrl.u32 %v6245, 7
        %v6247 = vsub.s32 0, %v6246
        %v6248 = vrot.slane %v6078, %v6247
        %v6249 = vlaneseq
        %v6250 = vshrl.u32 %v6249, 7
        %v6251 = vsub.s32 0, %v6250
        %v6252 = vrot.slane %v6080, %v6251
        %v6253 = vlaneseq
        %v6254 = vshrl.u32 %v6253, 7
        %v6255 = vsub.s32 0, %v6254
        %v6256 = vrot.slane %v6082, %v6255
        %v6257 = vlaneseq
        %v6258 = vshrl.u32 %v6257, 7
        %v6259 = vsub.s32 0, %v6258
        %v6260 = vrot.slane %v6084, %v6259
        %v6261 = vlaneseq
        %v6262 = vshrl.u32 %v6261, 7
        %v6263 = vsub.s32 0, %v6262
        %v6264 = vrot.slane %v6086, %v6263
        %v6265 = vlaneseq
        %v6266 = vshrl.u32 %v6265, 7
        %v6267 = vsub.s32 0, %v6266
        %v6268 = vrot.slane %v6088, %v6267
        %v6269 = vlaneseq
        %v6270 = vshrl.u32 %v6269, 7
        %v6271 = vsub.s32 0, %v6270
        %v6272 = vrot.slane %v6090, %v6271
        %v6273 = vlaneseq
        %v6274 = vshrl.u32 %v6273, 7
        %v6275 = vsub.s32 0, %v6274
        %v6276 = vrot.slane %v6092, %v6275
        %v6277 = vlaneseq
        %v6278 = vshrl.u32 %v6277, 7
        %v6279 = vsub.s32 0, %v6278
        %v6280 = vrot.slane %v6094, %v6279
        %v6281 = vlaneseq
        %v6282 = vshrl.u32 %v6281, 7
        %v6283 = vsub.s32 0, %v6282
        %v6284 = vrot.slane %v6096, %v6283
        %v6285 = vlaneseq
        %v6286 = vshrl.u32 %v6285, 7
        %v6287 = vsub.s32 0, %v6286
        %v6288 = vrot.slane %v6098, %v6287
        %v6289 = vlaneseq
        %v6290 = vshrl.u32 %v6289, 7
        %v6291 = vsub.s32 0, %v6290
        %v6292 = vrot.slane %v6100, %v6291
        %v6293 = vlaneseq
        %v6294 = vshrl.u32 %v6293, 7
        %v6295 = vsub.s32 0, %v6294
        %v6296 = vrot.slane %v6102, %v6295
        %v6297 = vlaneseq
        %v6298 = vshrl.u32 %v6297, 7
        %v6299 = vsub.s32 0, %v6298
        %v6300 = vrot.slane %v6104, %v6299
        %v6301 = vlaneseq
        %v6302 = vshrl.u32 %v6301, 7
        %v6303 = vsub.s32 0, %v6302
        %v6304 = vrot.slane %v6106, %v6303
        %v6305 = vlaneseq
        %v6306 = vshrl.u32 %v6305, 7
        %v6307 = vsub.s32 0, %v6306
        %v6308 = vrot.slane %v6108, %v6307
        %v6309 = vlaneseq
        %v6310 = vshrl.u32 %v6309, 7
        %v6311 = vsub.s32 0, %v6310
        %v6312 = vrot.slane %v6110, %v6311
        %v6313 = vlaneseq
        %v6314 = vshrl.u32 %v6313, 7
        %v6315 = vsub.s32 0, %v6314
        %v6316 = vrot.slane %v6112, %v6315
        %v6317 = vlaneseq
        %v6318 = vshrl.u32 %v6317, 7
        %v6319 = vsub.s32 0, %v6318
        %v6320 = vrot.slane %v6114, %v6319
        %v6321 = vlaneseq
        %v6322 = vshrl.u32 %v6321, 7
        %v6323 = vsub.s32 0, %v6322
        %v6324 = vrot.slane %v6116, %v6323
        %v6325 = vlaneseq
        %v6326 = vshrl.u32 %v6325, 7
        %v6327 = vsub.s32 0, %v6326
        %v6328 = vrot.slane %v6118, %v6327
        %v6329 = vlaneseq
        %v6330 = vshrl.u32 %v6329, 7
        %v6331 = vsub.s32 0, %v6330
        %v6332 = vrot.slane %v6120, %v6331
        %v6333 = vlaneseq
        %v6334 = vshrl.u32 %v6333, 7
        %v6335 = vsub.s32 0, %v6334
        %v6336 = vrot.slane %v6122, %v6335
        %v6337 = vlaneseq
        %v6338 = vshrl.u32 %v6337, 7
        %v6339 = vsub.s32 0, %v6338
        %v6340 = vrot.slane %v6124, %v6339
        %v6341 = vlaneseq
        %v6342 = vshrl.u32 %v6341, 7
        %v6343 = vsub.s32 0, %v6342
        %v6344 = vrot.slane %v6126, %v6343
        %v6345 = vlaneseq
        %v6346 = vshrl.u32 %v6345, 7
        %v6347 = vsub.s32 0, %v6346
        %v6348 = vrot.slane %v6128, %v6347
        %v6349 = vlaneseq
        %v6350 = vshrl.u32 %v6349, 7
        %v6351 = vsub.s32 0, %v6350
        %v6352 = vrot.slane %v6130, %v6351
        %v6353 = vlaneseq
        %v6354 = vshrl.u32 %v6353, 7
        %v6355 = vsub.s32 0, %v6354
        %v6356 = vrot.slane %v6132, %v6355
        %v6357 = vsub.f32 %v4551, %v6136
        %v6358 = vsub.f32 %v4552, %v6136
        %v6359 = vsub.f32 %v4553, %v6136
        %v6360 = vsub.f32 %v4554, %v6136
        %v6361 = vsub.f32 %v4555, %v6140
        %v6362 = vsub.f32 %v4556, %v6140
        %v6363 = vsub.f32 %v4557, %v6140
        %v6364 = vsub.f32 %v4558, %v6140
        %v6365 = vsub.f32 %v4559, %v6144
        %v6366 = vsub.f32 %v4560, %v6144
        %v6367 = vsub.f32 %v4561, %v6144
        %v6368 = vsub.f32 %v4562, %v6144
        %v6369 = vsub.f32 %v4563, %v6148
        %v6370 = vsub.f32 %v4564, %v6148
        %v6371 = vsub.f32 %v4565, %v6148
        %v6372 = vsub.f32 %v4566, %v6148
        %v6373 = vsub.f32 %v4567, %v6152
        %v6374 = vsub.f32 %v4568, %v6152
        %v6375 = vsub.f32 %v4569, %v6152
        %v6376 = vsub.f32 %v4570, %v6152
        %v6377 = vsub.f32 %v4571, %v6156
        %v6378 = vsub.f32 %v4572, %v6156
        %v6379 = vsub.f32 %v4573, %v6156
        %v6380 = vsub.f32 %v4574, %v6156
        %v6381 = vsub.f32 %v4575, %v6160
        %v6382 = vsub.f32 %v4576, %v6160
        %v6383 = vsub.f32 %v4577, %v6160
        %v6384 = vsub.f32 %v4578, %v6160
        %v6385 = vsub.f32 %v4579, %v6164
        %v6386 = vsub.f32 %v4580, %v6164
        %v6387 = vsub.f32 %v4581, %v6164
        %v6388 = vsub.f32 %v4582, %v6164
        %v6389 = vsub.f32 %v4583, %v6168
        %v6390 = vsub.f32 %v4584, %v6168
        %v6391 = vsub.f32 %v4585, %v6168
        %v6392 = vsub.f32 %v4586, %v6168
        %v6393 = vsub.f32 %v4587, %v6172
        %v6394 = vsub.f32 %v4588, %v6172
        %v6395 = vsub.f32 %v4589, %v6172
        %v6396 = vsub.f32 %v4590, %v6172
        %v6397 = vsub.f32 %v4591, %v6176
        %v6398 = vsub.f32 %v4592, %v6176
        %v6399 = vsub.f32 %v4593, %v6176
        %v6400 = vsub.f32 %v4594, %v6176
        %v6401 = vsub.f32 %v4595, %v6180
        %v6402 = vsub.f32 %v4596, %v6180
        %v6403 = vsub.f32 %v4597, %v6180
        %v6404 = vsub.f32 %v4598, %v6180
        %v6405 = vsub.f32 %v4599, %v6184
        %v6406 = vsub.f32 %v4600, %v6184
        %v6407 = vsub.f32 %v4601, %v6184
        %v6408 = vsub.f32 %v4602, %v6184
        %v6409 = vsub.f32 %v4603, %v6188
        %v6410 = vsub.f32 %v4604, %v6188
        %v6411 = vsub.f32 %v4605, %v6188
        %v6412 = vsub.f32 %v4606, %v6188
        %v6413 = vsub.f32 %v4607, %v6192
        %v6414 = vsub.f32 %v4608, %v6192
        %v6415 = vsub.f32 %v4609, %v6192
        %v6416 = vsub.f32 %v4610, %v6192
        %v6417 = vsub.f32 %v4611, %v6196
        %v6418 = vsub.f32 %v4612, %v6196
        %v6419 = vsub.f32 %v4613, %v6196
        %v6420 = vsub.f32 %v4614, %v6196
        %v6421 = vsub.f32 %v4615, %v6200
        %v6422 = vsub.f32 %v4616, %v6200
        %v6423 = vsub.f32 %v4617, %v6200
        %v6424 = vsub.f32 %v4618, %v6200
        %v6425 = vsub.f32 %v4619, %v6204
        %v6426 = vsub.f32 %v4620, %v6204
        %v6427 = vsub.f32 %v4621, %v6204
        %v6428 = vsub.f32 %v4622, %v6204
        %v6429 = vsub.f32 %v4623, %v6208
        %v6430 = vsub.f32 %v4624, %v6208
        %v6431 = vsub.f32 %v4625, %v6208
        %v6432 = vsub.f32 %v4626, %v6208
        %v6433 = vsub.f32 %v4627, %v6212
        %v6434 = vsub.f32 %v4628, %v6212
        %v6435 = vsub.f32 %v4629, %v6212
        %v6436 = vsub.f32 %v4630, %v6212
        %v6437 = vsub.f32 %v4631, %v6216
        %v6438 = vsub.f32 %v4632, %v6216
        %v6439 = vsub.f32 %v4633, %v6216
        %v6440 = vsub.f32 %v4634, %v6216
        %v6441 = vsub.f32 %v4635, %v6220
        %v6442 = vsub.f32 %v4636, %v6220
        %v6443 = vsub.f32 %v4637, %v6220
        %v6444 = vsub.f32 %v4638, %v6220
        %v6445 = vsub.f32 %v4639, %v6224
        %v6446 = vsub.f32 %v4640, %v6224
        %v6447 = vsub.f32 %v4641, %v6224
        %v6448 = vsub.f32 %v4642, %v6224
        %v6449 = vsub.f32 %v4643, %v6228
        %v6450 = vsub.f32 %v4644, %v6228
        %v6451 = vsub.f32 %v4645, %v6228
        %v6452 = vsub.f32 %v4646, %v6228
        %v6453 = vsub.f32 %v4647, %v6232
        %v6454 = vsub.f32 %v4648, %v6232
        %v6455 = vsub.f32 %v4649, %v6232
        %v6456 = vsub.f32 %v4650, %v6232
        %v6457 = vsub.f32 %v4651, %v6236
        %v6458 = vsub.f32 %v4652, %v6236
        %v6459 = vsub.f32 %v4653, %v6236
        %v6460 = vsub.f32 %v4654, %v6236
        %v6461 = vsub.f32 %v4655, %v6240
        %v6462 = vsub.f32 %v4656, %v6240
        %v6463 = vsub.f32 %v4657, %v6240
        %v6464 = vsub.f32 %v4658, %v6240
        %v6465 = vsub.f32 %v4659, %v6244
        %v6466 = vsub.f32 %v4660, %v6244
        %v6467 = vsub.f32 %v4661, %v6244
        %v6468 = vsub.f32 %v4662, %v6244
        %v6469 = vsub.f32 %v4663, %v6248
        %v6470 = vsub.f32 %v4664, %v6248
        %v6471 = vsub.f32 %v4665, %v6248
        %v6472 = vsub.f32 %v4666, %v6248
        %v6473 = vsub.f32 %v4667, %v6252
        %v6474 = vsub.f32 %v4668, %v6252
        %v6475 = vsub.f32 %v4669, %v6252
        %v6476 = vsub.f32 %v4670, %v6252
        %v6477 = vsub.f32 %v4671, %v6256
        %v6478 = vsub.f32 %v4672, %v6256
        %v6479 = vsub.f32 %v4673, %v6256
        %v6480 = vsub.f32 %v4674, %v6256
        %v6481 = vsub.f32 %v4675, %v6260
        %v6482 = vsub.f32 %v4676, %v6260
        %v6483 = vsub.f32 %v4677, %v6260
        %v6484 = vsub.f32 %v4678, %v6260
        %v6485 = vsub.f32 %v4679, %v6264
        %v6486 = vsub.f32 %v4680, %v6264
        %v6487 = vsub.f32 %v4681, %v6264
        %v6488 = vsub.f32 %v4682, %v6264
        %v6489 = vsub.f32 %v4683, %v6268
        %v6490 = vsub.f32 %v4684, %v6268
        %v6491 = vsub.f32 %v4685, %v6268
        %v6492 = vsub.f32 %v4686, %v6268
        %v6493 = vsub.f32 %v4687, %v6272
        %v6494 = vsub.f32 %v4688, %v6272
        %v6495 = vsub.f32 %v4689, %v6272
        %v6496 = vsub.f32 %v4690, %v6272
        %v6497 = vsub.f32 %v4691, %v6276
        %v6498 = vsub.f32 %v4692, %v6276
        %v6499 = vsub.f32 %v4693, %v6276
        %v6500 = vsub.f32 %v4694, %v6276
        %v6501 = vsub.f32 %v4695, %v6280
        %v6502 = vsub.f32 %v4696, %v6280
        %v6503 = vsub.f32 %v4697, %v6280
        %v6504 = vsub.f32 %v4698, %v6280
        %v6505 = vsub.f32 %v4699, %v6284
        %v6506 = vsub.f32 %v4700, %v6284
        %v6507 = vsub.f32 %v4701, %v6284
        %v6508 = vsub.f32 %v4702, %v6284
        %v6509 = vsub.f32 %v4703, %v6288
        %v6510 = vsub.f32 %v4704, %v6288
        %v6511 = vsub.f32 %v4705, %v6288
        %v6512 = vsub.f32 %v4706, %v6288
        %v6513 = vsub.f32 %v4707, %v6292
        %v6514 = vsub.f32 %v4708, %v6292
        %v6515 = vsub.f32 %v4709, %v6292
        %v6516 = vsub.f32 %v4710, %v6292
        %v6517 = vsub.f32 %v4711, %v6296
        %v6518 = vsub.f32 %v4712, %v6296
        %v6519 = vsub.f32 %v4713, %v6296
        %v6520 = vsub.f32 %v4714, %v6296
        %v6521 = vsub.f32 %v4715, %v6300
        %v6522 = vsub.f32 %v4716, %v6300
        %v6523 = vsub.f32 %v4717, %v6300
        %v6524 = vsub.f32 %v4718, %v6300
        %v6525 = vsub.f32 %v4719, %v6304
        %v6526 = vsub.f32 %v4720, %v6304
        %v6527 = vsub.f32 %v4721, %v6304
        %v6528 = vsub.f32 %v4722, %v6304
        %v6529 = vsub.f32 %v4723, %v6308
        %v6530 = vsub.f32 %v4724, %v6308
        %v6531 = vsub.f32 %v4725, %v6308
        %v6532 = vsub.f32 %v4726, %v6308
        %v6533 = vsub.f32 %v4727, %v6312
        %v6534 = vsub.f32 %v4728, %v6312
        %v6535 = vsub.f32 %v4729, %v6312
        %v6536 = vsub.f32 %v4730, %v6312
        %v6537 = vsub.f32 %v4731, %v6316
        %v6538 = vsub.f32 %v4732, %v6316
        %v6539 = vsub.f32 %v4733, %v6316
        %v6540 = vsub.f32 %v4734, %v6316
        %v6541 = vsub.f32 %v4735, %v6320
        %v6542 = vsub.f32 %v4736, %v6320
        %v6543 = vsub.f32 %v4737, %v6320
        %v6544 = vsub.f32 %v4738, %v6320
        %v6545 = vsub.f32 %v4739, %v6324
        %v6546 = vsub.f32 %v4740, %v6324
        %v6547 = vsub.f32 %v4741, %v6324
        %v6548 = vsub.f32 %v4742, %v6324
        %v6549 = vsub.f32 %v4743, %v6328
        %v6550 = vsub.f32 %v4744, %v6328
        %v6551 = vsub.f32 %v4745, %v6328
        %v6552 = vsub.f32 %v4746, %v6328
        %v6553 = vsub.f32 %v4747, %v6332
        %v6554 = vsub.f32 %v4748, %v6332
        %v6555 = vsub.f32 %v4749, %v6332
        %v6556 = vsub.f32 %v4750, %v6332
        %v6557 = vsub.f32 %v4751, %v6336
        %v6558 = vsub.f32 %v4752, %v6336
        %v6559 = vsub.f32 %v4753, %v6336
        %v6560 = vsub.f32 %v4754, %v6336
        %v6561 = vsub.f32 %v4755, %v6340
        %v6562 = vsub.f32 %v4756, %v6340
        %v6563 = vsub.f32 %v4757, %v6340
        %v6564 = vsub.f32 %v4758, %v6340
        %v6565 = vsub.f32 %v4759, %v6344
        %v6566 = vsub.f32 %v4760, %v6344
        %v6567 = vsub.f32 %v4761, %v6344
        %v6568 = vsub.f32 %v4762, %v6344
        %v6569 = vsub.f32 %v4763, %v6348
        %v6570 = vsub.f32 %v4764, %v6348
        %v6571 = vsub.f32 %v4765, %v6348
        %v6572 = vsub.f32 %v4766, %v6348
        %v6573 = vsub.f32 %v4767, %v6352
        %v6574 = vsub.f32 %v4768, %v6352
        %v6575 = vsub.f32 %v4769, %v6352
        %v6576 = vsub.f32 %v4770, %v6352
        %v6577 = vsub.f32 %v4771, %v6356
        %v6578 = vsub.f32 %v4772, %v6356
        %v6579 = vsub.f32 %v4773, %v6356
        %v6580 = vsub.f32 %v4774, %v6356
        %6581 = vst [vmem:[%s352] sm:$0xff] %v6357
        %6582 = vst [vmem:[%s352 + $0x8] sm:$0xff] %v6358
        %6583 = vst [vmem:[%s352 + $0x10] sm:$0xff] %v6359
        %6584 = vst [vmem:[%s352 + $0x18] sm:$0xff] %v6360
        %6585 = vst [vmem:[%s352 + $0x20] sm:$0xff] %v6361
        %6586 = vst [vmem:[%s352 + $0x28] sm:$0xff] %v6362
        %6587 = vst [vmem:[%s352 + $0x30] sm:$0xff] %v6363
        %6588 = vst [vmem:[%s352 + $0x38] sm:$0xff] %v6364
        %6589 = vst [vmem:[%s352 + $0x40] sm:$0xff] %v6365
        %6590 = vst [vmem:[%s352 + $0x48] sm:$0xff] %v6366
        %6591 = vst [vmem:[%s352 + $0x50] sm:$0xff] %v6367
        %6592 = vst [vmem:[%s352 + $0x58] sm:$0xff] %v6368
        %6593 = vst [vmem:[%s352 + $0x60] sm:$0xff] %v6369
        %6594 = vst [vmem:[%s352 + $0x68] sm:$0xff] %v6370
        %6595 = vst [vmem:[%s352 + $0x70] sm:$0xff] %v6371
        %6596 = vst [vmem:[%s352 + $0x78] sm:$0xff] %v6372
        %6597 = vst [vmem:[%s352 + $0x80] sm:$0xff] %v6373
        %6598 = vst [vmem:[%s352 + $0x88] sm:$0xff] %v6374
        %6599 = vst [vmem:[%s352 + $0x90] sm:$0xff] %v6375
        %6600 = vst [vmem:[%s352 + $0x98] sm:$0xff] %v6376
        %6601 = vst [vmem:[%s352 + $0xa0] sm:$0xff] %v6377
        %6602 = vst [vmem:[%s352 + $0xa8] sm:$0xff] %v6378
        %6603 = vst [vmem:[%s352 + $0xb0] sm:$0xff] %v6379
        %6604 = vst [vmem:[%s352 + $0xb8] sm:$0xff] %v6380
        %6605 = vst [vmem:[%s352 + $0xc0] sm:$0xff] %v6381
        %6606 = vst [vmem:[%s352 + $0xc8] sm:$0xff] %v6382
        %6607 = vst [vmem:[%s352 + $0xd0] sm:$0xff] %v6383
        %6608 = vst [vmem:[%s352 + $0xd8] sm:$0xff] %v6384
        %6609 = vst [vmem:[%s352 + $0xe0] sm:$0xff] %v6385
        %6610 = vst [vmem:[%s352 + $0xe8] sm:$0xff] %v6386
        %6611 = vst [vmem:[%s352 + $0xf0] sm:$0xff] %v6387
        %6612 = vst [vmem:[%s352 + $0xf8] sm:$0xff] %v6388
        %6613 = vst [vmem:[%s352 + $0x100] sm:$0xff] %v6389
        %6614 = vst [vmem:[%s352 + $0x108] sm:$0xff] %v6390
        %6615 = vst [vmem:[%s352 + $0x110] sm:$0xff] %v6391
        %6616 = vst [vmem:[%s352 + $0x118] sm:$0xff] %v6392
        %6617 = vst [vmem:[%s352 + $0x120] sm:$0xff] %v6393
        %6618 = vst [vmem:[%s352 + $0x128] sm:$0xff] %v6394
        %6619 = vst [vmem:[%s352 + $0x130] sm:$0xff] %v6395
        %6620 = vst [vmem:[%s352 + $0x138] sm:$0xff] %v6396
        %6621 = vst [vmem:[%s352 + $0x140] sm:$0xff] %v6397
        %6622 = vst [vmem:[%s352 + $0x148] sm:$0xff] %v6398
        %6623 = vst [vmem:[%s352 + $0x150] sm:$0xff] %v6399
        %6624 = vst [vmem:[%s352 + $0x158] sm:$0xff] %v6400
        %6625 = vst [vmem:[%s352 + $0x160] sm:$0xff] %v6401
        %6626 = vst [vmem:[%s352 + $0x168] sm:$0xff] %v6402
        %6627 = vst [vmem:[%s352 + $0x170] sm:$0xff] %v6403
        %6628 = vst [vmem:[%s352 + $0x178] sm:$0xff] %v6404
        %6629 = vst [vmem:[%s352 + $0x180] sm:$0xff] %v6405
        %6630 = vst [vmem:[%s352 + $0x188] sm:$0xff] %v6406
        %6631 = vst [vmem:[%s352 + $0x190] sm:$0xff] %v6407
        %6632 = vst [vmem:[%s352 + $0x198] sm:$0xff] %v6408
        %6633 = vst [vmem:[%s352 + $0x1a0] sm:$0xff] %v6409
        %6634 = vst [vmem:[%s352 + $0x1a8] sm:$0xff] %v6410
        %6635 = vst [vmem:[%s352 + $0x1b0] sm:$0xff] %v6411
        %6636 = vst [vmem:[%s352 + $0x1b8] sm:$0xff] %v6412
        %6637 = vst [vmem:[%s352 + $0x1c0] sm:$0xff] %v6413
        %6638 = vst [vmem:[%s352 + $0x1c8] sm:$0xff] %v6414
        %6639 = vst [vmem:[%s352 + $0x1d0] sm:$0xff] %v6415
        %6640 = vst [vmem:[%s352 + $0x1d8] sm:$0xff] %v6416
        %6641 = vst [vmem:[%s352 + $0x1e0] sm:$0xff] %v6417
        %6642 = vst [vmem:[%s352 + $0x1e8] sm:$0xff] %v6418
        %6643 = vst [vmem:[%s352 + $0x1f0] sm:$0xff] %v6419
        %6644 = vst [vmem:[%s352 + $0x1f8] sm:$0xff] %v6420
        %6645 = vst [vmem:[%s352 + $0x200] sm:$0xff] %v6421
        %6646 = vst [vmem:[%s352 + $0x208] sm:$0xff] %v6422
        %6647 = vst [vmem:[%s352 + $0x210] sm:$0xff] %v6423
        %6648 = vst [vmem:[%s352 + $0x218] sm:$0xff] %v6424
        %6649 = vst [vmem:[%s352 + $0x220] sm:$0xff] %v6425
        %6650 = vst [vmem:[%s352 + $0x228] sm:$0xff] %v6426
        %6651 = vst [vmem:[%s352 + $0x230] sm:$0xff] %v6427
        %6652 = vst [vmem:[%s352 + $0x238] sm:$0xff] %v6428
        %6653 = vst [vmem:[%s352 + $0x240] sm:$0xff] %v6429
        %6654 = vst [vmem:[%s352 + $0x248] sm:$0xff] %v6430
        %6655 = vst [vmem:[%s352 + $0x250] sm:$0xff] %v6431
        %6656 = vst [vmem:[%s352 + $0x258] sm:$0xff] %v6432
        %6657 = vst [vmem:[%s352 + $0x260] sm:$0xff] %v6433
        %6658 = vst [vmem:[%s352 + $0x268] sm:$0xff] %v6434
        %6659 = vst [vmem:[%s352 + $0x270] sm:$0xff] %v6435
        %6660 = vst [vmem:[%s352 + $0x278] sm:$0xff] %v6436
        %6661 = vst [vmem:[%s352 + $0x280] sm:$0xff] %v6437
        %6662 = vst [vmem:[%s352 + $0x288] sm:$0xff] %v6438
        %6663 = vst [vmem:[%s352 + $0x290] sm:$0xff] %v6439
        %6664 = vst [vmem:[%s352 + $0x298] sm:$0xff] %v6440
        %6665 = vst [vmem:[%s352 + $0x2a0] sm:$0xff] %v6441
        %6666 = vst [vmem:[%s352 + $0x2a8] sm:$0xff] %v6442
        %6667 = vst [vmem:[%s352 + $0x2b0] sm:$0xff] %v6443
        %6668 = vst [vmem:[%s352 + $0x2b8] sm:$0xff] %v6444
        %6669 = vst [vmem:[%s352 + $0x2c0] sm:$0xff] %v6445
        %6670 = vst [vmem:[%s352 + $0x2c8] sm:$0xff] %v6446
        %6671 = vst [vmem:[%s352 + $0x2d0] sm:$0xff] %v6447
        %6672 = vst [vmem:[%s352 + $0x2d8] sm:$0xff] %v6448
        %6673 = vst [vmem:[%s352 + $0x2e0] sm:$0xff] %v6449
        %6674 = vst [vmem:[%s352 + $0x2e8] sm:$0xff] %v6450
        %6675 = vst [vmem:[%s352 + $0x2f0] sm:$0xff] %v6451
        %6676 = vst [vmem:[%s352 + $0x2f8] sm:$0xff] %v6452
        %6677 = vst [vmem:[%s352 + $0x300] sm:$0xff] %v6453
        %6678 = vst [vmem:[%s352 + $0x308] sm:$0xff] %v6454
        %6679 = vst [vmem:[%s352 + $0x310] sm:$0xff] %v6455
        %6680 = vst [vmem:[%s352 + $0x318] sm:$0xff] %v6456
        %6681 = vst [vmem:[%s352 + $0x320] sm:$0xff] %v6457
        %6682 = vst [vmem:[%s352 + $0x328] sm:$0xff] %v6458
        %6683 = vst [vmem:[%s352 + $0x330] sm:$0xff] %v6459
        %6684 = vst [vmem:[%s352 + $0x338] sm:$0xff] %v6460
        %6685 = vst [vmem:[%s352 + $0x340] sm:$0xff] %v6461
        %6686 = vst [vmem:[%s352 + $0x348] sm:$0xff] %v6462
        %6687 = vst [vmem:[%s352 + $0x350] sm:$0xff] %v6463
        %6688 = vst [vmem:[%s352 + $0x358] sm:$0xff] %v6464
        %6689 = vst [vmem:[%s352 + $0x360] sm:$0xff] %v6465
        %6690 = vst [vmem:[%s352 + $0x368] sm:$0xff] %v6466
        %6691 = vst [vmem:[%s352 + $0x370] sm:$0xff] %v6467
        %6692 = vst [vmem:[%s352 + $0x378] sm:$0xff] %v6468
        %6693 = vst [vmem:[%s352 + $0x380] sm:$0xff] %v6469
        %6694 = vst [vmem:[%s352 + $0x388] sm:$0xff] %v6470
        %6695 = vst [vmem:[%s352 + $0x390] sm:$0xff] %v6471
        %6696 = vst [vmem:[%s352 + $0x398] sm:$0xff] %v6472
        %6697 = vst [vmem:[%s352 + $0x3a0] sm:$0xff] %v6473
        %6698 = vst [vmem:[%s352 + $0x3a8] sm:$0xff] %v6474
        %6699 = vst [vmem:[%s352 + $0x3b0] sm:$0xff] %v6475
        %6700 = vst [vmem:[%s352 + $0x3b8] sm:$0xff] %v6476
        %6701 = vst [vmem:[%s352 + $0x3c0] sm:$0xff] %v6477
        %6702 = vst [vmem:[%s352 + $0x3c8] sm:$0xff] %v6478
        %6703 = vst [vmem:[%s352 + $0x3d0] sm:$0xff] %v6479
        %6704 = vst [vmem:[%s352 + $0x3d8] sm:$0xff] %v6480
        %6705 = vst [vmem:[%s352 + $0x3e0] sm:$0xff] %v6481
        %6706 = vst [vmem:[%s352 + $0x3e8] sm:$0xff] %v6482
        %6707 = vst [vmem:[%s352 + $0x3f0] sm:$0xff] %v6483
        %6708 = vst [vmem:[%s352 + $0x3f8] sm:$0xff] %v6484
        %6709 = vst [vmem:[%s352 + $0x400] sm:$0xff] %v6485
        %6710 = vst [vmem:[%s352 + $0x408] sm:$0xff] %v6486
        %6711 = vst [vmem:[%s352 + $0x410] sm:$0xff] %v6487
        %6712 = vst [vmem:[%s352 + $0x418] sm:$0xff] %v6488
        %6713 = vst [vmem:[%s352 + $0x420] sm:$0xff] %v6489
        %6714 = vst [vmem:[%s352 + $0x428] sm:$0xff] %v6490
        %6715 = vst [vmem:[%s352 + $0x430] sm:$0xff] %v6491
        %6716 = vst [vmem:[%s352 + $0x438] sm:$0xff] %v6492
        %6717 = vst [vmem:[%s352 + $0x440] sm:$0xff] %v6493
        %6718 = vst [vmem:[%s352 + $0x448] sm:$0xff] %v6494
        %6719 = vst [vmem:[%s352 + $0x450] sm:$0xff] %v6495
        %6720 = vst [vmem:[%s352 + $0x458] sm:$0xff] %v6496
        %6721 = vst [vmem:[%s352 + $0x460] sm:$0xff] %v6497
        %6722 = vst [vmem:[%s352 + $0x468] sm:$0xff] %v6498
        %6723 = vst [vmem:[%s352 + $0x470] sm:$0xff] %v6499
        %6724 = vst [vmem:[%s352 + $0x478] sm:$0xff] %v6500
        %6725 = vst [vmem:[%s352 + $0x480] sm:$0xff] %v6501
        %6726 = vst [vmem:[%s352 + $0x488] sm:$0xff] %v6502
        %6727 = vst [vmem:[%s352 + $0x490] sm:$0xff] %v6503
        %6728 = vst [vmem:[%s352 + $0x498] sm:$0xff] %v6504
        %6729 = vst [vmem:[%s352 + $0x4a0] sm:$0xff] %v6505
        %6730 = vst [vmem:[%s352 + $0x4a8] sm:$0xff] %v6506
        %6731 = vst [vmem:[%s352 + $0x4b0] sm:$0xff] %v6507
        %6732 = vst [vmem:[%s352 + $0x4b8] sm:$0xff] %v6508
        %6733 = vst [vmem:[%s352 + $0x4c0] sm:$0xff] %v6509
        %6734 = vst [vmem:[%s352 + $0x4c8] sm:$0xff] %v6510
        %6735 = vst [vmem:[%s352 + $0x4d0] sm:$0xff] %v6511
        %6736 = vst [vmem:[%s352 + $0x4d8] sm:$0xff] %v6512
        %6737 = vst [vmem:[%s352 + $0x4e0] sm:$0xff] %v6513
        %6738 = vst [vmem:[%s352 + $0x4e8] sm:$0xff] %v6514
        %6739 = vst [vmem:[%s352 + $0x4f0] sm:$0xff] %v6515
        %6740 = vst [vmem:[%s352 + $0x4f8] sm:$0xff] %v6516
        %6741 = vst [vmem:[%s352 + $0x500] sm:$0xff] %v6517
        %6742 = vst [vmem:[%s352 + $0x508] sm:$0xff] %v6518
        %6743 = vst [vmem:[%s352 + $0x510] sm:$0xff] %v6519
        %6744 = vst [vmem:[%s352 + $0x518] sm:$0xff] %v6520
        %6745 = vst [vmem:[%s352 + $0x520] sm:$0xff] %v6521
        %6746 = vst [vmem:[%s352 + $0x528] sm:$0xff] %v6522
        %6747 = vst [vmem:[%s352 + $0x530] sm:$0xff] %v6523
        %6748 = vst [vmem:[%s352 + $0x538] sm:$0xff] %v6524
        %6749 = vst [vmem:[%s352 + $0x540] sm:$0xff] %v6525
        %6750 = vst [vmem:[%s352 + $0x548] sm:$0xff] %v6526
        %6751 = vst [vmem:[%s352 + $0x550] sm:$0xff] %v6527
        %6752 = vst [vmem:[%s352 + $0x558] sm:$0xff] %v6528
        %6753 = vst [vmem:[%s352 + $0x560] sm:$0xff] %v6529
        %6754 = vst [vmem:[%s352 + $0x568] sm:$0xff] %v6530
        %6755 = vst [vmem:[%s352 + $0x570] sm:$0xff] %v6531
        %6756 = vst [vmem:[%s352 + $0x578] sm:$0xff] %v6532
        %6757 = vst [vmem:[%s352 + $0x580] sm:$0xff] %v6533
        %6758 = vst [vmem:[%s352 + $0x588] sm:$0xff] %v6534
        %6759 = vst [vmem:[%s352 + $0x590] sm:$0xff] %v6535
        %6760 = vst [vmem:[%s352 + $0x598] sm:$0xff] %v6536
        %6761 = vst [vmem:[%s352 + $0x5a0] sm:$0xff] %v6537
        %6762 = vst [vmem:[%s352 + $0x5a8] sm:$0xff] %v6538
        %6763 = vst [vmem:[%s352 + $0x5b0] sm:$0xff] %v6539
        %6764 = vst [vmem:[%s352 + $0x5b8] sm:$0xff] %v6540
        %6765 = vst [vmem:[%s352 + $0x5c0] sm:$0xff] %v6541
        %6766 = vst [vmem:[%s352 + $0x5c8] sm:$0xff] %v6542
        %6767 = vst [vmem:[%s352 + $0x5d0] sm:$0xff] %v6543
        %6768 = vst [vmem:[%s352 + $0x5d8] sm:$0xff] %v6544
        %6769 = vst [vmem:[%s352 + $0x5e0] sm:$0xff] %v6545
        %6770 = vst [vmem:[%s352 + $0x5e8] sm:$0xff] %v6546
        %6771 = vst [vmem:[%s352 + $0x5f0] sm:$0xff] %v6547
        %6772 = vst [vmem:[%s352 + $0x5f8] sm:$0xff] %v6548
        %6773 = vst [vmem:[%s352 + $0x600] sm:$0xff] %v6549
        %6774 = vst [vmem:[%s352 + $0x608] sm:$0xff] %v6550
        %6775 = vst [vmem:[%s352 + $0x610] sm:$0xff] %v6551
        %6776 = vst [vmem:[%s352 + $0x618] sm:$0xff] %v6552
        %6777 = vst [vmem:[%s352 + $0x620] sm:$0xff] %v6553
        %6778 = vst [vmem:[%s352 + $0x628] sm:$0xff] %v6554
        %6779 = vst [vmem:[%s352 + $0x630] sm:$0xff] %v6555
        %6780 = vst [vmem:[%s352 + $0x638] sm:$0xff] %v6556
        %6781 = vst [vmem:[%s352 + $0x640] sm:$0xff] %v6557
        %6782 = vst [vmem:[%s352 + $0x648] sm:$0xff] %v6558
        %6783 = vst [vmem:[%s352 + $0x650] sm:$0xff] %v6559
        %6784 = vst [vmem:[%s352 + $0x658] sm:$0xff] %v6560
        %6785 = vst [vmem:[%s352 + $0x660] sm:$0xff] %v6561
        %6786 = vst [vmem:[%s352 + $0x668] sm:$0xff] %v6562
        %6787 = vst [vmem:[%s352 + $0x670] sm:$0xff] %v6563
        %6788 = vst [vmem:[%s352 + $0x678] sm:$0xff] %v6564
        %6789 = vst [vmem:[%s352 + $0x680] sm:$0xff] %v6565
        %6790 = vst [vmem:[%s352 + $0x688] sm:$0xff] %v6566
        %6791 = vst [vmem:[%s352 + $0x690] sm:$0xff] %v6567
        %6792 = vst [vmem:[%s352 + $0x698] sm:$0xff] %v6568
        %6793 = vst [vmem:[%s352 + $0x6a0] sm:$0xff] %v6569
        %6794 = vst [vmem:[%s352 + $0x6a8] sm:$0xff] %v6570
        %6795 = vst [vmem:[%s352 + $0x6b0] sm:$0xff] %v6571
        %6796 = vst [vmem:[%s352 + $0x6b8] sm:$0xff] %v6572
        %6797 = vst [vmem:[%s352 + $0x6c0] sm:$0xff] %v6573
        %6798 = vst [vmem:[%s352 + $0x6c8] sm:$0xff] %v6574
        %6799 = vst [vmem:[%s352 + $0x6d0] sm:$0xff] %v6575
        %6800 = vst [vmem:[%s352 + $0x6d8] sm:$0xff] %v6576
        %6801 = vst [vmem:[%s352 + $0x6e0] sm:$0xff] %v6577
        %6802 = vst [vmem:[%s352 + $0x6e8] sm:$0xff] %v6578
        %6803 = vst [vmem:[%s352 + $0x6f0] sm:$0xff] %v6579
        %6804 = vst [vmem:[%s352 + $0x6f8] sm:$0xff] %v6580
        %s6805 = sand.u32 %s185, 1
        %s6806 = scalar_lea.sflag [#allocation4], %s6805
        %s6807 = sand.u32 %s185, 1
        %s6808 = smul.addr %s6807, 1792
        %s6809 = scalar_lea.vmem [#allocation13], %s6808
        // Predicated region
        $region73: #{tpu_custom_call.1} parent=47 // pred_check
          %p6810 = pneg %p195
        $region74: #{tpu_custom_call.1} parent=47 // pred_check_branch
          %6812 = sbr.rel (%p6810) target = $region76
        $region75: #{tpu_custom_call.1} parent=47 // pred_region
          %s6813 = smul.u32 56, %s25
          %s6815 = ssub.s32 28672, 28672
          %6816 = vsyncadd %s6806, %s6815
          %s6817 = smul.addr %s6813, 4
          %s6818 = smul.addr %s6817, 128
          %s6819 = scalar_lea.hbm %s7, %s6818
          %s6820 = sshll.u32 %s6809, 4
          %s6821 = int_to_ptr.vmem [resolvable:$true] %s6820
          %6826 = dma.vmem_to_hbm [thread:$0]  %s6821, 28672, %s6819, %s6806, 128, 128, 8
        $region76: #{tpu_custom_call.1} parent=47 // pred_fallthru
          _
      $region48: #{tpu_custom_call.1} parent=5 // pred_fallthru
        _
      %p6827 = scmp.le.s32.totalorder 2, %s20
      // Predicated region
      $region77: #{tpu_custom_call.1} parent=5 // pred_check
        %p6828 = pneg %p6827
      $region78: #{tpu_custom_call.1} parent=5 // pred_check_branch
        %6830 = sbr.rel (%p6828) target = $region80
      $region79: #{tpu_custom_call.1} parent=5 // pred_region
        %s6831 = ssub.s32 %s20, 2
        // Predicated region
        $region81: #{tpu_custom_call.1} parent=79 // pred_check
          %p6832 = pneg %p201
        $region82: #{tpu_custom_call.1} parent=79 // pred_check_branch
          %6834 = sbr.rel (%p6832) target = $region84
        $region83: #{tpu_custom_call.1} parent=79 // pred_region
          %s6835 = sand.u32 %s186, 1
          %s6836 = scalar_lea.sflag [#allocation4], %s6835
          %s6837 = sand.u32 %s186, 1
          %s6838 = smul.addr %s6837, 1792
          %s6839 = scalar_lea.vmem [#allocation13], %s6838
          %6840 = dma.done %s6836, 28672
        $region84: #{tpu_custom_call.1} parent=79 // pred_fallthru
          _
      $region80: #{tpu_custom_call.1} parent=5 // pred_fallthru
        _
    $region6: #{tpu_custom_call.1} parent=1 // loop_footer
      %s24 = sadd.s32 1, %s20
    $region7: #{tpu_custom_call.1} parent=1 // loop_footer_branch
      %19 = sbr.rel target = $region3
    $region8: #{tpu_custom_call.1} parent=1 // loop_exit
      _
    %6841 = vsyncpa [#allocation3], 1
    %s6842 = scalar_lea.sflag [#allocation3], 1
    %6843 = vsyncpa %s6842, 1
    %6844 = vsyncpa [#allocation6], 1
    %6845 = vsyncpa [#allocation9], 1
    %6846 = vsyncpa [#allocation12], 1
    %6847 = vsyncpa [#allocation4], 1
    %s6848 = scalar_lea.sflag [#allocation4], 1
    %6849 = vsyncpa %s6848, 1

</llo_original>
